<compile_context>
chip_gen: v7x
topology: tpu7x:2x2x1
jax: 0.10.0
libtpu: 0.0.40
codegen_flags: <defaults>
</compile_context>

<pallas_src>
import functools

import jax
import jax.numpy as jnp
import numpy as np
from jax.experimental import pallas as pl
from jax.experimental.pallas import tpu as pltpu

BN_EPS = 1e-5


def _round_up(x, m):
    return (x + m - 1) // m * m


# ------------------------------- fused kernel ------------------------------- #

def _postnet_fused_kernel(x_ref, mel_w_ref, mel_b_ref, cw_ref, scale_ref, shift_ref,
                          o_ref, *, n_convs, K, T_tile, T_ext, halo, T_real):
    # x_ref     : (1, T_hbm, H_pad)   zero-padded dec_output (halo zeros in front)
    # mel_w_ref : (H_pad, C)          mel_linear weight (padded, transposed)
    # mel_b_ref : (1, C)
    # cw_ref    : (n_convs, K, C, C)  conv weights as (K, C_in, C_out), padded
    # scale_ref : (n_convs, C)        folded BN scale   (0 on padded channels)
    # shift_ref : (n_convs, C)        folded BN+bias shift (0 on padded channels)
    # o_ref     : (1, T_tile, C)
    t = pl.program_id(1)
    t0 = pl.multiple_of(t * T_tile, 8)
    base = t * T_tile - halo          # global time index of extended-window row 0

    # mel_linear over the extended window (stays in VMEM / registers).
    xw = x_ref[0, pl.ds(t0, T_ext), :]                                  # (T_ext, H_pad)
    act = jnp.dot(xw, mel_w_ref[...], preferred_element_type=jnp.float32)
    act = act + mel_b_ref[...]                                          # (T_ext, C)

    def mask_rows(a, layer):
        # Zero rows whose global time index lies outside [0, T_real): this
        # reproduces PyTorch's zero padding of each conv layer's input.
        rows = jax.lax.broadcasted_iota(jnp.int32, (a.shape[0], 1), 0)
        g = rows + (base + 2 * layer)
        valid = (g >= 0) & (g < T_real)
        return jnp.where(valid, a, 0.0)

    act = mask_rows(act, 0)
    residual = act[halo:halo + T_tile, :]   # out_tmp for the central T_tile rows

    scales = scale_ref[...]
    shifts = shift_ref[...]

    # Conv stack: "valid" convolution per layer, buffer shrinks by K-1 rows each
    # layer; row r of the layer-l buffer corresponds to global time base+2l+r.
    for l in range(n_convs):
        L_out = act.shape[0] - (K - 1)
        acc = jnp.zeros((L_out, act.shape[1]), jnp.float32)
        for k in range(K):                                   # static unroll, K=5
            acc = acc + jnp.dot(act[k:k + L_out, :], cw_ref[l, k, :, :],
                                preferred_element_type=jnp.float32)
        y = acc * scales[l:l + 1, :] + shifts[l:l + 1, :]
        if l < n_convs - 1:
            y = jnp.tanh(y)
            y = mask_rows(y, l + 1)
        act = y

    # After n_convs layers, row r <-> global time t*T_tile + r.
    o_ref[0] = act[:T_tile, :] + residual


# ----------------------------- parameter prep ------------------------------- #

def init_params(key, hidden, n_mel, post_dim, kernel_size, n_convs=5):
    """Deterministic synthetic parameters matching FastSpeech2 Postnet shapes."""
    keys = iter(jax.random.split(key, 8 + 6 * n_convs))
    p = {
        # nn.Linear(decoder_hidden, n_mel_channels): weight (M, H), bias (M,)
        "mel_w": 0.1 * jax.random.normal(next(keys), (n_mel, hidden), jnp.float32),
        "mel_b": 0.1 * jax.random.normal(next(keys), (n_mel,), jnp.float32),
        "convs": [],
    }
    chans = [(n_mel, post_dim)] + [(post_dim, post_dim)] * (n_convs - 2) + [(post_dim, n_mel)]
    for (c_in, c_out) in chans:
        layer = {
            "w": 0.1 * jax.random.normal(next(keys), (c_out, c_in, kernel_size), jnp.float32),
            "b": 0.1 * jax.random.normal(next(keys), (c_out,), jnp.float32),
            "gamma": 1.0 + 0.1 * jax.random.normal(next(keys), (c_out,), jnp.float32),
            "beta": 0.1 * jax.random.normal(next(keys), (c_out,), jnp.float32),
            "mean": 0.1 * jax.random.normal(next(keys), (c_out,), jnp.float32),
            "var": jax.random.uniform(next(keys), (c_out,), jnp.float32, 0.5, 1.5),
        }
        p["convs"].append(layer)
    return p


def prepare_params(params):
    """One-time prep: fold BN+bias, transpose, pad channels to 128, stack layers."""
    n_mel, hidden = params["mel_w"].shape
    n_convs = len(params["convs"])
    K = params["convs"][0]["w"].shape[2]
    c_dims = [n_mel] + [l["w"].shape[0] for l in params["convs"]]
    c_max = max(_round_up(c, 128) for c in c_dims)
    h_pad = _round_up(hidden, 128)

    mel_w = jnp.zeros((h_pad, c_max), jnp.float32).at[:hidden, :n_mel].set(
        jnp.transpose(params["mel_w"]))
    mel_b = jnp.zeros((1, c_max), jnp.float32).at[0, :n_mel].set(params["mel_b"])

    cw = jnp.zeros((n_convs, K, c_max, c_max), jnp.float32)
    scale = jnp.zeros((n_convs, c_max), jnp.float32)
    shift = jnp.zeros((n_convs, c_max), jnp.float32)
    for i, layer in enumerate(params["convs"]):
        c_out, c_in, _ = layer["w"].shape
        s = layer["gamma"] / jnp.sqrt(layer["var"] + BN_EPS)
        sh = (layer["b"] - layer["mean"]) * s + layer["beta"]
        w_kic = jnp.transpose(layer["w"], (2, 1, 0))          # (K, C_in, C_out)
        cw = cw.at[i, :, :c_in, :c_out].set(w_kic)
        scale = scale.at[i, :c_out].set(s)
        shift = shift.at[i, :c_out].set(sh)

    return {"mel_w": mel_w, "mel_b": mel_b, "conv_w": cw, "scale": scale,
            "shift": shift, "n_convs": n_convs, "K": K, "n_mel": n_mel,
            "c_max": c_max, "h_pad": h_pad}


# ------------------------------- forward pass -------------------------------- #

def postnet_forward(dec_output, prep):
    """Pallas implementation of Postnet.forward(dec_output): one fused kernel."""
    B, T, H = dec_output.shape
    n_convs, K = prep["n_convs"], prep["K"]
    C, H_pad, n_mel = prep["c_max"], prep["h_pad"], prep["n_mel"]

    pad = (K - 1) // 2
    halo = n_convs * pad                                 # total receptive-field halo
    T_tile = min(_round_up(T, 8), 256)
    nt = (T + T_tile - 1) // T_tile
    T_ext = _round_up(T_tile + 2 * halo, 8)
    T_hbm = (nt - 1) * T_tile + T_ext

    # Single cheap pad of the *input*: halo zeros in time + channel pad to 128.
    x_pad = jnp.pad(dec_output.astype(jnp.float32),
                    ((0, 0), (halo, T_hbm - T - halo), (0, H_pad - H)))

    kern = functools.partial(_postnet_fused_kernel, n_convs=n_convs, K=K,
                             T_tile=T_tile, T_ext=T_ext, halo=halo, T_real=T)
    out = pl.pallas_call(
        kern,
        out_shape=jax.ShapeDtypeStruct((B, nt * T_tile, C), jnp.float32),
        grid=(B, nt),
        in_specs=[
            pl.BlockSpec((1, T_hbm, H_pad), lambda b, t: (b, 0, 0)),       # dec_output (resident per b)
            pl.BlockSpec((H_pad, C), lambda b, t: (0, 0)),                 # mel weight (resident)
            pl.BlockSpec((1, C), lambda b, t: (0, 0)),                     # mel bias
            pl.BlockSpec((n_convs, K, C, C), lambda b, t: (0, 0, 0, 0)),   # conv weights (resident)
            pl.BlockSpec((n_convs, C), lambda b, t: (0, 0)),               # BN scale
            pl.BlockSpec((n_convs, C), lambda b, t: (0, 0)),               # BN shift
        ],
        out_specs=pl.BlockSpec((1, T_tile, C), lambda b, t: (b, t, 0)),
        compiler_params=pltpu.CompilerParams(
            dimension_semantics=("parallel", "parallel")),
    )(x_pad, prep["mel_w"], prep["mel_b"], prep["conv_w"], prep["scale"], prep["shift"])

    return out[:, :T, :n_mel]


# ------------------------------ pure-JAX reference --------------------------- #

def postnet_reference(dec_output, params):
    """Pure-JAX reference mirroring the PyTorch module (eval mode)."""
    out_tmp = dec_output @ jnp.transpose(params["mel_w"]) + params["mel_b"]
    x = jnp.transpose(out_tmp, (0, 2, 1))  # (B, C, T) like PyTorch transpose(1, 2)
    n = len(params["convs"])
    for i, layer in enumerate(params["convs"]):
        y = jax.lax.conv_general_dilated(
            x, layer["w"], window_strides=(1,), padding=[(2, 2)],
            dimension_numbers=("NCH", "OIH", "NCH"),
            precision=jax.lax.Precision.HIGHEST,
        ) + layer["b"][None, :, None]
        y = (y - layer["mean"][None, :, None]) / jnp.sqrt(layer["var"] + BN_EPS)[None, :, None]
        y = y * layer["gamma"][None, :, None] + layer["beta"][None, :, None]
        if i < n - 1:
            y = jnp.tanh(y)
        x = y
    return jnp.transpose(x, (0, 2, 1)) + out_tmp


# ----------------------------------- main ------------------------------------ #

if __name__ == "__main__":
    B, T, HIDDEN, N_MEL, POST_DIM, KSIZE = 2, 16, 32, 8, 16, 5

    key = jax.random.PRNGKey(0)
    k_x, k_p = jax.random.split(key)
    dec_output = jax.random.normal(k_x, (B, T, HIDDEN), jnp.float32)
    params = init_params(k_p, HIDDEN, N_MEL, POST_DIM, KSIZE)

    prep = prepare_params(params)          # BN fold / pad / stack: done once
    fwd = jax.jit(lambda x: postnet_forward(x, prep))

    out = fwd(dec_output)
    out = jax.block_until_ready(out)

    ref = postnet_reference(dec_output, params)
    assert out.shape == (B, T, N_MEL), out.shape
    np.testing.assert_allclose(np.asarray(out), np.asarray(ref), rtol=2e-3, atol=2e-3)

    print("KERNEL_OK")
</pallas_src>

<mosaic_0001>
module attributes {stable_mosaic.version = 11 : i64} {
  func.func @_postnet_fused_kernel(%arg0: i32, %arg1: i32, %arg2: memref<1x40x128xf32, #tpu.memory_space<vmem>>, %arg3: memref<128x128xf32, #tpu.memory_space<vmem>>, %arg4: memref<1x128xf32, #tpu.memory_space<vmem>>, %arg5: memref<5x5x128x128xf32, #tpu.memory_space<vmem>>, %arg6: memref<5x128xf32, #tpu.memory_space<vmem>>, %arg7: memref<5x128xf32, #tpu.memory_space<vmem>>, %arg8: memref<1x16x128xf32, #tpu.memory_space<vmem>>) attributes {dimension_semantics = [#tpu.dimension_semantics<parallel>, #tpu.dimension_semantics<parallel>], iteration_bounds = array<i64: 2, 1>, scalar_prefetch = 0 : i64, scratch_operands = 0 : i64, tpu.core_type = #tpu.core_type<tc>, window_params = [{transform_indices = @transform_0, window_bounds = array<i64: 1, 40, 128>}, {pipeline_mode = #tpu.pipeline_mode<synchronous>, transform_indices = @transform_1, window_bounds = array<i64: 128, 128>}, {pipeline_mode = #tpu.pipeline_mode<synchronous>, transform_indices = @transform_2, window_bounds = array<i64: 1, 128>}, {pipeline_mode = #tpu.pipeline_mode<synchronous>, transform_indices = @transform_3, window_bounds = array<i64: 5, 5, 128, 128>}, {pipeline_mode = #tpu.pipeline_mode<synchronous>, transform_indices = @transform_4, window_bounds = array<i64: 5, 128>}, {pipeline_mode = #tpu.pipeline_mode<synchronous>, transform_indices = @transform_5, window_bounds = array<i64: 5, 128>}, {transform_indices = @transform_6, window_bounds = array<i64: 1, 16, 128>}]} {
    %c16_i32 = arith.constant 16 : i32
    %0 = arith.muli %arg1, %c16_i32 : i32
    %1 = tpu.assume_multiple %0, 8 : i32
    %c16_i32_0 = arith.constant 16 : i32
    %2 = arith.muli %arg1, %c16_i32_0 : i32
    %c10_i32 = arith.constant 10 : i32
    %3 = arith.subi %2, %c10_i32 : i32
    %c0 = arith.constant 0 : index
    %4 = arith.index_cast %1 : i32 to index
    %c0_1 = arith.constant 0 : index
    %5 = vector.load %arg2[%c0, %4, %c0_1] : memref<1x40x128xf32, #tpu.memory_space<vmem>>, vector<1x40x128xf32>
    %6 = vector.shape_cast %5 : vector<1x40x128xf32> to vector<40x128xf32>
    %c0_2 = arith.constant 0 : index
    %c0_3 = arith.constant 0 : index
    %7 = vector.load %arg3[%c0_2, %c0_3] : memref<128x128xf32, #tpu.memory_space<vmem>>, vector<128x128xf32>
    %cst = arith.constant dense<0.000000e+00> : vector<40x128xf32>
    %8 = tpu.matmul %6, %7, %cst {dimension_numbers = #tpu.dot_dimension_numbers<[1], [0], [0], [1], [0, 0, 1, 1], [], []>} : vector<40x128xf32>, vector<128x128xf32>, vector<40x128xf32> -> vector<40x128xf32>
    %c0_4 = arith.constant 0 : index
    %c0_5 = arith.constant 0 : index
    %9 = vector.load %arg4[%c0_4, %c0_5] : memref<1x128xf32, #tpu.memory_space<vmem>>, vector<1x128xf32>
    %10 = vector.broadcast %9 : vector<1x128xf32> to vector<40x128xf32>
    %11 = arith.addf %8, %10 : vector<40x128xf32>
    %12 = tpu.iota {dimensions = array<i32: 0>} : vector<40x1xi32>
    %c0_i32 = arith.constant 0 : i32
    %13 = arith.addi %3, %c0_i32 : i32
    %14 = vector.broadcast %13 : i32 to vector<40x1xi32>
    %15 = arith.addi %12, %14 : vector<40x1xi32>
    %c0_i32_6 = arith.constant 0 : i32
    %16 = vector.broadcast %c0_i32_6 : i32 to vector<40x1xi32>
    %17 = arith.cmpi sge, %15, %16 : vector<40x1xi32>
    %c16_i32_7 = arith.constant 16 : i32
    %18 = vector.broadcast %c16_i32_7 : i32 to vector<40x1xi32>
    %19 = arith.cmpi slt, %15, %18 : vector<40x1xi32>
    %20 = arith.andi %17, %19 : vector<40x1xi1>
    %cst_8 = arith.constant 0.000000e+00 : f32
    %21 = vector.shape_cast %20 : vector<40x1xi1> to vector<40x1xi1>
    %22 = vector.broadcast %21 : vector<40x1xi1> to vector<40x128xi1>
    %23 = vector.broadcast %cst_8 : f32 to vector<40x128xf32>
    %24 = arith.select %22, %11, %23 : vector<40x128xi1>, vector<40x128xf32>
    %25 = vector.extract_strided_slice %24 {offsets = [10, 0], sizes = [16, 128], strides = [1, 1]} : vector<40x128xf32> to vector<16x128xf32>
    %c0_9 = arith.constant 0 : index
    %c0_10 = arith.constant 0 : index
    %26 = vector.load %arg6[%c0_9, %c0_10] : memref<5x128xf32, #tpu.memory_space<vmem>>, vector<5x128xf32>
    %c0_11 = arith.constant 0 : index
    %c0_12 = arith.constant 0 : index
    %27 = vector.load %arg7[%c0_11, %c0_12] : memref<5x128xf32, #tpu.memory_space<vmem>>, vector<5x128xf32>
    %cst_13 = arith.constant 0.000000e+00 : f32
    %28 = vector.broadcast %cst_13 : f32 to vector<36x128xf32>
    %29 = vector.extract_strided_slice %24 {offsets = [0, 0], sizes = [36, 128], strides = [1, 1]} : vector<40x128xf32> to vector<36x128xf32>
    %c0_14 = arith.constant 0 : index
    %c0_15 = arith.constant 0 : index
    %c0_16 = arith.constant 0 : index
    %c0_17 = arith.constant 0 : index
    %30 = vector.load %arg5[%c0_14, %c0_15, %c0_16, %c0_17] : memref<5x5x128x128xf32, #tpu.memory_space<vmem>>, vector<1x1x128x128xf32>
    %31 = vector.shape_cast %30 : vector<1x1x128x128xf32> to vector<128x128xf32>
    %cst_18 = arith.constant dense<0.000000e+00> : vector<36x128xf32>
    %32 = tpu.matmul %29, %31, %cst_18 {dimension_numbers = #tpu.dot_dimension_numbers<[1], [0], [0], [1], [0, 0, 1, 1], [], []>} : vector<36x128xf32>, vector<128x128xf32>, vector<36x128xf32> -> vector<36x128xf32>
    %33 = arith.addf %28, %32 : vector<36x128xf32>
    %34 = vector.extract_strided_slice %24 {offsets = [1, 0], sizes = [36, 128], strides = [1, 1]} : vector<40x128xf32> to vector<36x128xf32>
    %c0_19 = arith.constant 0 : index
    %c1 = arith.constant 1 : index
    %c0_20 = arith.constant 0 : index
    %c0_21 = arith.constant 0 : index
    %35 = vector.load %arg5[%c0_19, %c1, %c0_20, %c0_21] : memref<5x5x128x128xf32, #tpu.memory_space<vmem>>, vector<1x1x128x128xf32>
    %36 = vector.shape_cast %35 : vector<1x1x128x128xf32> to vector<128x128xf32>
    %cst_22 = arith.constant dense<0.000000e+00> : vector<36x128xf32>
    %37 = tpu.matmul %34, %36, %cst_22 {dimension_numbers = #tpu.dot_dimension_numbers<[1], [0], [0], [1], [0, 0, 1, 1], [], []>} : vector<36x128xf32>, vector<128x128xf32>, vector<36x128xf32> -> vector<36x128xf32>
    %38 = arith.addf %33, %37 : vector<36x128xf32>
    %39 = vector.extract_strided_slice %24 {offsets = [2, 0], sizes = [36, 128], strides = [1, 1]} : vector<40x128xf32> to vector<36x128xf32>
    %c0_23 = arith.constant 0 : index
    %c2 = arith.constant 2 : index
    %c0_24 = arith.constant 0 : index
    %c0_25 = arith.constant 0 : index
    %40 = vector.load %arg5[%c0_23, %c2, %c0_24, %c0_25] : memref<5x5x128x128xf32, #tpu.memory_space<vmem>>, vector<1x1x128x128xf32>
    %41 = vector.shape_cast %40 : vector<1x1x128x128xf32> to vector<128x128xf32>
    %cst_26 = arith.constant dense<0.000000e+00> : vector<36x128xf32>
    %42 = tpu.matmul %39, %41, %cst_26 {dimension_numbers = #tpu.dot_dimension_numbers<[1], [0], [0], [1], [0, 0, 1, 1], [], []>} : vector<36x128xf32>, vector<128x128xf32>, vector<36x128xf32> -> vector<36x128xf32>
    %43 = arith.addf %38, %42 : vector<36x128xf32>
    %44 = vector.extract_strided_slice %24 {offsets = [3, 0], sizes = [36, 128], strides = [1, 1]} : vector<40x128xf32> to vector<36x128xf32>
    %c0_27 = arith.constant 0 : index
    %c3 = arith.constant 3 : index
    %c0_28 = arith.constant 0 : index
    %c0_29 = arith.constant 0 : index
    %45 = vector.load %arg5[%c0_27, %c3, %c0_28, %c0_29] : memref<5x5x128x128xf32, #tpu.memory_space<vmem>>, vector<1x1x128x128xf32>
    %46 = vector.shape_cast %45 : vector<1x1x128x128xf32> to vector<128x128xf32>
    %cst_30 = arith.constant dense<0.000000e+00> : vector<36x128xf32>
    %47 = tpu.matmul %44, %46, %cst_30 {dimension_numbers = #tpu.dot_dimension_numbers<[1], [0], [0], [1], [0, 0, 1, 1], [], []>} : vector<36x128xf32>, vector<128x128xf32>, vector<36x128xf32> -> vector<36x128xf32>
    %48 = arith.addf %43, %47 : vector<36x128xf32>
    %49 = vector.extract_strided_slice %24 {offsets = [4, 0], sizes = [36, 128], strides = [1, 1]} : vector<40x128xf32> to vector<36x128xf32>
    %c0_31 = arith.constant 0 : index
    %c4 = arith.constant 4 : index
    %c0_32 = arith.constant 0 : index
    %c0_33 = arith.constant 0 : index
    %50 = vector.load %arg5[%c0_31, %c4, %c0_32, %c0_33] : memref<5x5x128x128xf32, #tpu.memory_space<vmem>>, vector<1x1x128x128xf32>
    %51 = vector.shape_cast %50 : vector<1x1x128x128xf32> to vector<128x128xf32>
    %cst_34 = arith.constant dense<0.000000e+00> : vector<36x128xf32>
    %52 = tpu.matmul %49, %51, %cst_34 {dimension_numbers = #tpu.dot_dimension_numbers<[1], [0], [0], [1], [0, 0, 1, 1], [], []>} : vector<36x128xf32>, vector<128x128xf32>, vector<36x128xf32> -> vector<36x128xf32>
    %53 = arith.addf %48, %52 : vector<36x128xf32>
    %54 = vector.extract_strided_slice %26 {offsets = [0, 0], sizes = [1, 128], strides = [1, 1]} : vector<5x128xf32> to vector<1x128xf32>
    %55 = vector.broadcast %54 : vector<1x128xf32> to vector<36x128xf32>
    %56 = arith.mulf %53, %55 : vector<36x128xf32>
    %57 = vector.extract_strided_slice %27 {offsets = [0, 0], sizes = [1, 128], strides = [1, 1]} : vector<5x128xf32> to vector<1x128xf32>
    %58 = vector.broadcast %57 : vector<1x128xf32> to vector<36x128xf32>
    %59 = arith.addf %56, %58 : vector<36x128xf32>
    %60 = math.tanh %59 : vector<36x128xf32>
    %61 = tpu.iota {dimensions = array<i32: 0>} : vector<36x1xi32>
    %c2_i32 = arith.constant 2 : i32
    %62 = arith.addi %3, %c2_i32 : i32
    %63 = vector.broadcast %62 : i32 to vector<36x1xi32>
    %64 = arith.addi %61, %63 : vector<36x1xi32>
    %c0_i32_35 = arith.constant 0 : i32
    %65 = vector.broadcast %c0_i32_35 : i32 to vector<36x1xi32>
    %66 = arith.cmpi sge, %64, %65 : vector<36x1xi32>
    %c16_i32_36 = arith.constant 16 : i32
    %67 = vector.broadcast %c16_i32_36 : i32 to vector<36x1xi32>
    %68 = arith.cmpi slt, %64, %67 : vector<36x1xi32>
    %69 = arith.andi %66, %68 : vector<36x1xi1>
    %cst_37 = arith.constant 0.000000e+00 : f32
    %70 = vector.shape_cast %69 : vector<36x1xi1> to vector<36x1xi1>
    %71 = vector.broadcast %70 : vector<36x1xi1> to vector<36x128xi1>
    %72 = vector.broadcast %cst_37 : f32 to vector<36x128xf32>
    %73 = arith.select %71, %60, %72 : vector<36x128xi1>, vector<36x128xf32>
    %cst_38 = arith.constant 0.000000e+00 : f32
    %74 = vector.broadcast %cst_38 : f32 to vector<32x128xf32>
    %75 = vector.extract_strided_slice %73 {offsets = [0, 0], sizes = [32, 128], strides = [1, 1]} : vector<36x128xf32> to vector<32x128xf32>
    %c1_39 = arith.constant 1 : index
    %c0_40 = arith.constant 0 : index
    %c0_41 = arith.constant 0 : index
    %c0_42 = arith.constant 0 : index
    %76 = vector.load %arg5[%c1_39, %c0_40, %c0_41, %c0_42] : memref<5x5x128x128xf32, #tpu.memory_space<vmem>>, vector<1x1x128x128xf32>
    %77 = vector.shape_cast %76 : vector<1x1x128x128xf32> to vector<128x128xf32>
    %cst_43 = arith.constant dense<0.000000e+00> : vector<32x128xf32>
    %78 = tpu.matmul %75, %77, %cst_43 {dimension_numbers = #tpu.dot_dimension_numbers<[1], [0], [0], [1], [0, 0, 1, 1], [], []>} : vector<32x128xf32>, vector<128x128xf32>, vector<32x128xf32> -> vector<32x128xf32>
    %79 = arith.addf %74, %78 : vector<32x128xf32>
    %80 = vector.extract_strided_slice %73 {offsets = [1, 0], sizes = [32, 128], strides = [1, 1]} : vector<36x128xf32> to vector<32x128xf32>
    %c1_44 = arith.constant 1 : index
    %c1_45 = arith.constant 1 : index
    %c0_46 = arith.constant 0 : index
    %c0_47 = arith.constant 0 : index
    %81 = vector.load %arg5[%c1_44, %c1_45, %c0_46, %c0_47] : memref<5x5x128x128xf32, #tpu.memory_space<vmem>>, vector<1x1x128x128xf32>
    %82 = vector.shape_cast %81 : vector<1x1x128x128xf32> to vector<128x128xf32>
    %cst_48 = arith.constant dense<0.000000e+00> : vector<32x128xf32>
    %83 = tpu.matmul %80, %82, %cst_48 {dimension_numbers = #tpu.dot_dimension_numbers<[1], [0], [0], [1], [0, 0, 1, 1], [], []>} : vector<32x128xf32>, vector<128x128xf32>, vector<32x128xf32> -> vector<32x128xf32>
    %84 = arith.addf %79, %83 : vector<32x128xf32>
    %85 = vector.extract_strided_slice %73 {offsets = [2, 0], sizes = [32, 128], strides = [1, 1]} : vector<36x128xf32> to vector<32x128xf32>
    %c1_49 = arith.constant 1 : index
    %c2_50 = arith.constant 2 : index
    %c0_51 = arith.constant 0 : index
    %c0_52 = arith.constant 0 : index
    %86 = vector.load %arg5[%c1_49, %c2_50, %c0_51, %c0_52] : memref<5x5x128x128xf32, #tpu.memory_space<vmem>>, vector<1x1x128x128xf32>
    %87 = vector.shape_cast %86 : vector<1x1x128x128xf32> to vector<128x128xf32>
    %cst_53 = arith.constant dense<0.000000e+00> : vector<32x128xf32>
    %88 = tpu.matmul %85, %87, %cst_53 {dimension_numbers = #tpu.dot_dimension_numbers<[1], [0], [0], [1], [0, 0, 1, 1], [], []>} : vector<32x128xf32>, vector<128x128xf32>, vector<32x128xf32> -> vector<32x128xf32>
    %89 = arith.addf %84, %88 : vector<32x128xf32>
    %90 = vector.extract_strided_slice %73 {offsets = [3, 0], sizes = [32, 128], strides = [1, 1]} : vector<36x128xf32> to vector<32x128xf32>
    %c1_54 = arith.constant 1 : index
    %c3_55 = arith.constant 3 : index
    %c0_56 = arith.constant 0 : index
    %c0_57 = arith.constant 0 : index
    %91 = vector.load %arg5[%c1_54, %c3_55, %c0_56, %c0_57] : memref<5x5x128x128xf32, #tpu.memory_space<vmem>>, vector<1x1x128x128xf32>
    %92 = vector.shape_cast %91 : vector<1x1x128x128xf32> to vector<128x128xf32>
    %cst_58 = arith.constant dense<0.000000e+00> : vector<32x128xf32>
    %93 = tpu.matmul %90, %92, %cst_58 {dimension_numbers = #tpu.dot_dimension_numbers<[1], [0], [0], [1], [0, 0, 1, 1], [], []>} : vector<32x128xf32>, vector<128x128xf32>, vector<32x128xf32> -> vector<32x128xf32>
    %94 = arith.addf %89, %93 : vector<32x128xf32>
    %95 = vector.extract_strided_slice %73 {offsets = [4, 0], sizes = [32, 128], strides = [1, 1]} : vector<36x128xf32> to vector<32x128xf32>
    %c1_59 = arith.constant 1 : index
    %c4_60 = arith.constant 4 : index
    %c0_61 = arith.constant 0 : index
    %c0_62 = arith.constant 0 : index
    %96 = vector.load %arg5[%c1_59, %c4_60, %c0_61, %c0_62] : memref<5x5x128x128xf32, #tpu.memory_space<vmem>>, vector<1x1x128x128xf32>
    %97 = vector.shape_cast %96 : vector<1x1x128x128xf32> to vector<128x128xf32>
    %cst_63 = arith.constant dense<0.000000e+00> : vector<32x128xf32>
    %98 = tpu.matmul %95, %97, %cst_63 {dimension_numbers = #tpu.dot_dimension_numbers<[1], [0], [0], [1], [0, 0, 1, 1], [], []>} : vector<32x128xf32>, vector<128x128xf32>, vector<32x128xf32> -> vector<32x128xf32>
    %99 = arith.addf %94, %98 : vector<32x128xf32>
    %100 = vector.extract_strided_slice %26 {offsets = [1, 0], sizes = [1, 128], strides = [1, 1]} : vector<5x128xf32> to vector<1x128xf32>
    %101 = vector.broadcast %100 : vector<1x128xf32> to vector<32x128xf32>
    %102 = arith.mulf %99, %101 : vector<32x128xf32>
    %103 = vector.extract_strided_slice %27 {offsets = [1, 0], sizes = [1, 128], strides = [1, 1]} : vector<5x128xf32> to vector<1x128xf32>
    %104 = vector.broadcast %103 : vector<1x128xf32> to vector<32x128xf32>
    %105 = arith.addf %102, %104 : vector<32x128xf32>
    %106 = math.tanh %105 : vector<32x128xf32>
    %107 = tpu.iota {dimensions = array<i32: 0>} : vector<32x1xi32>
    %c4_i32 = arith.constant 4 : i32
    %108 = arith.addi %3, %c4_i32 : i32
    %109 = vector.broadcast %108 : i32 to vector<32x1xi32>
    %110 = arith.addi %107, %109 : vector<32x1xi32>
    %c0_i32_64 = arith.constant 0 : i32
    %111 = vector.broadcast %c0_i32_64 : i32 to vector<32x1xi32>
    %112 = arith.cmpi sge, %110, %111 : vector<32x1xi32>
    %c16_i32_65 = arith.constant 16 : i32
    %113 = vector.broadcast %c16_i32_65 : i32 to vector<32x1xi32>
    %114 = arith.cmpi slt, %110, %113 : vector<32x1xi32>
    %115 = arith.andi %112, %114 : vector<32x1xi1>
    %cst_66 = arith.constant 0.000000e+00 : f32
    %116 = vector.shape_cast %115 : vector<32x1xi1> to vector<32x1xi1>
    %117 = vector.broadcast %116 : vector<32x1xi1> to vector<32x128xi1>
    %118 = vector.broadcast %cst_66 : f32 to vector<32x128xf32>
    %119 = arith.select %117, %106, %118 : vector<32x128xi1>, vector<32x128xf32>
    %cst_67 = arith.constant 0.000000e+00 : f32
    %120 = vector.broadcast %cst_67 : f32 to vector<28x128xf32>
    %121 = vector.extract_strided_slice %119 {offsets = [0, 0], sizes = [28, 128], strides = [1, 1]} : vector<32x128xf32> to vector<28x128xf32>
    %c2_68 = arith.constant 2 : index
    %c0_69 = arith.constant 0 : index
    %c0_70 = arith.constant 0 : index
    %c0_71 = arith.constant 0 : index
    %122 = vector.load %arg5[%c2_68, %c0_69, %c0_70, %c0_71] : memref<5x5x128x128xf32, #tpu.memory_space<vmem>>, vector<1x1x128x128xf32>
    %123 = vector.shape_cast %122 : vector<1x1x128x128xf32> to vector<128x128xf32>
    %cst_72 = arith.constant dense<0.000000e+00> : vector<28x128xf32>
    %124 = tpu.matmul %121, %123, %cst_72 {dimension_numbers = #tpu.dot_dimension_numbers<[1], [0], [0], [1], [0, 0, 1, 1], [], []>} : vector<28x128xf32>, vector<128x128xf32>, vector<28x128xf32> -> vector<28x128xf32>
    %125 = arith.addf %120, %124 : vector<28x128xf32>
    %126 = vector.extract_strided_slice %119 {offsets = [1, 0], sizes = [28, 128], strides = [1, 1]} : vector<32x128xf32> to vector<28x128xf32>
    %c2_73 = arith.constant 2 : index
    %c1_74 = arith.constant 1 : index
    %c0_75 = arith.constant 0 : index
    %c0_76 = arith.constant 0 : index
    %127 = vector.load %arg5[%c2_73, %c1_74, %c0_75, %c0_76] : memref<5x5x128x128xf32, #tpu.memory_space<vmem>>, vector<1x1x128x128xf32>
    %128 = vector.shape_cast %127 : vector<1x1x128x128xf32> to vector<128x128xf32>
    %cst_77 = arith.constant dense<0.000000e+00> : vector<28x128xf32>
    %129 = tpu.matmul %126, %128, %cst_77 {dimension_numbers = #tpu.dot_dimension_numbers<[1], [0], [0], [1], [0, 0, 1, 1], [], []>} : vector<28x128xf32>, vector<128x128xf32>, vector<28x128xf32> -> vector<28x128xf32>
    %130 = arith.addf %125, %129 : vector<28x128xf32>
    %131 = vector.extract_strided_slice %119 {offsets = [2, 0], sizes = [28, 128], strides = [1, 1]} : vector<32x128xf32> to vector<28x128xf32>
    %c2_78 = arith.constant 2 : index
    %c2_79 = arith.constant 2 : index
    %c0_80 = arith.constant 0 : index
    %c0_81 = arith.constant 0 : index
    %132 = vector.load %arg5[%c2_78, %c2_79, %c0_80, %c0_81] : memref<5x5x128x128xf32, #tpu.memory_space<vmem>>, vector<1x1x128x128xf32>
    %133 = vector.shape_cast %132 : vector<1x1x128x128xf32> to vector<128x128xf32>
    %cst_82 = arith.constant dense<0.000000e+00> : vector<28x128xf32>
    %134 = tpu.matmul %131, %133, %cst_82 {dimension_numbers = #tpu.dot_dimension_numbers<[1], [0], [0], [1], [0, 0, 1, 1], [], []>} : vector<28x128xf32>, vector<128x128xf32>, vector<28x128xf32> -> vector<28x128xf32>
    %135 = arith.addf %130, %134 : vector<28x128xf32>
    %136 = vector.extract_strided_slice %119 {offsets = [3, 0], sizes = [28, 128], strides = [1, 1]} : vector<32x128xf32> to vector<28x128xf32>
    %c2_83 = arith.constant 2 : index
    %c3_84 = arith.constant 3 : index
    %c0_85 = arith.constant 0 : index
    %c0_86 = arith.constant 0 : index
    %137 = vector.load %arg5[%c2_83, %c3_84, %c0_85, %c0_86] : memref<5x5x128x128xf32, #tpu.memory_space<vmem>>, vector<1x1x128x128xf32>
    %138 = vector.shape_cast %137 : vector<1x1x128x128xf32> to vector<128x128xf32>
    %cst_87 = arith.constant dense<0.000000e+00> : vector<28x128xf32>
    %139 = tpu.matmul %136, %138, %cst_87 {dimension_numbers = #tpu.dot_dimension_numbers<[1], [0], [0], [1], [0, 0, 1, 1], [], []>} : vector<28x128xf32>, vector<128x128xf32>, vector<28x128xf32> -> vector<28x128xf32>
    %140 = arith.addf %135, %139 : vector<28x128xf32>
    %141 = vector.extract_strided_slice %119 {offsets = [4, 0], sizes = [28, 128], strides = [1, 1]} : vector<32x128xf32> to vector<28x128xf32>
    %c2_88 = arith.constant 2 : index
    %c4_89 = arith.constant 4 : index
    %c0_90 = arith.constant 0 : index
    %c0_91 = arith.constant 0 : index
    %142 = vector.load %arg5[%c2_88, %c4_89, %c0_90, %c0_91] : memref<5x5x128x128xf32, #tpu.memory_space<vmem>>, vector<1x1x128x128xf32>
    %143 = vector.shape_cast %142 : vector<1x1x128x128xf32> to vector<128x128xf32>
    %cst_92 = arith.constant dense<0.000000e+00> : vector<28x128xf32>
    %144 = tpu.matmul %141, %143, %cst_92 {dimension_numbers = #tpu.dot_dimension_numbers<[1], [0], [0], [1], [0, 0, 1, 1], [], []>} : vector<28x128xf32>, vector<128x128xf32>, vector<28x128xf32> -> vector<28x128xf32>
    %145 = arith.addf %140, %144 : vector<28x128xf32>
    %146 = vector.extract_strided_slice %26 {offsets = [2, 0], sizes = [1, 128], strides = [1, 1]} : vector<5x128xf32> to vector<1x128xf32>
    %147 = vector.broadcast %146 : vector<1x128xf32> to vector<28x128xf32>
    %148 = arith.mulf %145, %147 : vector<28x128xf32>
    %149 = vector.extract_strided_slice %27 {offsets = [2, 0], sizes = [1, 128], strides = [1, 1]} : vector<5x128xf32> to vector<1x128xf32>
    %150 = vector.broadcast %149 : vector<1x128xf32> to vector<28x128xf32>
    %151 = arith.addf %148, %150 : vector<28x128xf32>
    %152 = math.tanh %151 : vector<28x128xf32>
    %153 = tpu.iota {dimensions = array<i32: 0>} : vector<28x1xi32>
    %c6_i32 = arith.constant 6 : i32
    %154 = arith.addi %3, %c6_i32 : i32
    %155 = vector.broadcast %154 : i32 to vector<28x1xi32>
    %156 = arith.addi %153, %155 : vector<28x1xi32>
    %c0_i32_93 = arith.constant 0 : i32
    %157 = vector.broadcast %c0_i32_93 : i32 to vector<28x1xi32>
    %158 = arith.cmpi sge, %156, %157 : vector<28x1xi32>
    %c16_i32_94 = arith.constant 16 : i32
    %159 = vector.broadcast %c16_i32_94 : i32 to vector<28x1xi32>
    %160 = arith.cmpi slt, %156, %159 : vector<28x1xi32>
    %161 = arith.andi %158, %160 : vector<28x1xi1>
    %cst_95 = arith.constant 0.000000e+00 : f32
    %162 = vector.shape_cast %161 : vector<28x1xi1> to vector<28x1xi1>
    %163 = vector.broadcast %162 : vector<28x1xi1> to vector<28x128xi1>
    %164 = vector.broadcast %cst_95 : f32 to vector<28x128xf32>
    %165 = arith.select %163, %152, %164 : vector<28x128xi1>, vector<28x128xf32>
    %cst_96 = arith.constant 0.000000e+00 : f32
    %166 = vector.broadcast %cst_96 : f32 to vector<24x128xf32>
    %167 = vector.extract_strided_slice %165 {offsets = [0, 0], sizes = [24, 128], strides = [1, 1]} : vector<28x128xf32> to vector<24x128xf32>
    %c3_97 = arith.constant 3 : index
    %c0_98 = arith.constant 0 : index
    %c0_99 = arith.constant 0 : index
    %c0_100 = arith.constant 0 : index
    %168 = vector.load %arg5[%c3_97, %c0_98, %c0_99, %c0_100] : memref<5x5x128x128xf32, #tpu.memory_space<vmem>>, vector<1x1x128x128xf32>
    %169 = vector.shape_cast %168 : vector<1x1x128x128xf32> to vector<128x128xf32>
    %cst_101 = arith.constant dense<0.000000e+00> : vector<24x128xf32>
    %170 = tpu.matmul %167, %169, %cst_101 {dimension_numbers = #tpu.dot_dimension_numbers<[1], [0], [0], [1], [0, 0, 1, 1], [], []>} : vector<24x128xf32>, vector<128x128xf32>, vector<24x128xf32> -> vector<24x128xf32>
    %171 = arith.addf %166, %170 : vector<24x128xf32>
    %172 = vector.extract_strided_slice %165 {offsets = [1, 0], sizes = [24, 128], strides = [1, 1]} : vector<28x128xf32> to vector<24x128xf32>
    %c3_102 = arith.constant 3 : index
    %c1_103 = arith.constant 1 : index
    %c0_104 = arith.constant 0 : index
    %c0_105 = arith.constant 0 : index
    %173 = vector.load %arg5[%c3_102, %c1_103, %c0_104, %c0_105] : memref<5x5x128x128xf32, #tpu.memory_space<vmem>>, vector<1x1x128x128xf32>
    %174 = vector.shape_cast %173 : vector<1x1x128x128xf32> to vector<128x128xf32>
    %cst_106 = arith.constant dense<0.000000e+00> : vector<24x128xf32>
    %175 = tpu.matmul %172, %174, %cst_106 {dimension_numbers = #tpu.dot_dimension_numbers<[1], [0], [0], [1], [0, 0, 1, 1], [], []>} : vector<24x128xf32>, vector<128x128xf32>, vector<24x128xf32> -> vector<24x128xf32>
    %176 = arith.addf %171, %175 : vector<24x128xf32>
    %177 = vector.extract_strided_slice %165 {offsets = [2, 0], sizes = [24, 128], strides = [1, 1]} : vector<28x128xf32> to vector<24x128xf32>
    %c3_107 = arith.constant 3 : index
    %c2_108 = arith.constant 2 : index
    %c0_109 = arith.constant 0 : index
    %c0_110 = arith.constant 0 : index
    %178 = vector.load %arg5[%c3_107, %c2_108, %c0_109, %c0_110] : memref<5x5x128x128xf32, #tpu.memory_space<vmem>>, vector<1x1x128x128xf32>
    %179 = vector.shape_cast %178 : vector<1x1x128x128xf32> to vector<128x128xf32>
    %cst_111 = arith.constant dense<0.000000e+00> : vector<24x128xf32>
    %180 = tpu.matmul %177, %179, %cst_111 {dimension_numbers = #tpu.dot_dimension_numbers<[1], [0], [0], [1], [0, 0, 1, 1], [], []>} : vector<24x128xf32>, vector<128x128xf32>, vector<24x128xf32> -> vector<24x128xf32>
    %181 = arith.addf %176, %180 : vector<24x128xf32>
    %182 = vector.extract_strided_slice %165 {offsets = [3, 0], sizes = [24, 128], strides = [1, 1]} : vector<28x128xf32> to vector<24x128xf32>
    %c3_112 = arith.constant 3 : index
    %c3_113 = arith.constant 3 : index
    %c0_114 = arith.constant 0 : index
    %c0_115 = arith.constant 0 : index
    %183 = vector.load %arg5[%c3_112, %c3_113, %c0_114, %c0_115] : memref<5x5x128x128xf32, #tpu.memory_space<vmem>>, vector<1x1x128x128xf32>
    %184 = vector.shape_cast %183 : vector<1x1x128x128xf32> to vector<128x128xf32>
    %cst_116 = arith.constant dense<0.000000e+00> : vector<24x128xf32>
    %185 = tpu.matmul %182, %184, %cst_116 {dimension_numbers = #tpu.dot_dimension_numbers<[1], [0], [0], [1], [0, 0, 1, 1], [], []>} : vector<24x128xf32>, vector<128x128xf32>, vector<24x128xf32> -> vector<24x128xf32>
    %186 = arith.addf %181, %185 : vector<24x128xf32>
    %187 = vector.extract_strided_slice %165 {offsets = [4, 0], sizes = [24, 128], strides = [1, 1]} : vector<28x128xf32> to vector<24x128xf32>
    %c3_117 = arith.constant 3 : index
    %c4_118 = arith.constant 4 : index
    %c0_119 = arith.constant 0 : index
    %c0_120 = arith.constant 0 : index
    %188 = vector.load %arg5[%c3_117, %c4_118, %c0_119, %c0_120] : memref<5x5x128x128xf32, #tpu.memory_space<vmem>>, vector<1x1x128x128xf32>
    %189 = vector.shape_cast %188 : vector<1x1x128x128xf32> to vector<128x128xf32>
    %cst_121 = arith.constant dense<0.000000e+00> : vector<24x128xf32>
    %190 = tpu.matmul %187, %189, %cst_121 {dimension_numbers = #tpu.dot_dimension_numbers<[1], [0], [0], [1], [0, 0, 1, 1], [], []>} : vector<24x128xf32>, vector<128x128xf32>, vector<24x128xf32> -> vector<24x128xf32>
    %191 = arith.addf %186, %190 : vector<24x128xf32>
    %192 = vector.extract_strided_slice %26 {offsets = [3, 0], sizes = [1, 128], strides = [1, 1]} : vector<5x128xf32> to vector<1x128xf32>
    %193 = vector.broadcast %192 : vector<1x128xf32> to vector<24x128xf32>
    %194 = arith.mulf %191, %193 : vector<24x128xf32>
    %195 = vector.extract_strided_slice %27 {offsets = [3, 0], sizes = [1, 128], strides = [1, 1]} : vector<5x128xf32> to vector<1x128xf32>
    %196 = vector.broadcast %195 : vector<1x128xf32> to vector<24x128xf32>
    %197 = arith.addf %194, %196 : vector<24x128xf32>
    %198 = math.tanh %197 : vector<24x128xf32>
    %199 = tpu.iota {dimensions = array<i32: 0>} : vector<24x1xi32>
    %c8_i32 = arith.constant 8 : i32
    %200 = arith.addi %3, %c8_i32 : i32
    %201 = vector.broadcast %200 : i32 to vector<24x1xi32>
    %202 = arith.addi %199, %201 : vector<24x1xi32>
    %c0_i32_122 = arith.constant 0 : i32
    %203 = vector.broadcast %c0_i32_122 : i32 to vector<24x1xi32>
    %204 = arith.cmpi sge, %202, %203 : vector<24x1xi32>
    %c16_i32_123 = arith.constant 16 : i32
    %205 = vector.broadcast %c16_i32_123 : i32 to vector<24x1xi32>
    %206 = arith.cmpi slt, %202, %205 : vector<24x1xi32>
    %207 = arith.andi %204, %206 : vector<24x1xi1>
    %cst_124 = arith.constant 0.000000e+00 : f32
    %208 = vector.shape_cast %207 : vector<24x1xi1> to vector<24x1xi1>
    %209 = vector.broadcast %208 : vector<24x1xi1> to vector<24x128xi1>
    %210 = vector.broadcast %cst_124 : f32 to vector<24x128xf32>
    %211 = arith.select %209, %198, %210 : vector<24x128xi1>, vector<24x128xf32>
    %cst_125 = arith.constant 0.000000e+00 : f32
    %212 = vector.broadcast %cst_125 : f32 to vector<20x128xf32>
    %213 = vector.extract_strided_slice %211 {offsets = [0, 0], sizes = [20, 128], strides = [1, 1]} : vector<24x128xf32> to vector<20x128xf32>
    %c4_126 = arith.constant 4 : index
    %c0_127 = arith.constant 0 : index
    %c0_128 = arith.constant 0 : index
    %c0_129 = arith.constant 0 : index
    %214 = vector.load %arg5[%c4_126, %c0_127, %c0_128, %c0_129] : memref<5x5x128x128xf32, #tpu.memory_space<vmem>>, vector<1x1x128x128xf32>
    %215 = vector.shape_cast %214 : vector<1x1x128x128xf32> to vector<128x128xf32>
    %cst_130 = arith.constant dense<0.000000e+00> : vector<20x128xf32>
    %216 = tpu.matmul %213, %215, %cst_130 {dimension_numbers = #tpu.dot_dimension_numbers<[1], [0], [0], [1], [0, 0, 1, 1], [], []>} : vector<20x128xf32>, vector<128x128xf32>, vector<20x128xf32> -> vector<20x128xf32>
    %217 = arith.addf %212, %216 : vector<20x128xf32>
    %218 = vector.extract_strided_slice %211 {offsets = [1, 0], sizes = [20, 128], strides = [1, 1]} : vector<24x128xf32> to vector<20x128xf32>
    %c4_131 = arith.constant 4 : index
    %c1_132 = arith.constant 1 : index
    %c0_133 = arith.constant 0 : index
    %c0_134 = arith.constant 0 : index
    %219 = vector.load %arg5[%c4_131, %c1_132, %c0_133, %c0_134] : memref<5x5x128x128xf32, #tpu.memory_space<vmem>>, vector<1x1x128x128xf32>
    %220 = vector.shape_cast %219 : vector<1x1x128x128xf32> to vector<128x128xf32>
    %cst_135 = arith.constant dense<0.000000e+00> : vector<20x128xf32>
    %221 = tpu.matmul %218, %220, %cst_135 {dimension_numbers = #tpu.dot_dimension_numbers<[1], [0], [0], [1], [0, 0, 1, 1], [], []>} : vector<20x128xf32>, vector<128x128xf32>, vector<20x128xf32> -> vector<20x128xf32>
    %222 = arith.addf %217, %221 : vector<20x128xf32>
    %223 = vector.extract_strided_slice %211 {offsets = [2, 0], sizes = [20, 128], strides = [1, 1]} : vector<24x128xf32> to vector<20x128xf32>
    %c4_136 = arith.constant 4 : index
    %c2_137 = arith.constant 2 : index
    %c0_138 = arith.constant 0 : index
    %c0_139 = arith.constant 0 : index
    %224 = vector.load %arg5[%c4_136, %c2_137, %c0_138, %c0_139] : memref<5x5x128x128xf32, #tpu.memory_space<vmem>>, vector<1x1x128x128xf32>
    %225 = vector.shape_cast %224 : vector<1x1x128x128xf32> to vector<128x128xf32>
    %cst_140 = arith.constant dense<0.000000e+00> : vector<20x128xf32>
    %226 = tpu.matmul %223, %225, %cst_140 {dimension_numbers = #tpu.dot_dimension_numbers<[1], [0], [0], [1], [0, 0, 1, 1], [], []>} : vector<20x128xf32>, vector<128x128xf32>, vector<20x128xf32> -> vector<20x128xf32>
    %227 = arith.addf %222, %226 : vector<20x128xf32>
    %228 = vector.extract_strided_slice %211 {offsets = [3, 0], sizes = [20, 128], strides = [1, 1]} : vector<24x128xf32> to vector<20x128xf32>
    %c4_141 = arith.constant 4 : index
    %c3_142 = arith.constant 3 : index
    %c0_143 = arith.constant 0 : index
    %c0_144 = arith.constant 0 : index
    %229 = vector.load %arg5[%c4_141, %c3_142, %c0_143, %c0_144] : memref<5x5x128x128xf32, #tpu.memory_space<vmem>>, vector<1x1x128x128xf32>
    %230 = vector.shape_cast %229 : vector<1x1x128x128xf32> to vector<128x128xf32>
    %cst_145 = arith.constant dense<0.000000e+00> : vector<20x128xf32>
    %231 = tpu.matmul %228, %230, %cst_145 {dimension_numbers = #tpu.dot_dimension_numbers<[1], [0], [0], [1], [0, 0, 1, 1], [], []>} : vector<20x128xf32>, vector<128x128xf32>, vector<20x128xf32> -> vector<20x128xf32>
    %232 = arith.addf %227, %231 : vector<20x128xf32>
    %233 = vector.extract_strided_slice %211 {offsets = [4, 0], sizes = [20, 128], strides = [1, 1]} : vector<24x128xf32> to vector<20x128xf32>
    %c4_146 = arith.constant 4 : index
    %c4_147 = arith.constant 4 : index
    %c0_148 = arith.constant 0 : index
    %c0_149 = arith.constant 0 : index
    %234 = vector.load %arg5[%c4_146, %c4_147, %c0_148, %c0_149] : memref<5x5x128x128xf32, #tpu.memory_space<vmem>>, vector<1x1x128x128xf32>
    %235 = vector.shape_cast %234 : vector<1x1x128x128xf32> to vector<128x128xf32>
    %cst_150 = arith.constant dense<0.000000e+00> : vector<20x128xf32>
    %236 = tpu.matmul %233, %235, %cst_150 {dimension_numbers = #tpu.dot_dimension_numbers<[1], [0], [0], [1], [0, 0, 1, 1], [], []>} : vector<20x128xf32>, vector<128x128xf32>, vector<20x128xf32> -> vector<20x128xf32>
    %237 = arith.addf %232, %236 : vector<20x128xf32>
    %238 = vector.extract_strided_slice %26 {offsets = [4, 0], sizes = [1, 128], strides = [1, 1]} : vector<5x128xf32> to vector<1x128xf32>
    %239 = vector.broadcast %238 : vector<1x128xf32> to vector<20x128xf32>
    %240 = arith.mulf %237, %239 : vector<20x128xf32>
    %241 = vector.extract_strided_slice %27 {offsets = [4, 0], sizes = [1, 128], strides = [1, 1]} : vector<5x128xf32> to vector<1x128xf32>
    %242 = vector.broadcast %241 : vector<1x128xf32> to vector<20x128xf32>
    %243 = arith.addf %240, %242 : vector<20x128xf32>
    %244 = vector.extract_strided_slice %243 {offsets = [0, 0], sizes = [16, 128], strides = [1, 1]} : vector<20x128xf32> to vector<16x128xf32>
    %245 = arith.addf %244, %25 : vector<16x128xf32>
    %c0_151 = arith.constant 0 : index
    %c0_152 = arith.constant 0 : index
    %c0_153 = arith.constant 0 : index
    %246 = vector.load %arg8[%c0_151, %c0_152, %c0_153] : memref<1x16x128xf32, #tpu.memory_space<vmem>>, vector<1x16x128xf32>
    %247 = vector.shape_cast %246 : vector<1x16x128xf32> to vector<16x128xf32>
    %248 = vector.shape_cast %245 : vector<16x128xf32> to vector<1x16x128xf32>
    tpu.vector_store %arg8[%c0_151, %c0_152, %c0_153], %248 {strides = array<i32>} : memref<1x16x128xf32, #tpu.memory_space<vmem>>, vector<1x16x128xf32>,
    return
  }
  func.func @transform_0(%arg0: i32, %arg1: i32) -> (i32, i32, i32) {
    %c0_i32 = arith.constant 0 : i32
    %c0_i32_0 = arith.constant 0 : i32
    %c0_i32_1 = arith.constant 0 : i32
    return %arg0, %c0_i32, %c0_i32_0 : i32, i32, i32
  }
  func.func @transform_1(%arg0: i32, %arg1: i32) -> (i32, i32) {
    %c0_i32 = arith.constant 0 : i32
    %c0_i32_0 = arith.constant 0 : i32
    %c0_i32_1 = arith.constant 0 : i32
    return %c0_i32, %c0_i32_0 : i32, i32
  }
  func.func @transform_2(%arg0: i32, %arg1: i32) -> (i32, i32) {
    %c0_i32 = arith.constant 0 : i32
    %c0_i32_0 = arith.constant 0 : i32
    %c0_i32_1 = arith.constant 0 : i32
    return %c0_i32, %c0_i32_0 : i32, i32
  }
  func.func @transform_3(%arg0: i32, %arg1: i32) -> (i32, i32, i32, i32) {
    %c0_i32 = arith.constant 0 : i32
    %c0_i32_0 = arith.constant 0 : i32
    %c0_i32_1 = arith.constant 0 : i32
    %c0_i32_2 = arith.constant 0 : i32
    %c0_i32_3 = arith.constant 0 : i32
    return %c0_i32, %c0_i32_0, %c0_i32_1, %c0_i32_2 : i32, i32, i32, i32
  }
  func.func @transform_4(%arg0: i32, %arg1: i32) -> (i32, i32) {
    %c0_i32 = arith.constant 0 : i32
    %c0_i32_0 = arith.constant 0 : i32
    %c0_i32_1 = arith.constant 0 : i32
    return %c0_i32, %c0_i32_0 : i32, i32
  }
  func.func @transform_5(%arg0: i32, %arg1: i32) -> (i32, i32) {
    %c0_i32 = arith.constant 0 : i32
    %c0_i32_0 = arith.constant 0 : i32
    %c0_i32_1 = arith.constant 0 : i32
    return %c0_i32, %c0_i32_0 : i32, i32
  }
  func.func @transform_6(%arg0: i32, %arg1: i32) -> (i32, i32, i32) {
    %c0_i32 = arith.constant 0 : i32
    %c0_i32_0 = arith.constant 0 : i32
    return %arg0, %arg1, %c0_i32 : i32, i32, i32
  }
}

</mosaic_0001>

<llo_original>
// kernel: _lambda_.1
$region0: #{_lambda_.1}
  #allocation0 [shape = 'u32[]', space=smem, size = 0x4, offset = 0x4, fixed_abs, tag = 'smem constant byte address 0x4 - core index']
  #allocation1 [shape = 'u32[144,128]{1,0:T(1,128)}', space=vmem, size = 0x12000, scoped, tag = 'internal scratch']
  %s0 = inlined_call_operand.vmem [shape: f32[2,40,128], index: 0, kind: input, shape index: {}]
  %s1 = inlined_call_operand.hbm [shape: f32[128,128], index: 1, kind: input, shape index: {}]
  %s2 = inlined_call_operand.hbm [shape: f32[1,128], index: 2, kind: input, shape index: {}]
  %s3 = inlined_call_operand.hbm [shape: f32[5,5,128,128], index: 3, kind: input, shape index: {}]
  %s4 = inlined_call_operand.hbm [shape: f32[5,128], index: 4, kind: input, shape index: {}]
  %s5 = inlined_call_operand.hbm [shape: f32[5,128], index: 5, kind: input, shape index: {}]
  %s6 = inlined_call_operand.vmem [shape: f32[2,16,128], index: 6, kind: output, shape index: {}]
  %s7 = sld [smem:[#allocation0]]
  $region77: #{_lambda_.1} parent=0
    _
  %s9 = ssub.s32 1, %s7
  %s10 = scalar_select 0, %s9, %s7
  $region1: #{_lambda_.1} parent=0
    #allocation2 [shape = 'u8[65536]{0}', space=vmem, size = 0x10000, scoped, tag = 'input window, operand 1, single buffered']
    #allocation3 [shape = 's32[2]{0}', space=sflag, size = 0x8, scoped, tag = 'scoped memory for _lambda_.1']
    #allocation4 [shape = 'u8[512]{0}', space=vmem, size = 0x400, scoped, tag = 'input window, operand 2, single buffered']
    #allocation5 [shape = 's32[1]{0}', space=sflag, size = 0x4, scoped, tag = 'scoped memory for _lambda_.1']
    #allocation6 [shape = 'u8[1638400]{0}', space=vmem, size = 0x190000, scoped, tag = 'input window, operand 3, single buffered']
    #allocation7 [shape = 'u8[4096]{0}', space=vmem, size = 0x1000, scoped, tag = 'input window, operand 4, single buffered']
    #allocation8 [shape = 's32[1]{0}', space=sflag, size = 0x4, scoped, tag = 'scoped memory for _lambda_.1']
    #allocation9 [shape = 'u8[4096]{0}', space=vmem, size = 0x1000, scoped, tag = 'input window, operand 5, single buffered']
    %11 = vsyncpa [#allocation3], 0
    %12 = vsyncpa [#allocation5], 0
    %13 = vsyncpa [#allocation8], 0
    loop: start=0, step=1, limit=4
    $region2: #{_lambda_.1} parent=1 // loop_pre_header
      _
    $region3: #{_lambda_.1} parent=1 // loop_header
      %s15 = sphi 0, %s19
      %p16 = scmp.ge.s32.totalorder %s15, 4
      %s22 = sphi 0, %s34
      %s23 = sphi 0, %s30
      %s24 = sphi 0, %s22
      %s25 = sphi 0, %s23
      %s26 = sphi 0, %s24
      %s27 = sphi 0, %s25
      %s37 = sphi 0, %s39
      %s40 = sphi 0, %s37
      %s41 = sphi 0, %s40
      %s57 = sphi 0, %s41
      %s61 = sphi 0, %s61
      %s63 = sphi 0, %s61
      %s64 = sphi 0, %s63
      %s78 = sphi 0, %s64
      %s82 = sphi 0, %s82
      %s84 = sphi 0, %s82
      %s85 = sphi 0, %s84
      %s99 = sphi 0, %s85
      %s103 = sphi 0, %s103
      %s105 = sphi 0, %s103
      %s106 = sphi 0, %s105
      %s120 = sphi 0, %s106
      %s124 = sphi 0, %s124
      %s126 = sphi 0, %s124
      %s127 = sphi 0, %s126
      %s141 = sphi 0, %s127
      %s145 = sphi 0, %s145
      %s147 = sphi 0, %s145
      %s148 = sphi 0, %s147
      %s162 = sphi 0, %s148
      %s170 = sphi 0, %s172
      %s173 = sphi 0, %s170
      %s174 = sphi 0, %s173
      %s190 = sphi 0, %s174
    $region4: #{_lambda_.1} parent=1 // loop_header_branch
      %18 = sbr.rel (%p16) target = $region8
    $region5: #{_lambda_.1} parent=1 // loop_body
      %s20 = ssub.s32 %s15, 1
      %s21 = ssub.s32 %s15, 2
      %s28 = sadd.s32 1, %s23
      %p29 = scmp.ge.s32.totalorder %s28, 1
      %s30 = scalar_select %p29, 0, %s28
      %s31 = sadd.s32 1, %s22
      %s32 = scalar_select %p29, %s31, %s22
      %p33 = scmp.ge.s32.totalorder %s32, 2
      %s34 = scalar_select %p33, 0, %s32
      %s35 = ssub.s32 %s22, %s34
      %p36 = scmp.eq.s32.totalorder %s35, 0
      %s38 = sadd.s32 %s37, 1
      %s39 = scalar_select %p36, %s37, %s38
      %p42 = pneg %p36
      %p43 = scmp.eq.s32.totalorder %s15, 1
      %p44 = por %p42, %p43
      %p45 = scmp.ne.s32.totalorder %s37, %s40
      %p46 = scmp.eq.s32.totalorder %s15, 0
      %p47 = por %p45, %p46
      %p48 = scmp.ne.s32.totalorder %s37, %s40
      %p49 = scmp.eq.s32.totalorder %s20, 1
      %p50 = por %p48, %p49
      %p51 = scmp.ne.s32.totalorder %s40, %s41
      %p52 = scmp.eq.s32.totalorder %s20, 0
      %p53 = por %p51, %p52
      %p54 = scmp.ne.s32.totalorder %s40, %s41
      %p55 = scmp.eq.s32.totalorder %s21, 1
      %p56 = por %p54, %p55
      %p58 = scmp.ne.s32.totalorder %s41, %s57
      %p59 = scmp.eq.s32.totalorder %s21, 0
      %p60 = por %p58, %p59
      %s62 = sadd.s32 %s61, 1
      %p65 = scmp.eq.s32.totalorder %s15, 1
      %p66 = scmp.ne.s32.totalorder %s61, %s63
      %p67 = scmp.eq.s32.totalorder %s15, 0
      %p68 = por %p66, %p67
      %p69 = scmp.ne.s32.totalorder %s61, %s63
      %p70 = scmp.eq.s32.totalorder %s20, 1
      %p71 = por %p69, %p70
      %p72 = scmp.ne.s32.totalorder %s63, %s64
      %p73 = scmp.eq.s32.totalorder %s20, 0
      %p74 = por %p72, %p73
      %p75 = scmp.ne.s32.totalorder %s63, %s64
      %p76 = scmp.eq.s32.totalorder %s21, 1
      %p77 = por %p75, %p76
      %p79 = scmp.ne.s32.totalorder %s64, %s78
      %p80 = scmp.eq.s32.totalorder %s21, 0
      %p81 = por %p79, %p80
      %s83 = sadd.s32 %s82, 1
      %p86 = scmp.eq.s32.totalorder %s15, 1
      %p87 = scmp.ne.s32.totalorder %s82, %s84
      %p88 = scmp.eq.s32.totalorder %s15, 0
      %p89 = por %p87, %p88
      %p90 = scmp.ne.s32.totalorder %s82, %s84
      %p91 = scmp.eq.s32.totalorder %s20, 1
      %p92 = por %p90, %p91
      %p93 = scmp.ne.s32.totalorder %s84, %s85
      %p94 = scmp.eq.s32.totalorder %s20, 0
      %p95 = por %p93, %p94
      %p96 = scmp.ne.s32.totalorder %s84, %s85
      %p97 = scmp.eq.s32.totalorder %s21, 1
      %p98 = por %p96, %p97
      %p100 = scmp.ne.s32.totalorder %s85, %s99
      %p101 = scmp.eq.s32.totalorder %s21, 0
      %p102 = por %p100, %p101
      %s104 = sadd.s32 %s103, 1
      %p107 = scmp.eq.s32.totalorder %s15, 1
      %p108 = scmp.ne.s32.totalorder %s103, %s105
      %p109 = scmp.eq.s32.totalorder %s15, 0
      %p110 = por %p108, %p109
      %p111 = scmp.ne.s32.totalorder %s103, %s105
      %p112 = scmp.eq.s32.totalorder %s20, 1
      %p113 = por %p111, %p112
      %p114 = scmp.ne.s32.totalorder %s105, %s106
      %p115 = scmp.eq.s32.totalorder %s20, 0
      %p116 = por %p114, %p115
      %p117 = scmp.ne.s32.totalorder %s105, %s106
      %p118 = scmp.eq.s32.totalorder %s21, 1
      %p119 = por %p117, %p118
      %p121 = scmp.ne.s32.totalorder %s106, %s120
      %p122 = scmp.eq.s32.totalorder %s21, 0
      %p123 = por %p121, %p122
      %s125 = sadd.s32 %s124, 1
      %p128 = scmp.eq.s32.totalorder %s15, 1
      %p129 = scmp.ne.s32.totalorder %s124, %s126
      %p130 = scmp.eq.s32.totalorder %s15, 0
      %p131 = por %p129, %p130
      %p132 = scmp.ne.s32.totalorder %s124, %s126
      %p133 = scmp.eq.s32.totalorder %s20, 1
      %p134 = por %p132, %p133
      %p135 = scmp.ne.s32.totalorder %s126, %s127
      %p136 = scmp.eq.s32.totalorder %s20, 0
      %p137 = por %p135, %p136
      %p138 = scmp.ne.s32.totalorder %s126, %s127
      %p139 = scmp.eq.s32.totalorder %s21, 1
      %p140 = por %p138, %p139
      %p142 = scmp.ne.s32.totalorder %s127, %s141
      %p143 = scmp.eq.s32.totalorder %s21, 0
      %p144 = por %p142, %p143
      %s146 = sadd.s32 %s145, 1
      %p149 = scmp.eq.s32.totalorder %s15, 1
      %p150 = scmp.ne.s32.totalorder %s145, %s147
      %p151 = scmp.eq.s32.totalorder %s15, 0
      %p152 = por %p150, %p151
      %p153 = scmp.ne.s32.totalorder %s145, %s147
      %p154 = scmp.eq.s32.totalorder %s20, 1
      %p155 = por %p153, %p154
      %p156 = scmp.ne.s32.totalorder %s147, %s148
      %p157 = scmp.eq.s32.totalorder %s20, 0
      %p158 = por %p156, %p157
      %p159 = scmp.ne.s32.totalorder %s147, %s148
      %p160 = scmp.eq.s32.totalorder %s21, 1
      %p161 = por %p159, %p160
      %p163 = scmp.ne.s32.totalorder %s148, %s162
      %p164 = scmp.eq.s32.totalorder %s21, 0
      %p165 = por %p163, %p164
      %s166 = ssub.s32 %s22, %s34
      %s167 = ssub.s32 %s23, %s30
      %s168 = sor.u32 %s166, %s167
      %p169 = scmp.eq.s32.totalorder %s168, 0
      %s171 = sadd.s32 %s170, 1
      %s172 = scalar_select %p169, %s170, %s171
      %p175 = pneg %p169
      %p176 = scmp.eq.s32.totalorder %s15, 1
      %p177 = por %p175, %p176
      %p178 = scmp.ne.s32.totalorder %s170, %s173
      %p179 = scmp.eq.s32.totalorder %s15, 0
      %p180 = por %p178, %p179
      %p181 = scmp.ne.s32.totalorder %s170, %s173
      %p182 = scmp.eq.s32.totalorder %s20, 1
      %p183 = por %p181, %p182
      %p184 = scmp.ne.s32.totalorder %s173, %s174
      %p185 = scmp.eq.s32.totalorder %s20, 0
      %p186 = por %p184, %p185
      %p187 = scmp.ne.s32.totalorder %s173, %s174
      %p188 = scmp.eq.s32.totalorder %s21, 1
      %p189 = por %p187, %p188
      %p191 = scmp.ne.s32.totalorder %s174, %s190
      %p192 = scmp.eq.s32.totalorder %s21, 0
      %p193 = por %p191, %p192
      %p194 = scmp.le.s32.totalorder 1, %s15
      %p195 = scmp.lt.s32.totalorder %s15, 3
      %p196 = pnand %p194, %p195
      %p197 = pneg %p196
      // Predicated region
      $region9: #{_lambda_.1} parent=5 // pred_check
        _
      $region10: #{_lambda_.1} parent=5 // pred_check_branch
        %199 = sbr.rel (%p196) target = $region12
      $region11: #{_lambda_.1} parent=5 // pred_region
        %s200 = ssub.s32 %s15, 1
        // Predicated region
        $region13: #{_lambda_.1} parent=11 // pred_check
          %p201 = pneg %p74
        $region14: #{_lambda_.1} parent=11 // pred_check_branch
          %203 = sbr.rel (%p201) target = $region16
        $region15: #{_lambda_.1} parent=11 // pred_region
          %s205 = ssub.s32 2048, 2048
          %206 = vsyncadd [#allocation3], %s205
          %s207 = sshll.u32 [#allocation2], 4
          %s208 = int_to_ptr.vmem [resolvable:$true] %s207
          %213 = dma.hbm_to_vmem [thread:$0]  %s1, 2048, %s208, [#allocation3], 128, 128, 8
        $region16: #{_lambda_.1} parent=11 // pred_fallthru
          _
        // Predicated region
        $region17: #{_lambda_.1} parent=11 // pred_check
          %p214 = pneg %p95
        $region18: #{_lambda_.1} parent=11 // pred_check_branch
          %216 = sbr.rel (%p214) target = $region20
        $region19: #{_lambda_.1} parent=11 // pred_region
          %s218 = ssub.s32 16, 16
          %219 = vsyncadd [#allocation5], %s218
          %s221 = sshll.u32 [#allocation4], 4
          %s222 = int_to_ptr.vmem [resolvable:$true] %s221
          %224 = dma.hbm_to_vmem [thread:$0]  %s2, 16, %s222, [#allocation5]
        $region20: #{_lambda_.1} parent=11 // pred_fallthru
          _
        // Predicated region
        $region21: #{_lambda_.1} parent=11 // pred_check
          %p225 = pneg %p116
        $region22: #{_lambda_.1} parent=11 // pred_check_branch
          %227 = sbr.rel (%p225) target = $region24
        $region23: #{_lambda_.1} parent=11 // pred_region
          %s229 = ssub.s32 51200, 51200
          %230 = vsyncadd [#allocation5], %s229
          %s231 = sshll.u32 [#allocation6], 4
          %s232 = int_to_ptr.vmem [resolvable:$true] %s231
          %237 = dma.hbm_to_vmem [thread:$0]  %s3, 51200, %s232, [#allocation5], 128, 128, 8
        $region24: #{_lambda_.1} parent=11 // pred_fallthru
          _
        // Predicated region
        $region25: #{_lambda_.1} parent=11 // pred_check
          %p238 = pneg %p137
        $region26: #{_lambda_.1} parent=11 // pred_check_branch
          %240 = sbr.rel (%p238) target = $region28
        $region27: #{_lambda_.1} parent=11 // pred_region
          %s242 = ssub.s32 128, 128
          %243 = vsyncadd [#allocation8], %s242
          %s245 = sshll.u32 [#allocation7], 4
          %s246 = int_to_ptr.vmem [resolvable:$true] %s245
          %248 = dma.hbm_to_vmem [thread:$0]  %s4, 128, %s246, [#allocation8]
        $region28: #{_lambda_.1} parent=11 // pred_fallthru
          _
        // Predicated region
        $region29: #{_lambda_.1} parent=11 // pred_check
          %p249 = pneg %p158
        $region30: #{_lambda_.1} parent=11 // pred_check_branch
          %251 = sbr.rel (%p249) target = $region32
        $region31: #{_lambda_.1} parent=11 // pred_region
          %s253 = ssub.s32 128, 128
          %254 = vsyncadd [#allocation8], %s253
          %s256 = sshll.u32 [#allocation9], 4
          %s257 = int_to_ptr.vmem [resolvable:$true] %s256
          %259 = dma.hbm_to_vmem [thread:$0]  %s5, 128, %s257, [#allocation8]
        $region32: #{_lambda_.1} parent=11 // pred_fallthru
          _
      $region12: #{_lambda_.1} parent=5 // pred_fallthru
        _
      %p260 = scmp.lt.s32.totalorder %s15, 2
      // Predicated region
      $region33: #{_lambda_.1} parent=5 // pred_check
        %p261 = pneg %p260
      $region34: #{_lambda_.1} parent=5 // pred_check_branch
        %263 = sbr.rel (%p261) target = $region36
      $region35: #{_lambda_.1} parent=5 // pred_region
        // Predicated region
        $region37: #{_lambda_.1} parent=35 // pred_check
          %p264 = pneg %p47
        $region38: #{_lambda_.1} parent=35 // pred_check_branch
          %266 = sbr.rel (%p264) target = $region40
        $region39: #{_lambda_.1} parent=35 // pred_region
          %p267 = scmp.lt.s32.totalorder %s22, 1
          %s268 = scalar_select %p267, %s22, 1
          %s269 = smul.addr %s268, 5
          %s270 = smul.addr %s269, 8
          %s271 = scalar_lea.vmem %s0, %s270
        $region40: #{_lambda_.1} parent=35 // pred_fallthru
          _
      $region36: #{_lambda_.1} parent=5 // pred_fallthru
        _
      %p272 = scmp.le.s32.totalorder 1, %s15
      %p273 = scmp.lt.s32.totalorder %s15, 3
      %p274 = pnand %p272, %p273
      %p275 = pneg %p274
      // Predicated region
      $region41: #{_lambda_.1} parent=5 // pred_check
        _
      $region42: #{_lambda_.1} parent=5 // pred_check_branch
        %277 = sbr.rel (%p274) target = $region44
      $region43: #{_lambda_.1} parent=5 // pred_region
        %s278 = ssub.s32 %s15, 1
        // Predicated region
        $region45: #{_lambda_.1} parent=43 // pred_check
          %p279 = pneg %p74
        $region46: #{_lambda_.1} parent=43 // pred_check_branch
          %281 = sbr.rel (%p279) target = $region48
        $region47: #{_lambda_.1} parent=43 // pred_region
          %282 = dma.done [#allocation3], 2048
        $region48: #{_lambda_.1} parent=43 // pred_fallthru
          _
        // Predicated region
        $region49: #{_lambda_.1} parent=43 // pred_check
          %p283 = pneg %p95
        $region50: #{_lambda_.1} parent=43 // pred_check_branch
          %285 = sbr.rel (%p283) target = $region52
        $region51: #{_lambda_.1} parent=43 // pred_region
          %286 = dma.done [#allocation5], 16
        $region52: #{_lambda_.1} parent=43 // pred_fallthru
          _
        // Predicated region
        $region53: #{_lambda_.1} parent=43 // pred_check
          %p287 = pneg %p116
        $region54: #{_lambda_.1} parent=43 // pred_check_branch
          %289 = sbr.rel (%p287) target = $region56
        $region55: #{_lambda_.1} parent=43 // pred_region
          %290 = dma.done [#allocation5], 51200
        $region56: #{_lambda_.1} parent=43 // pred_fallthru
          _
        // Predicated region
        $region57: #{_lambda_.1} parent=43 // pred_check
          %p291 = pneg %p137
        $region58: #{_lambda_.1} parent=43 // pred_check_branch
          %293 = sbr.rel (%p291) target = $region60
        $region59: #{_lambda_.1} parent=43 // pred_region
          %294 = dma.done [#allocation8], 128
        $region60: #{_lambda_.1} parent=43 // pred_fallthru
          _
        // Predicated region
        $region61: #{_lambda_.1} parent=43 // pred_check
          %p295 = pneg %p158
        $region62: #{_lambda_.1} parent=43 // pred_check_branch
          %297 = sbr.rel (%p295) target = $region64
        $region63: #{_lambda_.1} parent=43 // pred_region
          %298 = dma.done [#allocation8], 128
        $region64: #{_lambda_.1} parent=43 // pred_fallthru
          _
        %p299 = scmp.lt.s32.totalorder %s24, 1
        %s300 = scalar_select %p299, %s24, 1
        %s301 = smul.addr %s300, 5
        %s302 = smul.addr %s301, 8
        %s303 = scalar_lea.vmem %s0, %s302
        %p304 = pneg %p53
        %p305 = pneg %p50
        %p306 = pneg %p74
        %p307 = pneg %p71
        %p308 = pneg %p95
        %p309 = pneg %p92
        %p310 = pneg %p116
        %p311 = pneg %p113
        %p312 = pneg %p137
        %p313 = pneg %p134
        %p314 = pneg %p158
        %p315 = pneg %p155
        %p316 = pneg %p186
        %p317 = pneg %p183
        %s318 = smul.u32 2, %s25
        %p319 = scmp.lt.s32.totalorder %s24, 1
        %s320 = scalar_select %p319, %s24, 1
        %p321 = scmp.lt.s32.totalorder %s318, 1
        %s322 = scalar_select %p321, %s318, 1
        %s323 = smul.addr %s320, 2
        %s324 = sadd.s32 %s322, %s323
        %s325 = smul.addr %s324, 8
        %s326 = scalar_lea.vmem %s6, %s325
        %p327 = scmp.lt.s32.totalorder %s24, 1
        %s328 = scalar_select %p327, %s24, 1
        %s329 = smul.addr %s328, 5
        %s330 = smul.addr %s329, 8
        %s331 = scalar_lea.vmem %s0, %s330
        %s332 = smul.u32 2, %s25
        %p333 = scmp.lt.s32.totalorder %s24, 1
        %s334 = scalar_select %p333, %s24, 1
        %p335 = scmp.lt.s32.totalorder %s332, 1
        %s336 = scalar_select %p335, %s332, 1
        %s337 = smul.addr %s334, 2
        %s338 = sadd.s32 %s336, %s337
        %s339 = smul.addr %s338, 8
        %s340 = scalar_lea.vmem %s6, %s339
        %s341 = smul.u32 2, %s25
        %s342 = smul.u32 %s25, 16
        %s343 = ssub.s32 %s342, 10
        %s344 = scalar_lea.vmem %s331, %s342
        %v345 = vld [vmem:[%s344] sm:$0xff]
        %v346 = vld [vmem:[%s344 + $0x8] sm:$0xff]
        %v347 = vld [vmem:[%s344 + $0x10] sm:$0xff]
        %v348 = vld [vmem:[%s344 + $0x18] sm:$0xff]
        %v349 = vld [vmem:[%s344 + $0x20] sm:$0xff]
        %v350 = vld [vmem:[#allocation2] sm:$0xff]
        %v351 = vld [vmem:[#allocation2 + $0x8] sm:$0xff]
        %v352 = vld [vmem:[#allocation2 + $0x10] sm:$0xff]
        %v353 = vld [vmem:[#allocation2 + $0x18] sm:$0xff]
        %v354 = vld [vmem:[#allocation2 + $0x20] sm:$0xff]
        %v355 = vld [vmem:[#allocation2 + $0x28] sm:$0xff]
        %v356 = vld [vmem:[#allocation2 + $0x30] sm:$0xff]
        %v357 = vld [vmem:[#allocation2 + $0x38] sm:$0xff]
        %v358 = vld [vmem:[#allocation2 + $0x40] sm:$0xff]
        %v359 = vld [vmem:[#allocation2 + $0x48] sm:$0xff]
        %v360 = vld [vmem:[#allocation2 + $0x50] sm:$0xff]
        %v361 = vld [vmem:[#allocation2 + $0x58] sm:$0xff]
        %v362 = vld [vmem:[#allocation2 + $0x60] sm:$0xff]
        %v363 = vld [vmem:[#allocation2 + $0x68] sm:$0xff]
        %v364 = vld [vmem:[#allocation2 + $0x70] sm:$0xff]
        %v365 = vld [vmem:[#allocation2 + $0x78] sm:$0xff]
        %v366 = vld [vmem:[#allocation4] sm:$0x1]
        %v368 = vlaneseq
        %v369 = vshrl.u32 %v368, 7
        %v370 = vsub.s32 0, %v369
        %v371 = vrot.slane %v366, %v370
        %373 = vmatprep.subr.mxu0 0.0
        %374 = vmatpush1.msra.mxu0 %v350
        %375 = vmatprep.subr.mxu0 0.0
        %376 = vmatpush1.msra.mxu0 %v351
        %377 = vmatprep.subr.mxu0 0.0
        %378 = vmatpush1.msra.mxu0 %v352
        %379 = vmatprep.subr.mxu0 0.0
        %380 = vmatpush1.msra.mxu0 %v353
        %381 = vmatprep.subr.mxu0 0.0
        %382 = vmatpush1.msra.mxu0 %v354
        %383 = vmatprep.subr.mxu0 0.0
        %384 = vmatpush1.msra.mxu0 %v355
        %385 = vmatprep.subr.mxu0 0.0
        %386 = vmatpush1.msra.mxu0 %v356
        %387 = vmatprep.subr.mxu0 0.0
        %388 = vmatpush1.msra.mxu0 %v357
        %389 = vmatprep.subr.mxu0 0.0
        %390 = vmatpush1.msra.mxu0 %v358
        %391 = vmatprep.subr.mxu0 0.0
        %392 = vmatpush1.msra.mxu0 %v359
        %393 = vmatprep.subr.mxu0 0.0
        %394 = vmatpush1.msra.mxu0 %v360
        %395 = vmatprep.subr.mxu0 0.0
        %396 = vmatpush1.msra.mxu0 %v361
        %397 = vmatprep.subr.mxu0 0.0
        %398 = vmatpush1.msra.mxu0 %v362
        %399 = vmatprep.subr.mxu0 0.0
        %400 = vmatpush1.msra.mxu0 %v363
        %401 = vmatprep.subr.mxu0 0.0
        %402 = vmatpush1.msra.mxu0 %v364
        %403 = vmatprep.subr.mxu0 0.0
        %404 = vmatpush1.msra.mxu0 %v365
        %405 = vmatprep.subr.mxu0 0.0
        %406 = vmatpush1.msra.mxu0 0.0
        %407 = vmatprep.subr.mxu0 0.0
        %408 = vmatpush1.msra.mxu0 0.0
        %409 = vmatprep.subr.mxu0 0.0
        %410 = vmatpush1.msra.mxu0 0.0
        %411 = vmatprep.subr.mxu0 0.0
        %412 = vmatpush1.msra.mxu0 0.0
        %413 = vmatprep.subr.mxu0 0.0
        %414 = vmatpush1.msra.mxu0 0.0
        %415 = vmatprep.subr.mxu0 0.0
        %416 = vmatpush1.msra.mxu0 0.0
        %417 = vmatprep.subr.mxu0 0.0
        %418 = vmatpush1.msra.mxu0 0.0
        %419 = vmatprep.subr.mxu0 0.0
        %420 = vmatpush1.msra.mxu0 0.0
        %421 = vmatprep.subr.mxu0 0.0
        %422 = vmatpush1.msra.mxu0 0.0
        %423 = vmatprep.subr.mxu0 0.0
        %424 = vmatpush1.msra.mxu0 0.0
        %425 = vmatprep.subr.mxu0 0.0
        %426 = vmatpush1.msra.mxu0 0.0
        %427 = vmatprep.subr.mxu0 0.0
        %428 = vmatpush1.msra.mxu0 0.0
        %429 = vmatprep.subr.mxu0 0.0
        %430 = vmatpush1.msra.mxu0 0.0
        %431 = vmatprep.subr.mxu0 0.0
        %432 = vmatpush1.msra.mxu0 0.0
        %433 = vmatprep.subr.mxu0 0.0
        %434 = vmatpush1.msra.mxu0 0.0
        %435 = vmatprep.subr.mxu0 0.0
        %436 = vmatpush1.msra.mxu0 0.0
        %437 = vmatprep.mubr.f32.mxu0 0.0
        %438 = vmatmul.mubr.f32.gmra.mrb[0].mxu0 %v345
        %v439 = vpop.f32.mrb[0].mxu0
        %v440 = vadd.f32 %v371, %v439
        %v441 = vpop.f32.mrb[0].mxu0
        %442 = vmatprep.mubr.f32.mxu0 0.0
        %443 = vmatmul.mubr.f32.gmra.mrb[0].mxu0 %v346
        %v444 = vpop.f32.mrb[0].mxu0
        %v445 = vadd.f32 %v371, %v444
        %v446 = vpop.f32.mrb[0].mxu0
        %447 = vmatprep.mubr.f32.mxu0 0.0
        %448 = vmatmul.mubr.f32.gmra.mrb[0].mxu0 %v347
        %v449 = vpop.f32.mrb[0].mxu0
        %v450 = vadd.f32 %v371, %v449
        %v451 = vpop.f32.mrb[0].mxu0
        %452 = vmatprep.mubr.f32.mxu0 0.0
        %453 = vmatmul.mubr.f32.gmra.mrb[0].mxu0 %v348
        %v454 = vpop.f32.mrb[0].mxu0
        %v455 = vadd.f32 %v371, %v454
        %v456 = vpop.f32.mrb[0].mxu0
        %457 = vmatprep.mubr.f32.mxu0 0.0
        %458 = vmatmul.mubr.f32.gmra.mrb[0].mxu0 %v349
        %v459 = vpop.f32.mrb[0].mxu0
        %v460 = vadd.f32 %v371, %v459
        %v461 = vpop.f32.mrb[0].mxu0
        %462 = vdwg.mxu0
        %v463 = vlaneseq
        %v464 = vshrl.u32 %v463, 7
        %v465 = vadd.s32 %v464, 8
        %v466 = vadd.s32 %v464, 16
        %v467 = vadd.s32 %v464, 24
        %v468 = vadd.s32 %v464, 32
        %v469 = vstv %s343
        %v470 = vadd.s32 %v464, %v469
        %v471 = vadd.s32 %v465, %v469
        %v472 = vadd.s32 %v466, %v469
        %v473 = vadd.s32 %v467, %v469
        %v474 = vadd.s32 %v468, %v469
        %vm475 = vcmp.ge.s32.totalorder %v470, 0
        %vm476 = vcmp.ge.s32.totalorder %v471, 0
        %vm477 = vcmp.ge.s32.totalorder %v472, 0
        %vm478 = vcmp.ge.s32.totalorder %v473, 0
        %vm479 = vcmp.ge.s32.totalorder %v474, 0
        %vm480 = vcmp.lt.s32.totalorder %v470, 16
        %vm481 = vcmp.lt.s32.totalorder %v471, 16
        %vm482 = vcmp.lt.s32.totalorder %v472, 16
        %vm483 = vcmp.lt.s32.totalorder %v473, 16
        %vm484 = vcmp.lt.s32.totalorder %v474, 16
        %vm485 = vmand %vm475, %vm480
        %vm486 = vmand %vm476, %vm481
        %vm487 = vmand %vm477, %vm482
        %vm488 = vmand %vm478, %vm483
        %vm489 = vmand %vm479, %vm484
        %v490 = vsel %vm485, 1, 0
        %v491 = vsel %vm486, 1, 0
        %v492 = vsel %vm487, 1, 0
        %v493 = vsel %vm488, 1, 0
        %v494 = vsel %vm489, 1, 0
        %vm495 = vcmp.eq.s32.totalorder %v490, 1
        %vm496 = vcmp.eq.s32.totalorder %v491, 1
        %vm497 = vcmp.eq.s32.totalorder %v492, 1
        %vm498 = vcmp.eq.s32.totalorder %v493, 1
        %vm499 = vcmp.eq.s32.totalorder %v494, 1
        %v500 = vsel %vm495, %v440, 0.0
        %v501 = vsel %vm496, %v445, 0.0
        %v502 = vsel %vm497, %v450, 0.0
        %v503 = vsel %vm498, %v455, 0.0
        %v504 = vsel %vm499, %v460, 0.0
        %v505 = vld [vmem:[#allocation7] sm:$0x1f]
        %v506 = vld [vmem:[#allocation9] sm:$0x1f]
        %v507 = vld [vmem:[#allocation6] sm:$0xff]
        %v508 = vld [vmem:[#allocation6 + $0x8] sm:$0xff]
        %v509 = vld [vmem:[#allocation6 + $0x10] sm:$0xff]
        %v510 = vld [vmem:[#allocation6 + $0x18] sm:$0xff]
        %v511 = vld [vmem:[#allocation6 + $0x20] sm:$0xff]
        %v512 = vld [vmem:[#allocation6 + $0x28] sm:$0xff]
        %v513 = vld [vmem:[#allocation6 + $0x30] sm:$0xff]
        %v514 = vld [vmem:[#allocation6 + $0x38] sm:$0xff]
        %v515 = vld [vmem:[#allocation6 + $0x40] sm:$0xff]
        %v516 = vld [vmem:[#allocation6 + $0x48] sm:$0xff]
        %v517 = vld [vmem:[#allocation6 + $0x50] sm:$0xff]
        %v518 = vld [vmem:[#allocation6 + $0x58] sm:$0xff]
        %v519 = vld [vmem:[#allocation6 + $0x60] sm:$0xff]
        %v520 = vld [vmem:[#allocation6 + $0x68] sm:$0xff]
        %v521 = vld [vmem:[#allocation6 + $0x70] sm:$0xff]
        %v522 = vld [vmem:[#allocation6 + $0x78] sm:$0xff]
        %s523 = scalar_lea.vmem [#allocation6], 128
        %v524 = vld [vmem:[%s523] sm:$0xff]
        %v525 = vld [vmem:[%s523 + $0x8] sm:$0xff]
        %v526 = vld [vmem:[%s523 + $0x10] sm:$0xff]
        %v527 = vld [vmem:[%s523 + $0x18] sm:$0xff]
        %v528 = vld [vmem:[%s523 + $0x20] sm:$0xff]
        %v529 = vld [vmem:[%s523 + $0x28] sm:$0xff]
        %v530 = vld [vmem:[%s523 + $0x30] sm:$0xff]
        %v531 = vld [vmem:[%s523 + $0x38] sm:$0xff]
        %v532 = vld [vmem:[%s523 + $0x40] sm:$0xff]
        %v533 = vld [vmem:[%s523 + $0x48] sm:$0xff]
        %v534 = vld [vmem:[%s523 + $0x50] sm:$0xff]
        %v535 = vld [vmem:[%s523 + $0x58] sm:$0xff]
        %v536 = vld [vmem:[%s523 + $0x60] sm:$0xff]
        %v537 = vld [vmem:[%s523 + $0x68] sm:$0xff]
        %v538 = vld [vmem:[%s523 + $0x70] sm:$0xff]
        %v539 = vld [vmem:[%s523 + $0x78] sm:$0xff]
        %vm545 = vcmask 1046528
        %v546 = vrot.slane %v500, 1
        %v547 = vrot.slane %v501, 1
        %v548 = vsel %vm545, %v546, %v547
        %v549 = vrot.slane %v502, 1
        %v550 = vsel %vm545, %v547, %v549
        %v551 = vrot.slane %v503, 1
        %v552 = vsel %vm545, %v549, %v551
        %v553 = vrot.slane %v504, 1
        %v554 = vsel %vm545, %v551, %v553
        %560 = vmatprep.subr.mxu0 0.0
        %561 = vmatpush1.msra.mxu0 %v524
        %562 = vmatprep.subr.mxu0 0.0
        %563 = vmatpush1.msra.mxu0 %v525
        %564 = vmatprep.subr.mxu0 0.0
        %565 = vmatpush1.msra.mxu0 %v526
        %566 = vmatprep.subr.mxu0 0.0
        %567 = vmatpush1.msra.mxu0 %v527
        %568 = vmatprep.subr.mxu0 0.0
        %569 = vmatpush1.msra.mxu0 %v528
        %570 = vmatprep.subr.mxu0 0.0
        %571 = vmatpush1.msra.mxu0 %v529
        %572 = vmatprep.subr.mxu0 0.0
        %573 = vmatpush1.msra.mxu0 %v530
        %574 = vmatprep.subr.mxu0 0.0
        %575 = vmatpush1.msra.mxu0 %v531
        %576 = vmatprep.subr.mxu0 0.0
        %577 = vmatpush1.msra.mxu0 %v532
        %578 = vmatprep.subr.mxu0 0.0
        %579 = vmatpush1.msra.mxu0 %v533
        %580 = vmatprep.subr.mxu0 0.0
        %581 = vmatpush1.msra.mxu0 %v534
        %582 = vmatprep.subr.mxu0 0.0
        %583 = vmatpush1.msra.mxu0 %v535
        %584 = vmatprep.subr.mxu0 0.0
        %585 = vmatpush1.msra.mxu0 %v536
        %586 = vmatprep.subr.mxu0 0.0
        %587 = vmatpush1.msra.mxu0 %v537
        %588 = vmatprep.subr.mxu0 0.0
        %589 = vmatpush1.msra.mxu0 %v538
        %590 = vmatprep.subr.mxu0 0.0
        %591 = vmatpush1.msra.mxu0 %v539
        %592 = vmatprep.subr.mxu0 0.0
        %593 = vmatpush1.msra.mxu0 0.0
        %594 = vmatprep.subr.mxu0 0.0
        %595 = vmatpush1.msra.mxu0 0.0
        %596 = vmatprep.subr.mxu0 0.0
        %597 = vmatpush1.msra.mxu0 0.0
        %598 = vmatprep.subr.mxu0 0.0
        %599 = vmatpush1.msra.mxu0 0.0
        %600 = vmatprep.subr.mxu0 0.0
        %601 = vmatpush1.msra.mxu0 0.0
        %602 = vmatprep.subr.mxu0 0.0
        %603 = vmatpush1.msra.mxu0 0.0
        %604 = vmatprep.subr.mxu0 0.0
        %605 = vmatpush1.msra.mxu0 0.0
        %606 = vmatprep.subr.mxu0 0.0
        %607 = vmatpush1.msra.mxu0 0.0
        %608 = vmatprep.subr.mxu0 0.0
        %609 = vmatpush1.msra.mxu0 0.0
        %610 = vmatprep.subr.mxu0 0.0
        %611 = vmatpush1.msra.mxu0 0.0
        %612 = vmatprep.subr.mxu0 0.0
        %613 = vmatpush1.msra.mxu0 0.0
        %614 = vmatprep.subr.mxu0 0.0
        %615 = vmatpush1.msra.mxu0 0.0
        %616 = vmatprep.subr.mxu0 0.0
        %617 = vmatpush1.msra.mxu0 0.0
        %618 = vmatprep.subr.mxu0 0.0
        %619 = vmatpush1.msra.mxu0 0.0
        %620 = vmatprep.subr.mxu0 0.0
        %621 = vmatpush1.msra.mxu0 0.0
        %622 = vmatprep.subr.mxu0 0.0
        %623 = vmatpush1.msra.mxu0 0.0
        %624 = vmatprep.mubr.f32.mxu0 0.0
        %625 = vmatmul.mubr.f32.gmra.mrb[0].mxu0 %v548
        %v626 = vpop.f32.mrb[0].mxu0
        %v627 = vadd.f32 0.0, %v626
        %v628 = vpop.f32.mrb[0].mxu0
        %629 = vmatprep.mubr.f32.mxu0 0.0
        %630 = vmatmul.mubr.f32.gmra.mrb[0].mxu0 %v550
        %v631 = vpop.f32.mrb[0].mxu0
        %v632 = vadd.f32 0.0, %v631
        %v633 = vpop.f32.mrb[0].mxu0
        %634 = vmatprep.mubr.f32.mxu0 0.0
        %635 = vmatmul.mubr.f32.gmra.mrb[0].mxu0 %v552
        %v636 = vpop.f32.mrb[0].mxu0
        %v637 = vadd.f32 0.0, %v636
        %v638 = vpop.f32.mrb[0].mxu0
        %639 = vmatprep.mubr.f32.mxu0 0.0
        %640 = vmatmul.mubr.f32.gmra.mrb[0].mxu0 %v554
        %v641 = vpop.f32.mrb[0].mxu0
        %v642 = vadd.f32 0.0, %v641
        %v643 = vpop.f32.mrb[0].mxu0
        %644 = vmatprep.mubr.f32.mxu0 0.0
        %645 = vmatmul.mubr.f32.gmra.mrb[0].mxu0 %v553
        %v646 = vpop.f32.mrb[0].mxu0
        %v647 = vadd.f32 0.0, %v646
        %v648 = vpop.f32.mrb[0].mxu0
        %649 = vdwg.mxu0
        %650 = vmatprep.subr.mxu0 0.0
        %651 = vmatpush1.msra.mxu0 %v507
        %652 = vmatprep.subr.mxu0 0.0
        %653 = vmatpush1.msra.mxu0 %v508
        %654 = vmatprep.subr.mxu0 0.0
        %655 = vmatpush1.msra.mxu0 %v509
        %656 = vmatprep.subr.mxu0 0.0
        %657 = vmatpush1.msra.mxu0 %v510
        %658 = vmatprep.subr.mxu0 0.0
        %659 = vmatpush1.msra.mxu0 %v511
        %660 = vmatprep.subr.mxu0 0.0
        %661 = vmatpush1.msra.mxu0 %v512
        %662 = vmatprep.subr.mxu0 0.0
        %663 = vmatpush1.msra.mxu0 %v513
        %664 = vmatprep.subr.mxu0 0.0
        %665 = vmatpush1.msra.mxu0 %v514
        %666 = vmatprep.subr.mxu0 0.0
        %667 = vmatpush1.msra.mxu0 %v515
        %668 = vmatprep.subr.mxu0 0.0
        %669 = vmatpush1.msra.mxu0 %v516
        %670 = vmatprep.subr.mxu0 0.0
        %671 = vmatpush1.msra.mxu0 %v517
        %672 = vmatprep.subr.mxu0 0.0
        %673 = vmatpush1.msra.mxu0 %v518
        %674 = vmatprep.subr.mxu0 0.0
        %675 = vmatpush1.msra.mxu0 %v519
        %676 = vmatprep.subr.mxu0 0.0
        %677 = vmatpush1.msra.mxu0 %v520
        %678 = vmatprep.subr.mxu0 0.0
        %679 = vmatpush1.msra.mxu0 %v521
        %680 = vmatprep.subr.mxu0 0.0
        %681 = vmatpush1.msra.mxu0 %v522
        %682 = vmatprep.subr.mxu0 0.0
        %683 = vmatpush1.msra.mxu0 0.0
        %684 = vmatprep.subr.mxu0 0.0
        %685 = vmatpush1.msra.mxu0 0.0
        %686 = vmatprep.subr.mxu0 0.0
        %687 = vmatpush1.msra.mxu0 0.0
        %688 = vmatprep.subr.mxu0 0.0
        %689 = vmatpush1.msra.mxu0 0.0
        %690 = vmatprep.subr.mxu0 0.0
        %691 = vmatpush1.msra.mxu0 0.0
        %692 = vmatprep.subr.mxu0 0.0
        %693 = vmatpush1.msra.mxu0 0.0
        %694 = vmatprep.subr.mxu0 0.0
        %695 = vmatpush1.msra.mxu0 0.0
        %696 = vmatprep.subr.mxu0 0.0
        %697 = vmatpush1.msra.mxu0 0.0
        %698 = vmatprep.subr.mxu0 0.0
        %699 = vmatpush1.msra.mxu0 0.0
        %700 = vmatprep.subr.mxu0 0.0
        %701 = vmatpush1.msra.mxu0 0.0
        %702 = vmatprep.subr.mxu0 0.0
        %703 = vmatpush1.msra.mxu0 0.0
        %704 = vmatprep.subr.mxu0 0.0
        %705 = vmatpush1.msra.mxu0 0.0
        %706 = vmatprep.subr.mxu0 0.0
        %707 = vmatpush1.msra.mxu0 0.0
        %708 = vmatprep.subr.mxu0 0.0
        %709 = vmatpush1.msra.mxu0 0.0
        %710 = vmatprep.subr.mxu0 0.0
        %711 = vmatpush1.msra.mxu0 0.0
        %712 = vmatprep.subr.mxu0 0.0
        %713 = vmatpush1.msra.mxu0 0.0
        %714 = vmatprep.mubr.f32.mxu0 0.0
        %715 = vmatmul.mubr.f32.gmra.mrb[0].mxu0 %v500
        %v716 = vpop.f32.mrb[0].mxu0
        %v717 = vadd.f32 %v627, %v716
        %v718 = vpop.f32.mrb[0].mxu0
        %719 = vmatprep.mubr.f32.mxu0 0.0
        %720 = vmatmul.mubr.f32.gmra.mrb[0].mxu0 %v501
        %v721 = vpop.f32.mrb[0].mxu0
        %v722 = vadd.f32 %v632, %v721
        %v723 = vpop.f32.mrb[0].mxu0
        %724 = vmatprep.mubr.f32.mxu0 0.0
        %725 = vmatmul.mubr.f32.gmra.mrb[0].mxu0 %v502
        %v726 = vpop.f32.mrb[0].mxu0
        %v727 = vadd.f32 %v637, %v726
        %v728 = vpop.f32.mrb[0].mxu0
        %729 = vmatprep.mubr.f32.mxu0 0.0
        %730 = vmatmul.mubr.f32.gmra.mrb[0].mxu0 %v503
        %v731 = vpop.f32.mrb[0].mxu0
        %v732 = vadd.f32 %v642, %v731
        %v733 = vpop.f32.mrb[0].mxu0
        %734 = vmatprep.mubr.f32.mxu0 0.0
        %735 = vmatmul.mubr.f32.gmra.mrb[0].mxu0 %v504
        %v736 = vpop.f32.mrb[0].mxu0
        %v737 = vadd.f32 %v647, %v736
        %v738 = vpop.f32.mrb[0].mxu0
        %739 = vdwg.mxu0
        %s740 = scalar_lea.vmem [#allocation6], 256
        %v741 = vld [vmem:[%s740] sm:$0xff]
        %v742 = vld [vmem:[%s740 + $0x8] sm:$0xff]
        %v743 = vld [vmem:[%s740 + $0x10] sm:$0xff]
        %v744 = vld [vmem:[%s740 + $0x18] sm:$0xff]
        %v745 = vld [vmem:[%s740 + $0x20] sm:$0xff]
        %v746 = vld [vmem:[%s740 + $0x28] sm:$0xff]
        %v747 = vld [vmem:[%s740 + $0x30] sm:$0xff]
        %v748 = vld [vmem:[%s740 + $0x38] sm:$0xff]
        %v749 = vld [vmem:[%s740 + $0x40] sm:$0xff]
        %v750 = vld [vmem:[%s740 + $0x48] sm:$0xff]
        %v751 = vld [vmem:[%s740 + $0x50] sm:$0xff]
        %v752 = vld [vmem:[%s740 + $0x58] sm:$0xff]
        %v753 = vld [vmem:[%s740 + $0x60] sm:$0xff]
        %v754 = vld [vmem:[%s740 + $0x68] sm:$0xff]
        %v755 = vld [vmem:[%s740 + $0x70] sm:$0xff]
        %v756 = vld [vmem:[%s740 + $0x78] sm:$0xff]
        %vm757 = vcmask 1045504
        %v758 = vrot.slane %v500, 2
        %v759 = vrot.slane %v501, 2
        %v760 = vsel %vm757, %v758, %v759
        %v761 = vrot.slane %v502, 2
        %v762 = vsel %vm757, %v759, %v761
        %v763 = vrot.slane %v503, 2
        %v764 = vsel %vm757, %v761, %v763
        %v765 = vrot.slane %v504, 2
        %v766 = vsel %vm757, %v763, %v765
        %772 = vmatprep.subr.mxu0 0.0
        %773 = vmatpush1.msra.mxu0 %v741
        %774 = vmatprep.subr.mxu0 0.0
        %775 = vmatpush1.msra.mxu0 %v742
        %776 = vmatprep.subr.mxu0 0.0
        %777 = vmatpush1.msra.mxu0 %v743
        %778 = vmatprep.subr.mxu0 0.0
        %779 = vmatpush1.msra.mxu0 %v744
        %780 = vmatprep.subr.mxu0 0.0
        %781 = vmatpush1.msra.mxu0 %v745
        %782 = vmatprep.subr.mxu0 0.0
        %783 = vmatpush1.msra.mxu0 %v746
        %784 = vmatprep.subr.mxu0 0.0
        %785 = vmatpush1.msra.mxu0 %v747
        %786 = vmatprep.subr.mxu0 0.0
        %787 = vmatpush1.msra.mxu0 %v748
        %788 = vmatprep.subr.mxu0 0.0
        %789 = vmatpush1.msra.mxu0 %v749
        %790 = vmatprep.subr.mxu0 0.0
        %791 = vmatpush1.msra.mxu0 %v750
        %792 = vmatprep.subr.mxu0 0.0
        %793 = vmatpush1.msra.mxu0 %v751
        %794 = vmatprep.subr.mxu0 0.0
        %795 = vmatpush1.msra.mxu0 %v752
        %796 = vmatprep.subr.mxu0 0.0
        %797 = vmatpush1.msra.mxu0 %v753
        %798 = vmatprep.subr.mxu0 0.0
        %799 = vmatpush1.msra.mxu0 %v754
        %800 = vmatprep.subr.mxu0 0.0
        %801 = vmatpush1.msra.mxu0 %v755
        %802 = vmatprep.subr.mxu0 0.0
        %803 = vmatpush1.msra.mxu0 %v756
        %804 = vmatprep.subr.mxu0 0.0
        %805 = vmatpush1.msra.mxu0 0.0
        %806 = vmatprep.subr.mxu0 0.0
        %807 = vmatpush1.msra.mxu0 0.0
        %808 = vmatprep.subr.mxu0 0.0
        %809 = vmatpush1.msra.mxu0 0.0
        %810 = vmatprep.subr.mxu0 0.0
        %811 = vmatpush1.msra.mxu0 0.0
        %812 = vmatprep.subr.mxu0 0.0
        %813 = vmatpush1.msra.mxu0 0.0
        %814 = vmatprep.subr.mxu0 0.0
        %815 = vmatpush1.msra.mxu0 0.0
        %816 = vmatprep.subr.mxu0 0.0
        %817 = vmatpush1.msra.mxu0 0.0
        %818 = vmatprep.subr.mxu0 0.0
        %819 = vmatpush1.msra.mxu0 0.0
        %820 = vmatprep.subr.mxu0 0.0
        %821 = vmatpush1.msra.mxu0 0.0
        %822 = vmatprep.subr.mxu0 0.0
        %823 = vmatpush1.msra.mxu0 0.0
        %824 = vmatprep.subr.mxu0 0.0
        %825 = vmatpush1.msra.mxu0 0.0
        %826 = vmatprep.subr.mxu0 0.0
        %827 = vmatpush1.msra.mxu0 0.0
        %828 = vmatprep.subr.mxu0 0.0
        %829 = vmatpush1.msra.mxu0 0.0
        %830 = vmatprep.subr.mxu0 0.0
        %831 = vmatpush1.msra.mxu0 0.0
        %832 = vmatprep.subr.mxu0 0.0
        %833 = vmatpush1.msra.mxu0 0.0
        %834 = vmatprep.subr.mxu0 0.0
        %835 = vmatpush1.msra.mxu0 0.0
        %836 = vmatprep.mubr.f32.mxu0 0.0
        %837 = vmatmul.mubr.f32.gmra.mrb[0].mxu0 %v760
        %v838 = vpop.f32.mrb[0].mxu0
        %v839 = vadd.f32 0.0, %v838
        %v840 = vpop.f32.mrb[0].mxu0
        %841 = vmatprep.mubr.f32.mxu0 0.0
        %842 = vmatmul.mubr.f32.gmra.mrb[0].mxu0 %v762
        %v843 = vpop.f32.mrb[0].mxu0
        %v844 = vadd.f32 0.0, %v843
        %v845 = vpop.f32.mrb[0].mxu0
        %846 = vmatprep.mubr.f32.mxu0 0.0
        %847 = vmatmul.mubr.f32.gmra.mrb[0].mxu0 %v764
        %v848 = vpop.f32.mrb[0].mxu0
        %v849 = vadd.f32 0.0, %v848
        %v850 = vpop.f32.mrb[0].mxu0
        %851 = vmatprep.mubr.f32.mxu0 0.0
        %852 = vmatmul.mubr.f32.gmra.mrb[0].mxu0 %v766
        %v853 = vpop.f32.mrb[0].mxu0
        %v854 = vadd.f32 0.0, %v853
        %v855 = vpop.f32.mrb[0].mxu0
        %856 = vmatprep.mubr.f32.mxu0 0.0
        %857 = vmatmul.mubr.f32.gmra.mrb[0].mxu0 %v765
        %v858 = vpop.f32.mrb[0].mxu0
        %v859 = vadd.f32 0.0, %v858
        %v860 = vpop.f32.mrb[0].mxu0
        %861 = vdwg.mxu0
        %v862 = vadd.f32 %v717, %v839
        %v863 = vadd.f32 %v722, %v844
        %v864 = vadd.f32 %v727, %v849
        %v865 = vadd.f32 %v732, %v854
        %v866 = vadd.f32 %v737, %v859
        %s867 = scalar_lea.vmem [#allocation6], 384
        %v868 = vld [vmem:[%s867] sm:$0xff]
        %v869 = vld [vmem:[%s867 + $0x8] sm:$0xff]
        %v870 = vld [vmem:[%s867 + $0x10] sm:$0xff]
        %v871 = vld [vmem:[%s867 + $0x18] sm:$0xff]
        %v872 = vld [vmem:[%s867 + $0x20] sm:$0xff]
        %v873 = vld [vmem:[%s867 + $0x28] sm:$0xff]
        %v874 = vld [vmem:[%s867 + $0x30] sm:$0xff]
        %v875 = vld [vmem:[%s867 + $0x38] sm:$0xff]
        %v876 = vld [vmem:[%s867 + $0x40] sm:$0xff]
        %v877 = vld [vmem:[%s867 + $0x48] sm:$0xff]
        %v878 = vld [vmem:[%s867 + $0x50] sm:$0xff]
        %v879 = vld [vmem:[%s867 + $0x58] sm:$0xff]
        %v880 = vld [vmem:[%s867 + $0x60] sm:$0xff]
        %v881 = vld [vmem:[%s867 + $0x68] sm:$0xff]
        %v882 = vld [vmem:[%s867 + $0x70] sm:$0xff]
        %v883 = vld [vmem:[%s867 + $0x78] sm:$0xff]
        %vm884 = vcmask 1044480
        %v885 = vrot.slane %v500, 3
        %v886 = vrot.slane %v501, 3
        %v887 = vsel %vm884, %v885, %v886
        %v888 = vrot.slane %v502, 3
        %v889 = vsel %vm884, %v886, %v888
        %v890 = vrot.slane %v503, 3
        %v891 = vsel %vm884, %v888, %v890
        %v892 = vrot.slane %v504, 3
        %v893 = vsel %vm884, %v890, %v892
        %899 = vmatprep.subr.mxu0 0.0
        %900 = vmatpush1.msra.mxu0 %v868
        %901 = vmatprep.subr.mxu0 0.0
        %902 = vmatpush1.msra.mxu0 %v869
        %903 = vmatprep.subr.mxu0 0.0
        %904 = vmatpush1.msra.mxu0 %v870
        %905 = vmatprep.subr.mxu0 0.0
        %906 = vmatpush1.msra.mxu0 %v871
        %907 = vmatprep.subr.mxu0 0.0
        %908 = vmatpush1.msra.mxu0 %v872
        %909 = vmatprep.subr.mxu0 0.0
        %910 = vmatpush1.msra.mxu0 %v873
        %911 = vmatprep.subr.mxu0 0.0
        %912 = vmatpush1.msra.mxu0 %v874
        %913 = vmatprep.subr.mxu0 0.0
        %914 = vmatpush1.msra.mxu0 %v875
        %915 = vmatprep.subr.mxu0 0.0
        %916 = vmatpush1.msra.mxu0 %v876
        %917 = vmatprep.subr.mxu0 0.0
        %918 = vmatpush1.msra.mxu0 %v877
        %919 = vmatprep.subr.mxu0 0.0
        %920 = vmatpush1.msra.mxu0 %v878
        %921 = vmatprep.subr.mxu0 0.0
        %922 = vmatpush1.msra.mxu0 %v879
        %923 = vmatprep.subr.mxu0 0.0
        %924 = vmatpush1.msra.mxu0 %v880
        %925 = vmatprep.subr.mxu0 0.0
        %926 = vmatpush1.msra.mxu0 %v881
        %927 = vmatprep.subr.mxu0 0.0
        %928 = vmatpush1.msra.mxu0 %v882
        %929 = vmatprep.subr.mxu0 0.0
        %930 = vmatpush1.msra.mxu0 %v883
        %931 = vmatprep.subr.mxu0 0.0
        %932 = vmatpush1.msra.mxu0 0.0
        %933 = vmatprep.subr.mxu0 0.0
        %934 = vmatpush1.msra.mxu0 0.0
        %935 = vmatprep.subr.mxu0 0.0
        %936 = vmatpush1.msra.mxu0 0.0
        %937 = vmatprep.subr.mxu0 0.0
        %938 = vmatpush1.msra.mxu0 0.0
        %939 = vmatprep.subr.mxu0 0.0
        %940 = vmatpush1.msra.mxu0 0.0
        %941 = vmatprep.subr.mxu0 0.0
        %942 = vmatpush1.msra.mxu0 0.0
        %943 = vmatprep.subr.mxu0 0.0
        %944 = vmatpush1.msra.mxu0 0.0
        %945 = vmatprep.subr.mxu0 0.0
        %946 = vmatpush1.msra.mxu0 0.0
        %947 = vmatprep.subr.mxu0 0.0
        %948 = vmatpush1.msra.mxu0 0.0
        %949 = vmatprep.subr.mxu0 0.0
        %950 = vmatpush1.msra.mxu0 0.0
        %951 = vmatprep.subr.mxu0 0.0
        %952 = vmatpush1.msra.mxu0 0.0
        %953 = vmatprep.subr.mxu0 0.0
        %954 = vmatpush1.msra.mxu0 0.0
        %955 = vmatprep.subr.mxu0 0.0
        %956 = vmatpush1.msra.mxu0 0.0
        %957 = vmatprep.subr.mxu0 0.0
        %958 = vmatpush1.msra.mxu0 0.0
        %959 = vmatprep.subr.mxu0 0.0
        %960 = vmatpush1.msra.mxu0 0.0
        %961 = vmatprep.subr.mxu0 0.0
        %962 = vmatpush1.msra.mxu0 0.0
        %963 = vmatprep.mubr.f32.mxu0 0.0
        %964 = vmatmul.mubr.f32.gmra.mrb[0].mxu0 %v887
        %v965 = vpop.f32.mrb[0].mxu0
        %v966 = vadd.f32 0.0, %v965
        %v967 = vpop.f32.mrb[0].mxu0
        %968 = vmatprep.mubr.f32.mxu0 0.0
        %969 = vmatmul.mubr.f32.gmra.mrb[0].mxu0 %v889
        %v970 = vpop.f32.mrb[0].mxu0
        %v971 = vadd.f32 0.0, %v970
        %v972 = vpop.f32.mrb[0].mxu0
        %973 = vmatprep.mubr.f32.mxu0 0.0
        %974 = vmatmul.mubr.f32.gmra.mrb[0].mxu0 %v891
        %v975 = vpop.f32.mrb[0].mxu0
        %v976 = vadd.f32 0.0, %v975
        %v977 = vpop.f32.mrb[0].mxu0
        %978 = vmatprep.mubr.f32.mxu0 0.0
        %979 = vmatmul.mubr.f32.gmra.mrb[0].mxu0 %v893
        %v980 = vpop.f32.mrb[0].mxu0
        %v981 = vadd.f32 0.0, %v980
        %v982 = vpop.f32.mrb[0].mxu0
        %983 = vmatprep.mubr.f32.mxu0 0.0
        %984 = vmatmul.mubr.f32.gmra.mrb[0].mxu0 %v892
        %v985 = vpop.f32.mrb[0].mxu0
        %v986 = vadd.f32 0.0, %v985
        %v987 = vpop.f32.mrb[0].mxu0
        %988 = vdwg.mxu0
        %v989 = vadd.f32 %v862, %v966
        %v990 = vadd.f32 %v863, %v971
        %v991 = vadd.f32 %v864, %v976
        %v992 = vadd.f32 %v865, %v981
        %v993 = vadd.f32 %v866, %v986
        %s994 = scalar_lea.vmem [#allocation6], 512
        %v995 = vld [vmem:[%s994] sm:$0xff]
        %v996 = vld [vmem:[%s994 + $0x8] sm:$0xff]
        %v997 = vld [vmem:[%s994 + $0x10] sm:$0xff]
        %v998 = vld [vmem:[%s994 + $0x18] sm:$0xff]
        %v999 = vld [vmem:[%s994 + $0x20] sm:$0xff]
        %v1000 = vld [vmem:[%s994 + $0x28] sm:$0xff]
        %v1001 = vld [vmem:[%s994 + $0x30] sm:$0xff]
        %v1002 = vld [vmem:[%s994 + $0x38] sm:$0xff]
        %v1003 = vld [vmem:[%s994 + $0x40] sm:$0xff]
        %v1004 = vld [vmem:[%s994 + $0x48] sm:$0xff]
        %v1005 = vld [vmem:[%s994 + $0x50] sm:$0xff]
        %v1006 = vld [vmem:[%s994 + $0x58] sm:$0xff]
        %v1007 = vld [vmem:[%s994 + $0x60] sm:$0xff]
        %v1008 = vld [vmem:[%s994 + $0x68] sm:$0xff]
        %v1009 = vld [vmem:[%s994 + $0x70] sm:$0xff]
        %v1010 = vld [vmem:[%s994 + $0x78] sm:$0xff]
        %vm1011 = vcmask 1043456
        %v1012 = vrot.slane %v500, 4
        %v1013 = vrot.slane %v501, 4
        %v1014 = vsel %vm1011, %v1012, %v1013
        %v1015 = vrot.slane %v502, 4
        %v1016 = vsel %vm1011, %v1013, %v1015
        %v1017 = vrot.slane %v503, 4
        %v1018 = vsel %vm1011, %v1015, %v1017
        %v1019 = vrot.slane %v504, 4
        %v1020 = vsel %vm1011, %v1017, %v1019
        %1026 = vmatprep.subr.mxu0 0.0
        %1027 = vmatpush1.msra.mxu0 %v995
        %1028 = vmatprep.subr.mxu0 0.0
        %1029 = vmatpush1.msra.mxu0 %v996
        %1030 = vmatprep.subr.mxu0 0.0
        %1031 = vmatpush1.msra.mxu0 %v997
        %1032 = vmatprep.subr.mxu0 0.0
        %1033 = vmatpush1.msra.mxu0 %v998
        %1034 = vmatprep.subr.mxu0 0.0
        %1035 = vmatpush1.msra.mxu0 %v999
        %1036 = vmatprep.subr.mxu0 0.0
        %1037 = vmatpush1.msra.mxu0 %v1000
        %1038 = vmatprep.subr.mxu0 0.0
        %1039 = vmatpush1.msra.mxu0 %v1001
        %1040 = vmatprep.subr.mxu0 0.0
        %1041 = vmatpush1.msra.mxu0 %v1002
        %1042 = vmatprep.subr.mxu0 0.0
        %1043 = vmatpush1.msra.mxu0 %v1003
        %1044 = vmatprep.subr.mxu0 0.0
        %1045 = vmatpush1.msra.mxu0 %v1004
        %1046 = vmatprep.subr.mxu0 0.0
        %1047 = vmatpush1.msra.mxu0 %v1005
        %1048 = vmatprep.subr.mxu0 0.0
        %1049 = vmatpush1.msra.mxu0 %v1006
        %1050 = vmatprep.subr.mxu0 0.0
        %1051 = vmatpush1.msra.mxu0 %v1007
        %1052 = vmatprep.subr.mxu0 0.0
        %1053 = vmatpush1.msra.mxu0 %v1008
        %1054 = vmatprep.subr.mxu0 0.0
        %1055 = vmatpush1.msra.mxu0 %v1009
        %1056 = vmatprep.subr.mxu0 0.0
        %1057 = vmatpush1.msra.mxu0 %v1010
        %1058 = vmatprep.subr.mxu0 0.0
        %1059 = vmatpush1.msra.mxu0 0.0
        %1060 = vmatprep.subr.mxu0 0.0
        %1061 = vmatpush1.msra.mxu0 0.0
        %1062 = vmatprep.subr.mxu0 0.0
        %1063 = vmatpush1.msra.mxu0 0.0
        %1064 = vmatprep.subr.mxu0 0.0
        %1065 = vmatpush1.msra.mxu0 0.0
        %1066 = vmatprep.subr.mxu0 0.0
        %1067 = vmatpush1.msra.mxu0 0.0
        %1068 = vmatprep.subr.mxu0 0.0
        %1069 = vmatpush1.msra.mxu0 0.0
        %1070 = vmatprep.subr.mxu0 0.0
        %1071 = vmatpush1.msra.mxu0 0.0
        %1072 = vmatprep.subr.mxu0 0.0
        %1073 = vmatpush1.msra.mxu0 0.0
        %1074 = vmatprep.subr.mxu0 0.0
        %1075 = vmatpush1.msra.mxu0 0.0
        %1076 = vmatprep.subr.mxu0 0.0
        %1077 = vmatpush1.msra.mxu0 0.0
        %1078 = vmatprep.subr.mxu0 0.0
        %1079 = vmatpush1.msra.mxu0 0.0
        %1080 = vmatprep.subr.mxu0 0.0
        %1081 = vmatpush1.msra.mxu0 0.0
        %1082 = vmatprep.subr.mxu0 0.0
        %1083 = vmatpush1.msra.mxu0 0.0
        %1084 = vmatprep.subr.mxu0 0.0
        %1085 = vmatpush1.msra.mxu0 0.0
        %1086 = vmatprep.subr.mxu0 0.0
        %1087 = vmatpush1.msra.mxu0 0.0
        %1088 = vmatprep.subr.mxu0 0.0
        %1089 = vmatpush1.msra.mxu0 0.0
        %1090 = vmatprep.mubr.f32.mxu0 0.0
        %1091 = vmatmul.mubr.f32.gmra.mrb[0].mxu0 %v1014
        %v1092 = vpop.f32.mrb[0].mxu0
        %v1093 = vadd.f32 0.0, %v1092
        %v1094 = vpop.f32.mrb[0].mxu0
        %1095 = vmatprep.mubr.f32.mxu0 0.0
        %1096 = vmatmul.mubr.f32.gmra.mrb[0].mxu0 %v1016
        %v1097 = vpop.f32.mrb[0].mxu0
        %v1098 = vadd.f32 0.0, %v1097
        %v1099 = vpop.f32.mrb[0].mxu0
        %1100 = vmatprep.mubr.f32.mxu0 0.0
        %1101 = vmatmul.mubr.f32.gmra.mrb[0].mxu0 %v1018
        %v1102 = vpop.f32.mrb[0].mxu0
        %v1103 = vadd.f32 0.0, %v1102
        %v1104 = vpop.f32.mrb[0].mxu0
        %1105 = vmatprep.mubr.f32.mxu0 0.0
        %1106 = vmatmul.mubr.f32.gmra.mrb[0].mxu0 %v1020
        %v1107 = vpop.f32.mrb[0].mxu0
        %v1108 = vadd.f32 0.0, %v1107
        %v1109 = vpop.f32.mrb[0].mxu0
        %1110 = vmatprep.mubr.f32.mxu0 0.0
        %1111 = vmatmul.mubr.f32.gmra.mrb[0].mxu0 %v1019
        %v1112 = vpop.f32.mrb[0].mxu0
        %v1113 = vadd.f32 0.0, %v1112
        %v1114 = vpop.f32.mrb[0].mxu0
        %1115 = vdwg.mxu0
        %v1116 = vadd.f32 %v989, %v1093
        %v1117 = vadd.f32 %v990, %v1098
        %v1118 = vadd.f32 %v991, %v1103
        %v1119 = vadd.f32 %v992, %v1108
        %v1120 = vadd.f32 %v993, %v1113
        %v1121 = vlaneseq
        %v1122 = vshrl.u32 %v1121, 7
        %v1123 = vsub.s32 0, %v1122
        %v1124 = vrot.slane %v505, %v1123
        %v1125 = vmul.f32 %v1116, %v1124
        %v1126 = vmul.f32 %v1117, %v1124
        %v1127 = vmul.f32 %v1118, %v1124
        %v1128 = vmul.f32 %v1119, %v1124
        %v1129 = vmul.f32 %v1120, %v1124
        %v1130 = vlaneseq
        %v1131 = vshrl.u32 %v1130, 7
        %v1132 = vsub.s32 0, %v1131
        %v1133 = vrot.slane %v506, %v1132
        %v1134 = vadd.f32 %v1125, %v1133
        %v1135 = vadd.f32 %v1126, %v1133
        %v1136 = vadd.f32 %v1127, %v1133
        %v1137 = vadd.f32 %v1128, %v1133
        %v1138 = vadd.f32 %v1129, %v1133
        %v1139 = vtanh.pop %v1134
        %v1140 = vtanh.pop %v1135
        %v1141 = vtanh.pop %v1136
        %v1142 = vtanh.pop %v1137
        %v1143 = vtanh.pop %v1138
        %s1144 = sadd.s32 %s342, 4294967288
        %v1145 = vstv %s1144
        %v1146 = vadd.s32 %v464, %v1145
        %v1147 = vadd.s32 %v465, %v1145
        %v1148 = vadd.s32 %v466, %v1145
        %v1149 = vadd.s32 %v467, %v1145
        %v1150 = vadd.s32 %v468, %v1145
        %vm1151 = vcmp.ge.s32.totalorder %v1146, 0
        %vm1152 = vcmp.ge.s32.totalorder %v1147, 0
        %vm1153 = vcmp.ge.s32.totalorder %v1148, 0
        %vm1154 = vcmp.ge.s32.totalorder %v1149, 0
        %vm1155 = vcmp.ge.s32.totalorder %v1150, 0
        %vm1156 = vcmp.lt.s32.totalorder %v1146, 16
        %vm1157 = vcmp.lt.s32.totalorder %v1147, 16
        %vm1158 = vcmp.lt.s32.totalorder %v1148, 16
        %vm1159 = vcmp.lt.s32.totalorder %v1149, 16
        %vm1160 = vcmp.lt.s32.totalorder %v1150, 16
        %vm1161 = vmand %vm1151, %vm1156
        %vm1162 = vmand %vm1152, %vm1157
        %vm1163 = vmand %vm1153, %vm1158
        %vm1164 = vmand %vm1154, %vm1159
        %vm1165 = vmand %vm1155, %vm1160
        %v1166 = vsel %vm1161, 1, 0
        %v1167 = vsel %vm1162, 1, 0
        %v1168 = vsel %vm1163, 1, 0
        %v1169 = vsel %vm1164, 1, 0
        %v1170 = vsel %vm1165, 1, 0
        %vm1171 = vcmp.eq.s32.totalorder %v1166, 1
        %vm1172 = vcmp.eq.s32.totalorder %v1167, 1
        %vm1173 = vcmp.eq.s32.totalorder %v1168, 1
        %vm1174 = vcmp.eq.s32.totalorder %v1169, 1
        %vm1175 = vcmp.eq.s32.totalorder %v1170, 1
        %v1176 = vsel %vm1171, %v1139, 0.0
        %v1177 = vsel %vm1172, %v1140, 0.0
        %v1178 = vsel %vm1173, %v1141, 0.0
        %v1179 = vsel %vm1174, %v1142, 0.0
        %v1180 = vsel %vm1175, %v1143, 0.0
        %s1181 = scalar_lea.vmem [#allocation6], 640
        %v1182 = vld [vmem:[%s1181] sm:$0xff]
        %v1183 = vld [vmem:[%s1181 + $0x8] sm:$0xff]
        %v1184 = vld [vmem:[%s1181 + $0x10] sm:$0xff]
        %v1185 = vld [vmem:[%s1181 + $0x18] sm:$0xff]
        %v1186 = vld [vmem:[%s1181 + $0x20] sm:$0xff]
        %v1187 = vld [vmem:[%s1181 + $0x28] sm:$0xff]
        %v1188 = vld [vmem:[%s1181 + $0x30] sm:$0xff]
        %v1189 = vld [vmem:[%s1181 + $0x38] sm:$0xff]
        %v1190 = vld [vmem:[%s1181 + $0x40] sm:$0xff]
        %v1191 = vld [vmem:[%s1181 + $0x48] sm:$0xff]
        %v1192 = vld [vmem:[%s1181 + $0x50] sm:$0xff]
        %v1193 = vld [vmem:[%s1181 + $0x58] sm:$0xff]
        %v1194 = vld [vmem:[%s1181 + $0x60] sm:$0xff]
        %v1195 = vld [vmem:[%s1181 + $0x68] sm:$0xff]
        %v1196 = vld [vmem:[%s1181 + $0x70] sm:$0xff]
        %v1197 = vld [vmem:[%s1181 + $0x78] sm:$0xff]
        %s1198 = scalar_lea.vmem [#allocation6], 768
        %v1199 = vld [vmem:[%s1198] sm:$0xff]
        %v1200 = vld [vmem:[%s1198 + $0x8] sm:$0xff]
        %v1201 = vld [vmem:[%s1198 + $0x10] sm:$0xff]
        %v1202 = vld [vmem:[%s1198 + $0x18] sm:$0xff]
        %v1203 = vld [vmem:[%s1198 + $0x20] sm:$0xff]
        %v1204 = vld [vmem:[%s1198 + $0x28] sm:$0xff]
        %v1205 = vld [vmem:[%s1198 + $0x30] sm:$0xff]
        %v1206 = vld [vmem:[%s1198 + $0x38] sm:$0xff]
        %v1207 = vld [vmem:[%s1198 + $0x40] sm:$0xff]
        %v1208 = vld [vmem:[%s1198 + $0x48] sm:$0xff]
        %v1209 = vld [vmem:[%s1198 + $0x50] sm:$0xff]
        %v1210 = vld [vmem:[%s1198 + $0x58] sm:$0xff]
        %v1211 = vld [vmem:[%s1198 + $0x60] sm:$0xff]
        %v1212 = vld [vmem:[%s1198 + $0x68] sm:$0xff]
        %v1213 = vld [vmem:[%s1198 + $0x70] sm:$0xff]
        %v1214 = vld [vmem:[%s1198 + $0x78] sm:$0xff]
        %v1220 = vrot.slane %v1176, 1
        %v1221 = vrot.slane %v1177, 1
        %v1222 = vsel %vm545, %v1220, %v1221
        %v1223 = vrot.slane %v1178, 1
        %v1224 = vsel %vm545, %v1221, %v1223
        %v1225 = vrot.slane %v1179, 1
        %v1226 = vsel %vm545, %v1223, %v1225
        %v1227 = vrot.slane %v1180, 1
        %v1228 = vsel %vm545, %v1225, %v1227
        %1233 = vmatprep.subr.mxu0 0.0
        %1234 = vmatpush1.msra.mxu0 %v1199
        %1235 = vmatprep.subr.mxu0 0.0
        %1236 = vmatpush1.msra.mxu0 %v1200
        %1237 = vmatprep.subr.mxu0 0.0
        %1238 = vmatpush1.msra.mxu0 %v1201
        %1239 = vmatprep.subr.mxu0 0.0
        %1240 = vmatpush1.msra.mxu0 %v1202
        %1241 = vmatprep.subr.mxu0 0.0
        %1242 = vmatpush1.msra.mxu0 %v1203
        %1243 = vmatprep.subr.mxu0 0.0
        %1244 = vmatpush1.msra.mxu0 %v1204
        %1245 = vmatprep.subr.mxu0 0.0
        %1246 = vmatpush1.msra.mxu0 %v1205
        %1247 = vmatprep.subr.mxu0 0.0
        %1248 = vmatpush1.msra.mxu0 %v1206
        %1249 = vmatprep.subr.mxu0 0.0
        %1250 = vmatpush1.msra.mxu0 %v1207
        %1251 = vmatprep.subr.mxu0 0.0
        %1252 = vmatpush1.msra.mxu0 %v1208
        %1253 = vmatprep.subr.mxu0 0.0
        %1254 = vmatpush1.msra.mxu0 %v1209
        %1255 = vmatprep.subr.mxu0 0.0
        %1256 = vmatpush1.msra.mxu0 %v1210
        %1257 = vmatprep.subr.mxu0 0.0
        %1258 = vmatpush1.msra.mxu0 %v1211
        %1259 = vmatprep.subr.mxu0 0.0
        %1260 = vmatpush1.msra.mxu0 %v1212
        %1261 = vmatprep.subr.mxu0 0.0
        %1262 = vmatpush1.msra.mxu0 %v1213
        %1263 = vmatprep.subr.mxu0 0.0
        %1264 = vmatpush1.msra.mxu0 %v1214
        %1265 = vmatprep.subr.mxu0 0.0
        %1266 = vmatpush1.msra.mxu0 0.0
        %1267 = vmatprep.subr.mxu0 0.0
        %1268 = vmatpush1.msra.mxu0 0.0
        %1269 = vmatprep.subr.mxu0 0.0
        %1270 = vmatpush1.msra.mxu0 0.0
        %1271 = vmatprep.subr.mxu0 0.0
        %1272 = vmatpush1.msra.mxu0 0.0
        %1273 = vmatprep.subr.mxu0 0.0
        %1274 = vmatpush1.msra.mxu0 0.0
        %1275 = vmatprep.subr.mxu0 0.0
        %1276 = vmatpush1.msra.mxu0 0.0
        %1277 = vmatprep.subr.mxu0 0.0
        %1278 = vmatpush1.msra.mxu0 0.0
        %1279 = vmatprep.subr.mxu0 0.0
        %1280 = vmatpush1.msra.mxu0 0.0
        %1281 = vmatprep.subr.mxu0 0.0
        %1282 = vmatpush1.msra.mxu0 0.0
        %1283 = vmatprep.subr.mxu0 0.0
        %1284 = vmatpush1.msra.mxu0 0.0
        %1285 = vmatprep.subr.mxu0 0.0
        %1286 = vmatpush1.msra.mxu0 0.0
        %1287 = vmatprep.subr.mxu0 0.0
        %1288 = vmatpush1.msra.mxu0 0.0
        %1289 = vmatprep.subr.mxu0 0.0
        %1290 = vmatpush1.msra.mxu0 0.0
        %1291 = vmatprep.subr.mxu0 0.0
        %1292 = vmatpush1.msra.mxu0 0.0
        %1293 = vmatprep.subr.mxu0 0.0
        %1294 = vmatpush1.msra.mxu0 0.0
        %1295 = vmatprep.subr.mxu0 0.0
        %1296 = vmatpush1.msra.mxu0 0.0
        %1297 = vmatprep.mubr.f32.mxu0 0.0
        %1298 = vmatmul.mubr.f32.gmra.mrb[0].mxu0 %v1222
        %v1299 = vpop.f32.mrb[0].mxu0
        %v1300 = vadd.f32 0.0, %v1299
        %v1301 = vpop.f32.mrb[0].mxu0
        %1302 = vmatprep.mubr.f32.mxu0 0.0
        %1303 = vmatmul.mubr.f32.gmra.mrb[0].mxu0 %v1224
        %v1304 = vpop.f32.mrb[0].mxu0
        %v1305 = vadd.f32 0.0, %v1304
        %v1306 = vpop.f32.mrb[0].mxu0
        %1307 = vmatprep.mubr.f32.mxu0 0.0
        %1308 = vmatmul.mubr.f32.gmra.mrb[0].mxu0 %v1226
        %v1309 = vpop.f32.mrb[0].mxu0
        %v1310 = vadd.f32 0.0, %v1309
        %v1311 = vpop.f32.mrb[0].mxu0
        %1312 = vmatprep.mubr.f32.mxu0 0.0
        %1313 = vmatmul.mubr.f32.gmra.mrb[0].mxu0 %v1228
        %v1314 = vpop.f32.mrb[0].mxu0
        %v1315 = vadd.f32 0.0, %v1314
        %v1316 = vpop.f32.mrb[0].mxu0
        %1317 = vdwg.mxu0
        %1318 = vmatprep.subr.mxu0 0.0
        %1319 = vmatpush1.msra.mxu0 %v1182
        %1320 = vmatprep.subr.mxu0 0.0
        %1321 = vmatpush1.msra.mxu0 %v1183
        %1322 = vmatprep.subr.mxu0 0.0
        %1323 = vmatpush1.msra.mxu0 %v1184
        %1324 = vmatprep.subr.mxu0 0.0
        %1325 = vmatpush1.msra.mxu0 %v1185
        %1326 = vmatprep.subr.mxu0 0.0
        %1327 = vmatpush1.msra.mxu0 %v1186
        %1328 = vmatprep.subr.mxu0 0.0
        %1329 = vmatpush1.msra.mxu0 %v1187
        %1330 = vmatprep.subr.mxu0 0.0
        %1331 = vmatpush1.msra.mxu0 %v1188
        %1332 = vmatprep.subr.mxu0 0.0
        %1333 = vmatpush1.msra.mxu0 %v1189
        %1334 = vmatprep.subr.mxu0 0.0
        %1335 = vmatpush1.msra.mxu0 %v1190
        %1336 = vmatprep.subr.mxu0 0.0
        %1337 = vmatpush1.msra.mxu0 %v1191
        %1338 = vmatprep.subr.mxu0 0.0
        %1339 = vmatpush1.msra.mxu0 %v1192
        %1340 = vmatprep.subr.mxu0 0.0
        %1341 = vmatpush1.msra.mxu0 %v1193
        %1342 = vmatprep.subr.mxu0 0.0
        %1343 = vmatpush1.msra.mxu0 %v1194
        %1344 = vmatprep.subr.mxu0 0.0
        %1345 = vmatpush1.msra.mxu0 %v1195
        %1346 = vmatprep.subr.mxu0 0.0
        %1347 = vmatpush1.msra.mxu0 %v1196
        %1348 = vmatprep.subr.mxu0 0.0
        %1349 = vmatpush1.msra.mxu0 %v1197
        %1350 = vmatprep.subr.mxu0 0.0
        %1351 = vmatpush1.msra.mxu0 0.0
        %1352 = vmatprep.subr.mxu0 0.0
        %1353 = vmatpush1.msra.mxu0 0.0
        %1354 = vmatprep.subr.mxu0 0.0
        %1355 = vmatpush1.msra.mxu0 0.0
        %1356 = vmatprep.subr.mxu0 0.0
        %1357 = vmatpush1.msra.mxu0 0.0
        %1358 = vmatprep.subr.mxu0 0.0
        %1359 = vmatpush1.msra.mxu0 0.0
        %1360 = vmatprep.subr.mxu0 0.0
        %1361 = vmatpush1.msra.mxu0 0.0
        %1362 = vmatprep.subr.mxu0 0.0
        %1363 = vmatpush1.msra.mxu0 0.0
        %1364 = vmatprep.subr.mxu0 0.0
        %1365 = vmatpush1.msra.mxu0 0.0
        %1366 = vmatprep.subr.mxu0 0.0
        %1367 = vmatpush1.msra.mxu0 0.0
        %1368 = vmatprep.subr.mxu0 0.0
        %1369 = vmatpush1.msra.mxu0 0.0
        %1370 = vmatprep.subr.mxu0 0.0
        %1371 = vmatpush1.msra.mxu0 0.0
        %1372 = vmatprep.subr.mxu0 0.0
        %1373 = vmatpush1.msra.mxu0 0.0
        %1374 = vmatprep.subr.mxu0 0.0
        %1375 = vmatpush1.msra.mxu0 0.0
        %1376 = vmatprep.subr.mxu0 0.0
        %1377 = vmatpush1.msra.mxu0 0.0
        %1378 = vmatprep.subr.mxu0 0.0
        %1379 = vmatpush1.msra.mxu0 0.0
        %1380 = vmatprep.subr.mxu0 0.0
        %1381 = vmatpush1.msra.mxu0 0.0
        %1382 = vmatprep.mubr.f32.mxu0 0.0
        %1383 = vmatmul.mubr.f32.gmra.mrb[0].mxu0 %v1176
        %v1384 = vpop.f32.mrb[0].mxu0
        %v1385 = vadd.f32 %v1300, %v1384
        %v1386 = vpop.f32.mrb[0].mxu0
        %1387 = vmatprep.mubr.f32.mxu0 0.0
        %1388 = vmatmul.mubr.f32.gmra.mrb[0].mxu0 %v1177
        %v1389 = vpop.f32.mrb[0].mxu0
        %v1390 = vadd.f32 %v1305, %v1389
        %v1391 = vpop.f32.mrb[0].mxu0
        %1392 = vmatprep.mubr.f32.mxu0 0.0
        %1393 = vmatmul.mubr.f32.gmra.mrb[0].mxu0 %v1178
        %v1394 = vpop.f32.mrb[0].mxu0
        %v1395 = vadd.f32 %v1310, %v1394
        %v1396 = vpop.f32.mrb[0].mxu0
        %1397 = vmatprep.mubr.f32.mxu0 0.0
        %1398 = vmatmul.mubr.f32.gmra.mrb[0].mxu0 %v1179
        %v1399 = vpop.f32.mrb[0].mxu0
        %v1400 = vadd.f32 %v1315, %v1399
        %v1401 = vpop.f32.mrb[0].mxu0
        %1402 = vdwg.mxu0
        %s1403 = scalar_lea.vmem [#allocation6], 896
        %v1404 = vld [vmem:[%s1403] sm:$0xff]
        %v1405 = vld [vmem:[%s1403 + $0x8] sm:$0xff]
        %v1406 = vld [vmem:[%s1403 + $0x10] sm:$0xff]
        %v1407 = vld [vmem:[%s1403 + $0x18] sm:$0xff]
        %v1408 = vld [vmem:[%s1403 + $0x20] sm:$0xff]
        %v1409 = vld [vmem:[%s1403 + $0x28] sm:$0xff]
        %v1410 = vld [vmem:[%s1403 + $0x30] sm:$0xff]
        %v1411 = vld [vmem:[%s1403 + $0x38] sm:$0xff]
        %v1412 = vld [vmem:[%s1403 + $0x40] sm:$0xff]
        %v1413 = vld [vmem:[%s1403 + $0x48] sm:$0xff]
        %v1414 = vld [vmem:[%s1403 + $0x50] sm:$0xff]
        %v1415 = vld [vmem:[%s1403 + $0x58] sm:$0xff]
        %v1416 = vld [vmem:[%s1403 + $0x60] sm:$0xff]
        %v1417 = vld [vmem:[%s1403 + $0x68] sm:$0xff]
        %v1418 = vld [vmem:[%s1403 + $0x70] sm:$0xff]
        %v1419 = vld [vmem:[%s1403 + $0x78] sm:$0xff]
        %v1420 = vrot.slane %v1176, 2
        %v1421 = vrot.slane %v1177, 2
        %v1422 = vsel %vm757, %v1420, %v1421
        %v1423 = vrot.slane %v1178, 2
        %v1424 = vsel %vm757, %v1421, %v1423
        %v1425 = vrot.slane %v1179, 2
        %v1426 = vsel %vm757, %v1423, %v1425
        %v1427 = vrot.slane %v1180, 2
        %v1428 = vsel %vm757, %v1425, %v1427
        %1433 = vmatprep.subr.mxu0 0.0
        %1434 = vmatpush1.msra.mxu0 %v1404
        %1435 = vmatprep.subr.mxu0 0.0
        %1436 = vmatpush1.msra.mxu0 %v1405
        %1437 = vmatprep.subr.mxu0 0.0
        %1438 = vmatpush1.msra.mxu0 %v1406
        %1439 = vmatprep.subr.mxu0 0.0
        %1440 = vmatpush1.msra.mxu0 %v1407
        %1441 = vmatprep.subr.mxu0 0.0
        %1442 = vmatpush1.msra.mxu0 %v1408
        %1443 = vmatprep.subr.mxu0 0.0
        %1444 = vmatpush1.msra.mxu0 %v1409
        %1445 = vmatprep.subr.mxu0 0.0
        %1446 = vmatpush1.msra.mxu0 %v1410
        %1447 = vmatprep.subr.mxu0 0.0
        %1448 = vmatpush1.msra.mxu0 %v1411
        %1449 = vmatprep.subr.mxu0 0.0
        %1450 = vmatpush1.msra.mxu0 %v1412
        %1451 = vmatprep.subr.mxu0 0.0
        %1452 = vmatpush1.msra.mxu0 %v1413
        %1453 = vmatprep.subr.mxu0 0.0
        %1454 = vmatpush1.msra.mxu0 %v1414
        %1455 = vmatprep.subr.mxu0 0.0
        %1456 = vmatpush1.msra.mxu0 %v1415
        %1457 = vmatprep.subr.mxu0 0.0
        %1458 = vmatpush1.msra.mxu0 %v1416
        %1459 = vmatprep.subr.mxu0 0.0
        %1460 = vmatpush1.msra.mxu0 %v1417
        %1461 = vmatprep.subr.mxu0 0.0
        %1462 = vmatpush1.msra.mxu0 %v1418
        %1463 = vmatprep.subr.mxu0 0.0
        %1464 = vmatpush1.msra.mxu0 %v1419
        %1465 = vmatprep.subr.mxu0 0.0
        %1466 = vmatpush1.msra.mxu0 0.0
        %1467 = vmatprep.subr.mxu0 0.0
        %1468 = vmatpush1.msra.mxu0 0.0
        %1469 = vmatprep.subr.mxu0 0.0
        %1470 = vmatpush1.msra.mxu0 0.0
        %1471 = vmatprep.subr.mxu0 0.0
        %1472 = vmatpush1.msra.mxu0 0.0
        %1473 = vmatprep.subr.mxu0 0.0
        %1474 = vmatpush1.msra.mxu0 0.0
        %1475 = vmatprep.subr.mxu0 0.0
        %1476 = vmatpush1.msra.mxu0 0.0
        %1477 = vmatprep.subr.mxu0 0.0
        %1478 = vmatpush1.msra.mxu0 0.0
        %1479 = vmatprep.subr.mxu0 0.0
        %1480 = vmatpush1.msra.mxu0 0.0
        %1481 = vmatprep.subr.mxu0 0.0
        %1482 = vmatpush1.msra.mxu0 0.0
        %1483 = vmatprep.subr.mxu0 0.0
        %1484 = vmatpush1.msra.mxu0 0.0
        %1485 = vmatprep.subr.mxu0 0.0
        %1486 = vmatpush1.msra.mxu0 0.0
        %1487 = vmatprep.subr.mxu0 0.0
        %1488 = vmatpush1.msra.mxu0 0.0
        %1489 = vmatprep.subr.mxu0 0.0
        %1490 = vmatpush1.msra.mxu0 0.0
        %1491 = vmatprep.subr.mxu0 0.0
        %1492 = vmatpush1.msra.mxu0 0.0
        %1493 = vmatprep.subr.mxu0 0.0
        %1494 = vmatpush1.msra.mxu0 0.0
        %1495 = vmatprep.subr.mxu0 0.0
        %1496 = vmatpush1.msra.mxu0 0.0
        %1497 = vmatprep.mubr.f32.mxu0 0.0
        %1498 = vmatmul.mubr.f32.gmra.mrb[0].mxu0 %v1422
        %v1499 = vpop.f32.mrb[0].mxu0
        %v1500 = vadd.f32 0.0, %v1499
        %v1501 = vpop.f32.mrb[0].mxu0
        %1502 = vmatprep.mubr.f32.mxu0 0.0
        %1503 = vmatmul.mubr.f32.gmra.mrb[0].mxu0 %v1424
        %v1504 = vpop.f32.mrb[0].mxu0
        %v1505 = vadd.f32 0.0, %v1504
        %v1506 = vpop.f32.mrb[0].mxu0
        %1507 = vmatprep.mubr.f32.mxu0 0.0
        %1508 = vmatmul.mubr.f32.gmra.mrb[0].mxu0 %v1426
        %v1509 = vpop.f32.mrb[0].mxu0
        %v1510 = vadd.f32 0.0, %v1509
        %v1511 = vpop.f32.mrb[0].mxu0
        %1512 = vmatprep.mubr.f32.mxu0 0.0
        %1513 = vmatmul.mubr.f32.gmra.mrb[0].mxu0 %v1428
        %v1514 = vpop.f32.mrb[0].mxu0
        %v1515 = vadd.f32 0.0, %v1514
        %v1516 = vpop.f32.mrb[0].mxu0
        %1517 = vdwg.mxu0
        %v1518 = vadd.f32 %v1385, %v1500
        %v1519 = vadd.f32 %v1390, %v1505
        %v1520 = vadd.f32 %v1395, %v1510
        %v1521 = vadd.f32 %v1400, %v1515
        %s1522 = scalar_lea.vmem [#allocation6], 1024
        %v1523 = vld [vmem:[%s1522] sm:$0xff]
        %v1524 = vld [vmem:[%s1522 + $0x8] sm:$0xff]
        %v1525 = vld [vmem:[%s1522 + $0x10] sm:$0xff]
        %v1526 = vld [vmem:[%s1522 + $0x18] sm:$0xff]
        %v1527 = vld [vmem:[%s1522 + $0x20] sm:$0xff]
        %v1528 = vld [vmem:[%s1522 + $0x28] sm:$0xff]
        %v1529 = vld [vmem:[%s1522 + $0x30] sm:$0xff]
        %v1530 = vld [vmem:[%s1522 + $0x38] sm:$0xff]
        %v1531 = vld [vmem:[%s1522 + $0x40] sm:$0xff]
        %v1532 = vld [vmem:[%s1522 + $0x48] sm:$0xff]
        %v1533 = vld [vmem:[%s1522 + $0x50] sm:$0xff]
        %v1534 = vld [vmem:[%s1522 + $0x58] sm:$0xff]
        %v1535 = vld [vmem:[%s1522 + $0x60] sm:$0xff]
        %v1536 = vld [vmem:[%s1522 + $0x68] sm:$0xff]
        %v1537 = vld [vmem:[%s1522 + $0x70] sm:$0xff]
        %v1538 = vld [vmem:[%s1522 + $0x78] sm:$0xff]
        %v1539 = vrot.slane %v1176, 3
        %v1540 = vrot.slane %v1177, 3
        %v1541 = vsel %vm884, %v1539, %v1540
        %v1542 = vrot.slane %v1178, 3
        %v1543 = vsel %vm884, %v1540, %v1542
        %v1544 = vrot.slane %v1179, 3
        %v1545 = vsel %vm884, %v1542, %v1544
        %v1546 = vrot.slane %v1180, 3
        %v1547 = vsel %vm884, %v1544, %v1546
        %1552 = vmatprep.subr.mxu0 0.0
        %1553 = vmatpush1.msra.mxu0 %v1523
        %1554 = vmatprep.subr.mxu0 0.0
        %1555 = vmatpush1.msra.mxu0 %v1524
        %1556 = vmatprep.subr.mxu0 0.0
        %1557 = vmatpush1.msra.mxu0 %v1525
        %1558 = vmatprep.subr.mxu0 0.0
        %1559 = vmatpush1.msra.mxu0 %v1526
        %1560 = vmatprep.subr.mxu0 0.0
        %1561 = vmatpush1.msra.mxu0 %v1527
        %1562 = vmatprep.subr.mxu0 0.0
        %1563 = vmatpush1.msra.mxu0 %v1528
        %1564 = vmatprep.subr.mxu0 0.0
        %1565 = vmatpush1.msra.mxu0 %v1529
        %1566 = vmatprep.subr.mxu0 0.0
        %1567 = vmatpush1.msra.mxu0 %v1530
        %1568 = vmatprep.subr.mxu0 0.0
        %1569 = vmatpush1.msra.mxu0 %v1531
        %1570 = vmatprep.subr.mxu0 0.0
        %1571 = vmatpush1.msra.mxu0 %v1532
        %1572 = vmatprep.subr.mxu0 0.0
        %1573 = vmatpush1.msra.mxu0 %v1533
        %1574 = vmatprep.subr.mxu0 0.0
        %1575 = vmatpush1.msra.mxu0 %v1534
        %1576 = vmatprep.subr.mxu0 0.0
        %1577 = vmatpush1.msra.mxu0 %v1535
        %1578 = vmatprep.subr.mxu0 0.0
        %1579 = vmatpush1.msra.mxu0 %v1536
        %1580 = vmatprep.subr.mxu0 0.0
        %1581 = vmatpush1.msra.mxu0 %v1537
        %1582 = vmatprep.subr.mxu0 0.0
        %1583 = vmatpush1.msra.mxu0 %v1538
        %1584 = vmatprep.subr.mxu0 0.0
        %1585 = vmatpush1.msra.mxu0 0.0
        %1586 = vmatprep.subr.mxu0 0.0
        %1587 = vmatpush1.msra.mxu0 0.0
        %1588 = vmatprep.subr.mxu0 0.0
        %1589 = vmatpush1.msra.mxu0 0.0
        %1590 = vmatprep.subr.mxu0 0.0
        %1591 = vmatpush1.msra.mxu0 0.0
        %1592 = vmatprep.subr.mxu0 0.0
        %1593 = vmatpush1.msra.mxu0 0.0
        %1594 = vmatprep.subr.mxu0 0.0
        %1595 = vmatpush1.msra.mxu0 0.0
        %1596 = vmatprep.subr.mxu0 0.0
        %1597 = vmatpush1.msra.mxu0 0.0
        %1598 = vmatprep.subr.mxu0 0.0
        %1599 = vmatpush1.msra.mxu0 0.0
        %1600 = vmatprep.subr.mxu0 0.0
        %1601 = vmatpush1.msra.mxu0 0.0
        %1602 = vmatprep.subr.mxu0 0.0
        %1603 = vmatpush1.msra.mxu0 0.0
        %1604 = vmatprep.subr.mxu0 0.0
        %1605 = vmatpush1.msra.mxu0 0.0
        %1606 = vmatprep.subr.mxu0 0.0
        %1607 = vmatpush1.msra.mxu0 0.0
        %1608 = vmatprep.subr.mxu0 0.0
        %1609 = vmatpush1.msra.mxu0 0.0
        %1610 = vmatprep.subr.mxu0 0.0
        %1611 = vmatpush1.msra.mxu0 0.0
        %1612 = vmatprep.subr.mxu0 0.0
        %1613 = vmatpush1.msra.mxu0 0.0
        %1614 = vmatprep.subr.mxu0 0.0
        %1615 = vmatpush1.msra.mxu0 0.0
        %1616 = vmatprep.mubr.f32.mxu0 0.0
        %1617 = vmatmul.mubr.f32.gmra.mrb[0].mxu0 %v1541
        %v1618 = vpop.f32.mrb[0].mxu0
        %v1619 = vadd.f32 0.0, %v1618
        %v1620 = vpop.f32.mrb[0].mxu0
        %1621 = vmatprep.mubr.f32.mxu0 0.0
        %1622 = vmatmul.mubr.f32.gmra.mrb[0].mxu0 %v1543
        %v1623 = vpop.f32.mrb[0].mxu0
        %v1624 = vadd.f32 0.0, %v1623
        %v1625 = vpop.f32.mrb[0].mxu0
        %1626 = vmatprep.mubr.f32.mxu0 0.0
        %1627 = vmatmul.mubr.f32.gmra.mrb[0].mxu0 %v1545
        %v1628 = vpop.f32.mrb[0].mxu0
        %v1629 = vadd.f32 0.0, %v1628
        %v1630 = vpop.f32.mrb[0].mxu0
        %1631 = vmatprep.mubr.f32.mxu0 0.0
        %1632 = vmatmul.mubr.f32.gmra.mrb[0].mxu0 %v1547
        %v1633 = vpop.f32.mrb[0].mxu0
        %v1634 = vadd.f32 0.0, %v1633
        %v1635 = vpop.f32.mrb[0].mxu0
        %1636 = vdwg.mxu0
        %v1637 = vadd.f32 %v1518, %v1619
        %v1638 = vadd.f32 %v1519, %v1624
        %v1639 = vadd.f32 %v1520, %v1629
        %v1640 = vadd.f32 %v1521, %v1634
        %s1641 = scalar_lea.vmem [#allocation6], 1152
        %v1642 = vld [vmem:[%s1641] sm:$0xff]
        %v1643 = vld [vmem:[%s1641 + $0x8] sm:$0xff]
        %v1644 = vld [vmem:[%s1641 + $0x10] sm:$0xff]
        %v1645 = vld [vmem:[%s1641 + $0x18] sm:$0xff]
        %v1646 = vld [vmem:[%s1641 + $0x20] sm:$0xff]
        %v1647 = vld [vmem:[%s1641 + $0x28] sm:$0xff]
        %v1648 = vld [vmem:[%s1641 + $0x30] sm:$0xff]
        %v1649 = vld [vmem:[%s1641 + $0x38] sm:$0xff]
        %v1650 = vld [vmem:[%s1641 + $0x40] sm:$0xff]
        %v1651 = vld [vmem:[%s1641 + $0x48] sm:$0xff]
        %v1652 = vld [vmem:[%s1641 + $0x50] sm:$0xff]
        %v1653 = vld [vmem:[%s1641 + $0x58] sm:$0xff]
        %v1654 = vld [vmem:[%s1641 + $0x60] sm:$0xff]
        %v1655 = vld [vmem:[%s1641 + $0x68] sm:$0xff]
        %v1656 = vld [vmem:[%s1641 + $0x70] sm:$0xff]
        %v1657 = vld [vmem:[%s1641 + $0x78] sm:$0xff]
        %v1658 = vrot.slane %v1176, 4
        %v1659 = vrot.slane %v1177, 4
        %v1660 = vsel %vm1011, %v1658, %v1659
        %v1661 = vrot.slane %v1178, 4
        %v1662 = vsel %vm1011, %v1659, %v1661
        %v1663 = vrot.slane %v1179, 4
        %v1664 = vsel %vm1011, %v1661, %v1663
        %v1665 = vrot.slane %v1180, 4
        %v1666 = vsel %vm1011, %v1663, %v1665
        %1671 = vmatprep.subr.mxu0 0.0
        %1672 = vmatpush1.msra.mxu0 %v1642
        %1673 = vmatprep.subr.mxu0 0.0
        %1674 = vmatpush1.msra.mxu0 %v1643
        %1675 = vmatprep.subr.mxu0 0.0
        %1676 = vmatpush1.msra.mxu0 %v1644
        %1677 = vmatprep.subr.mxu0 0.0
        %1678 = vmatpush1.msra.mxu0 %v1645
        %1679 = vmatprep.subr.mxu0 0.0
        %1680 = vmatpush1.msra.mxu0 %v1646
        %1681 = vmatprep.subr.mxu0 0.0
        %1682 = vmatpush1.msra.mxu0 %v1647
        %1683 = vmatprep.subr.mxu0 0.0
        %1684 = vmatpush1.msra.mxu0 %v1648
        %1685 = vmatprep.subr.mxu0 0.0
        %1686 = vmatpush1.msra.mxu0 %v1649
        %1687 = vmatprep.subr.mxu0 0.0
        %1688 = vmatpush1.msra.mxu0 %v1650
        %1689 = vmatprep.subr.mxu0 0.0
        %1690 = vmatpush1.msra.mxu0 %v1651
        %1691 = vmatprep.subr.mxu0 0.0
        %1692 = vmatpush1.msra.mxu0 %v1652
        %1693 = vmatprep.subr.mxu0 0.0
        %1694 = vmatpush1.msra.mxu0 %v1653
        %1695 = vmatprep.subr.mxu0 0.0
        %1696 = vmatpush1.msra.mxu0 %v1654
        %1697 = vmatprep.subr.mxu0 0.0
        %1698 = vmatpush1.msra.mxu0 %v1655
        %1699 = vmatprep.subr.mxu0 0.0
        %1700 = vmatpush1.msra.mxu0 %v1656
        %1701 = vmatprep.subr.mxu0 0.0
        %1702 = vmatpush1.msra.mxu0 %v1657
        %1703 = vmatprep.subr.mxu0 0.0
        %1704 = vmatpush1.msra.mxu0 0.0
        %1705 = vmatprep.subr.mxu0 0.0
        %1706 = vmatpush1.msra.mxu0 0.0
        %1707 = vmatprep.subr.mxu0 0.0
        %1708 = vmatpush1.msra.mxu0 0.0
        %1709 = vmatprep.subr.mxu0 0.0
        %1710 = vmatpush1.msra.mxu0 0.0
        %1711 = vmatprep.subr.mxu0 0.0
        %1712 = vmatpush1.msra.mxu0 0.0
        %1713 = vmatprep.subr.mxu0 0.0
        %1714 = vmatpush1.msra.mxu0 0.0
        %1715 = vmatprep.subr.mxu0 0.0
        %1716 = vmatpush1.msra.mxu0 0.0
        %1717 = vmatprep.subr.mxu0 0.0
        %1718 = vmatpush1.msra.mxu0 0.0
        %1719 = vmatprep.subr.mxu0 0.0
        %1720 = vmatpush1.msra.mxu0 0.0
        %1721 = vmatprep.subr.mxu0 0.0
        %1722 = vmatpush1.msra.mxu0 0.0
        %1723 = vmatprep.subr.mxu0 0.0
        %1724 = vmatpush1.msra.mxu0 0.0
        %1725 = vmatprep.subr.mxu0 0.0
        %1726 = vmatpush1.msra.mxu0 0.0
        %1727 = vmatprep.subr.mxu0 0.0
        %1728 = vmatpush1.msra.mxu0 0.0
        %1729 = vmatprep.subr.mxu0 0.0
        %1730 = vmatpush1.msra.mxu0 0.0
        %1731 = vmatprep.subr.mxu0 0.0
        %1732 = vmatpush1.msra.mxu0 0.0
        %1733 = vmatprep.subr.mxu0 0.0
        %1734 = vmatpush1.msra.mxu0 0.0
        %1735 = vmatprep.mubr.f32.mxu0 0.0
        %1736 = vmatmul.mubr.f32.gmra.mrb[0].mxu0 %v1660
        %v1737 = vpop.f32.mrb[0].mxu0
        %v1738 = vadd.f32 0.0, %v1737
        %v1739 = vpop.f32.mrb[0].mxu0
        %1740 = vmatprep.mubr.f32.mxu0 0.0
        %1741 = vmatmul.mubr.f32.gmra.mrb[0].mxu0 %v1662
        %v1742 = vpop.f32.mrb[0].mxu0
        %v1743 = vadd.f32 0.0, %v1742
        %v1744 = vpop.f32.mrb[0].mxu0
        %1745 = vmatprep.mubr.f32.mxu0 0.0
        %1746 = vmatmul.mubr.f32.gmra.mrb[0].mxu0 %v1664
        %v1747 = vpop.f32.mrb[0].mxu0
        %v1748 = vadd.f32 0.0, %v1747
        %v1749 = vpop.f32.mrb[0].mxu0
        %1750 = vmatprep.mubr.f32.mxu0 0.0
        %1751 = vmatmul.mubr.f32.gmra.mrb[0].mxu0 %v1666
        %v1752 = vpop.f32.mrb[0].mxu0
        %v1753 = vadd.f32 0.0, %v1752
        %v1754 = vpop.f32.mrb[0].mxu0
        %1755 = vdwg.mxu0
        %v1756 = vadd.f32 %v1637, %v1738
        %v1757 = vadd.f32 %v1638, %v1743
        %v1758 = vadd.f32 %v1639, %v1748
        %v1759 = vadd.f32 %v1640, %v1753
        %v1760 = vlaneseq
        %v1761 = vshrl.u32 %v1760, 7
        %v1762 = vsub.s32 1, %v1761
        %v1763 = vrot.slane %v505, %v1762
        %v1764 = vmul.f32 %v1756, %v1763
        %v1765 = vmul.f32 %v1757, %v1763
        %v1766 = vmul.f32 %v1758, %v1763
        %v1767 = vmul.f32 %v1759, %v1763
        %v1768 = vlaneseq
        %v1769 = vshrl.u32 %v1768, 7
        %v1770 = vsub.s32 1, %v1769
        %v1771 = vrot.slane %v506, %v1770
        %v1772 = vadd.f32 %v1764, %v1771
        %v1773 = vadd.f32 %v1765, %v1771
        %v1774 = vadd.f32 %v1766, %v1771
        %v1775 = vadd.f32 %v1767, %v1771
        %v1776 = vtanh.pop %v1772
        %v1777 = vtanh.pop %v1773
        %v1778 = vtanh.pop %v1774
        %v1779 = vtanh.pop %v1775
        %s1780 = sadd.s32 %s342, 4294967290
        %v1781 = vstv %s1780
        %v1782 = vadd.s32 %v464, %v1781
        %v1783 = vadd.s32 %v465, %v1781
        %v1784 = vadd.s32 %v466, %v1781
        %v1785 = vadd.s32 %v467, %v1781
        %vm1786 = vcmp.ge.s32.totalorder %v1782, 0
        %vm1787 = vcmp.ge.s32.totalorder %v1783, 0
        %vm1788 = vcmp.ge.s32.totalorder %v1784, 0
        %vm1789 = vcmp.ge.s32.totalorder %v1785, 0
        %vm1790 = vcmp.lt.s32.totalorder %v1782, 16
        %vm1791 = vcmp.lt.s32.totalorder %v1783, 16
        %vm1792 = vcmp.lt.s32.totalorder %v1784, 16
        %vm1793 = vcmp.lt.s32.totalorder %v1785, 16
        %vm1794 = vmand %vm1786, %vm1790
        %vm1795 = vmand %vm1787, %vm1791
        %vm1796 = vmand %vm1788, %vm1792
        %vm1797 = vmand %vm1789, %vm1793
        %v1798 = vsel %vm1794, 1, 0
        %v1799 = vsel %vm1795, 1, 0
        %v1800 = vsel %vm1796, 1, 0
        %v1801 = vsel %vm1797, 1, 0
        %vm1802 = vcmp.eq.s32.totalorder %v1798, 1
        %vm1803 = vcmp.eq.s32.totalorder %v1799, 1
        %vm1804 = vcmp.eq.s32.totalorder %v1800, 1
        %vm1805 = vcmp.eq.s32.totalorder %v1801, 1
        %v1806 = vsel %vm1802, %v1776, 0.0
        %v1807 = vsel %vm1803, %v1777, 0.0
        %v1808 = vsel %vm1804, %v1778, 0.0
        %v1809 = vsel %vm1805, %v1779, 0.0
        %s1810 = scalar_lea.vmem [#allocation6], 1280
        %v1811 = vld [vmem:[%s1810] sm:$0xff]
        %v1812 = vld [vmem:[%s1810 + $0x8] sm:$0xff]
        %v1813 = vld [vmem:[%s1810 + $0x10] sm:$0xff]
        %v1814 = vld [vmem:[%s1810 + $0x18] sm:$0xff]
        %v1815 = vld [vmem:[%s1810 + $0x20] sm:$0xff]
        %v1816 = vld [vmem:[%s1810 + $0x28] sm:$0xff]
        %v1817 = vld [vmem:[%s1810 + $0x30] sm:$0xff]
        %v1818 = vld [vmem:[%s1810 + $0x38] sm:$0xff]
        %v1819 = vld [vmem:[%s1810 + $0x40] sm:$0xff]
        %v1820 = vld [vmem:[%s1810 + $0x48] sm:$0xff]
        %v1821 = vld [vmem:[%s1810 + $0x50] sm:$0xff]
        %v1822 = vld [vmem:[%s1810 + $0x58] sm:$0xff]
        %v1823 = vld [vmem:[%s1810 + $0x60] sm:$0xff]
        %v1824 = vld [vmem:[%s1810 + $0x68] sm:$0xff]
        %v1825 = vld [vmem:[%s1810 + $0x70] sm:$0xff]
        %v1826 = vld [vmem:[%s1810 + $0x78] sm:$0xff]
        %s1827 = scalar_lea.vmem [#allocation6], 1408
        %v1828 = vld [vmem:[%s1827] sm:$0xff]
        %v1829 = vld [vmem:[%s1827 + $0x8] sm:$0xff]
        %v1830 = vld [vmem:[%s1827 + $0x10] sm:$0xff]
        %v1831 = vld [vmem:[%s1827 + $0x18] sm:$0xff]
        %v1832 = vld [vmem:[%s1827 + $0x20] sm:$0xff]
        %v1833 = vld [vmem:[%s1827 + $0x28] sm:$0xff]
        %v1834 = vld [vmem:[%s1827 + $0x30] sm:$0xff]
        %v1835 = vld [vmem:[%s1827 + $0x38] sm:$0xff]
        %v1836 = vld [vmem:[%s1827 + $0x40] sm:$0xff]
        %v1837 = vld [vmem:[%s1827 + $0x48] sm:$0xff]
        %v1838 = vld [vmem:[%s1827 + $0x50] sm:$0xff]
        %v1839 = vld [vmem:[%s1827 + $0x58] sm:$0xff]
        %v1840 = vld [vmem:[%s1827 + $0x60] sm:$0xff]
        %v1841 = vld [vmem:[%s1827 + $0x68] sm:$0xff]
        %v1842 = vld [vmem:[%s1827 + $0x70] sm:$0xff]
        %v1843 = vld [vmem:[%s1827 + $0x78] sm:$0xff]
        %v1848 = vrot.slane %v1806, 1
        %v1849 = vrot.slane %v1807, 1
        %v1850 = vsel %vm545, %v1848, %v1849
        %v1851 = vrot.slane %v1808, 1
        %v1852 = vsel %vm545, %v1849, %v1851
        %v1853 = vrot.slane %v1809, 1
        %v1854 = vsel %vm545, %v1851, %v1853
        %1859 = vmatprep.subr.mxu0 0.0
        %1860 = vmatpush1.msra.mxu0 %v1828
        %1861 = vmatprep.subr.mxu0 0.0
        %1862 = vmatpush1.msra.mxu0 %v1829
        %1863 = vmatprep.subr.mxu0 0.0
        %1864 = vmatpush1.msra.mxu0 %v1830
        %1865 = vmatprep.subr.mxu0 0.0
        %1866 = vmatpush1.msra.mxu0 %v1831
        %1867 = vmatprep.subr.mxu0 0.0
        %1868 = vmatpush1.msra.mxu0 %v1832
        %1869 = vmatprep.subr.mxu0 0.0
        %1870 = vmatpush1.msra.mxu0 %v1833
        %1871 = vmatprep.subr.mxu0 0.0
        %1872 = vmatpush1.msra.mxu0 %v1834
        %1873 = vmatprep.subr.mxu0 0.0
        %1874 = vmatpush1.msra.mxu0 %v1835
        %1875 = vmatprep.subr.mxu0 0.0
        %1876 = vmatpush1.msra.mxu0 %v1836
        %1877 = vmatprep.subr.mxu0 0.0
        %1878 = vmatpush1.msra.mxu0 %v1837
        %1879 = vmatprep.subr.mxu0 0.0
        %1880 = vmatpush1.msra.mxu0 %v1838
        %1881 = vmatprep.subr.mxu0 0.0
        %1882 = vmatpush1.msra.mxu0 %v1839
        %1883 = vmatprep.subr.mxu0 0.0
        %1884 = vmatpush1.msra.mxu0 %v1840
        %1885 = vmatprep.subr.mxu0 0.0
        %1886 = vmatpush1.msra.mxu0 %v1841
        %1887 = vmatprep.subr.mxu0 0.0
        %1888 = vmatpush1.msra.mxu0 %v1842
        %1889 = vmatprep.subr.mxu0 0.0
        %1890 = vmatpush1.msra.mxu0 %v1843
        %1891 = vmatprep.subr.mxu0 0.0
        %1892 = vmatpush1.msra.mxu0 0.0
        %1893 = vmatprep.subr.mxu0 0.0
        %1894 = vmatpush1.msra.mxu0 0.0
        %1895 = vmatprep.subr.mxu0 0.0
        %1896 = vmatpush1.msra.mxu0 0.0
        %1897 = vmatprep.subr.mxu0 0.0
        %1898 = vmatpush1.msra.mxu0 0.0
        %1899 = vmatprep.subr.mxu0 0.0
        %1900 = vmatpush1.msra.mxu0 0.0
        %1901 = vmatprep.subr.mxu0 0.0
        %1902 = vmatpush1.msra.mxu0 0.0
        %1903 = vmatprep.subr.mxu0 0.0
        %1904 = vmatpush1.msra.mxu0 0.0
        %1905 = vmatprep.subr.mxu0 0.0
        %1906 = vmatpush1.msra.mxu0 0.0
        %1907 = vmatprep.subr.mxu0 0.0
        %1908 = vmatpush1.msra.mxu0 0.0
        %1909 = vmatprep.subr.mxu0 0.0
        %1910 = vmatpush1.msra.mxu0 0.0
        %1911 = vmatprep.subr.mxu0 0.0
        %1912 = vmatpush1.msra.mxu0 0.0
        %1913 = vmatprep.subr.mxu0 0.0
        %1914 = vmatpush1.msra.mxu0 0.0
        %1915 = vmatprep.subr.mxu0 0.0
        %1916 = vmatpush1.msra.mxu0 0.0
        %1917 = vmatprep.subr.mxu0 0.0
        %1918 = vmatpush1.msra.mxu0 0.0
        %1919 = vmatprep.subr.mxu0 0.0
        %1920 = vmatpush1.msra.mxu0 0.0
        %1921 = vmatprep.subr.mxu0 0.0
        %1922 = vmatpush1.msra.mxu0 0.0
        %1923 = vmatprep.mubr.f32.mxu0 0.0
        %1924 = vmatmul.mubr.f32.gmra.mrb[0].mxu0 %v1850
        %v1925 = vpop.f32.mrb[0].mxu0
        %v1926 = vadd.f32 0.0, %v1925
        %v1927 = vpop.f32.mrb[0].mxu0
        %1928 = vmatprep.mubr.f32.mxu0 0.0
        %1929 = vmatmul.mubr.f32.gmra.mrb[0].mxu0 %v1852
        %v1930 = vpop.f32.mrb[0].mxu0
        %v1931 = vadd.f32 0.0, %v1930
        %v1932 = vpop.f32.mrb[0].mxu0
        %1933 = vmatprep.mubr.f32.mxu0 0.0
        %1934 = vmatmul.mubr.f32.gmra.mrb[0].mxu0 %v1854
        %v1935 = vpop.f32.mrb[0].mxu0
        %v1936 = vadd.f32 0.0, %v1935
        %v1937 = vpop.f32.mrb[0].mxu0
        %1938 = vmatprep.mubr.f32.mxu0 0.0
        %1939 = vmatmul.mubr.f32.gmra.mrb[0].mxu0 %v1853
        %v1940 = vpop.f32.mrb[0].mxu0
        %v1941 = vadd.f32 0.0, %v1940
        %v1942 = vpop.f32.mrb[0].mxu0
        %1943 = vdwg.mxu0
        %1944 = vmatprep.subr.mxu0 0.0
        %1945 = vmatpush1.msra.mxu0 %v1811
        %1946 = vmatprep.subr.mxu0 0.0
        %1947 = vmatpush1.msra.mxu0 %v1812
        %1948 = vmatprep.subr.mxu0 0.0
        %1949 = vmatpush1.msra.mxu0 %v1813
        %1950 = vmatprep.subr.mxu0 0.0
        %1951 = vmatpush1.msra.mxu0 %v1814
        %1952 = vmatprep.subr.mxu0 0.0
        %1953 = vmatpush1.msra.mxu0 %v1815
        %1954 = vmatprep.subr.mxu0 0.0
        %1955 = vmatpush1.msra.mxu0 %v1816
        %1956 = vmatprep.subr.mxu0 0.0
        %1957 = vmatpush1.msra.mxu0 %v1817
        %1958 = vmatprep.subr.mxu0 0.0
        %1959 = vmatpush1.msra.mxu0 %v1818
        %1960 = vmatprep.subr.mxu0 0.0
        %1961 = vmatpush1.msra.mxu0 %v1819
        %1962 = vmatprep.subr.mxu0 0.0
        %1963 = vmatpush1.msra.mxu0 %v1820
        %1964 = vmatprep.subr.mxu0 0.0
        %1965 = vmatpush1.msra.mxu0 %v1821
        %1966 = vmatprep.subr.mxu0 0.0
        %1967 = vmatpush1.msra.mxu0 %v1822
        %1968 = vmatprep.subr.mxu0 0.0
        %1969 = vmatpush1.msra.mxu0 %v1823
        %1970 = vmatprep.subr.mxu0 0.0
        %1971 = vmatpush1.msra.mxu0 %v1824
        %1972 = vmatprep.subr.mxu0 0.0
        %1973 = vmatpush1.msra.mxu0 %v1825
        %1974 = vmatprep.subr.mxu0 0.0
        %1975 = vmatpush1.msra.mxu0 %v1826
        %1976 = vmatprep.subr.mxu0 0.0
        %1977 = vmatpush1.msra.mxu0 0.0
        %1978 = vmatprep.subr.mxu0 0.0
        %1979 = vmatpush1.msra.mxu0 0.0
        %1980 = vmatprep.subr.mxu0 0.0
        %1981 = vmatpush1.msra.mxu0 0.0
        %1982 = vmatprep.subr.mxu0 0.0
        %1983 = vmatpush1.msra.mxu0 0.0
        %1984 = vmatprep.subr.mxu0 0.0
        %1985 = vmatpush1.msra.mxu0 0.0
        %1986 = vmatprep.subr.mxu0 0.0
        %1987 = vmatpush1.msra.mxu0 0.0
        %1988 = vmatprep.subr.mxu0 0.0
        %1989 = vmatpush1.msra.mxu0 0.0
        %1990 = vmatprep.subr.mxu0 0.0
        %1991 = vmatpush1.msra.mxu0 0.0
        %1992 = vmatprep.subr.mxu0 0.0
        %1993 = vmatpush1.msra.mxu0 0.0
        %1994 = vmatprep.subr.mxu0 0.0
        %1995 = vmatpush1.msra.mxu0 0.0
        %1996 = vmatprep.subr.mxu0 0.0
        %1997 = vmatpush1.msra.mxu0 0.0
        %1998 = vmatprep.subr.mxu0 0.0
        %1999 = vmatpush1.msra.mxu0 0.0
        %2000 = vmatprep.subr.mxu0 0.0
        %2001 = vmatpush1.msra.mxu0 0.0
        %2002 = vmatprep.subr.mxu0 0.0
        %2003 = vmatpush1.msra.mxu0 0.0
        %2004 = vmatprep.subr.mxu0 0.0
        %2005 = vmatpush1.msra.mxu0 0.0
        %2006 = vmatprep.subr.mxu0 0.0
        %2007 = vmatpush1.msra.mxu0 0.0
        %2008 = vmatprep.mubr.f32.mxu0 0.0
        %2009 = vmatmul.mubr.f32.gmra.mrb[0].mxu0 %v1806
        %v2010 = vpop.f32.mrb[0].mxu0
        %v2011 = vadd.f32 %v1926, %v2010
        %v2012 = vpop.f32.mrb[0].mxu0
        %2013 = vmatprep.mubr.f32.mxu0 0.0
        %2014 = vmatmul.mubr.f32.gmra.mrb[0].mxu0 %v1807
        %v2015 = vpop.f32.mrb[0].mxu0
        %v2016 = vadd.f32 %v1931, %v2015
        %v2017 = vpop.f32.mrb[0].mxu0
        %2018 = vmatprep.mubr.f32.mxu0 0.0
        %2019 = vmatmul.mubr.f32.gmra.mrb[0].mxu0 %v1808
        %v2020 = vpop.f32.mrb[0].mxu0
        %v2021 = vadd.f32 %v1936, %v2020
        %v2022 = vpop.f32.mrb[0].mxu0
        %2023 = vmatprep.mubr.f32.mxu0 0.0
        %2024 = vmatmul.mubr.f32.gmra.mrb[0].mxu0 %v1809
        %v2025 = vpop.f32.mrb[0].mxu0
        %v2026 = vadd.f32 %v1941, %v2025
        %v2027 = vpop.f32.mrb[0].mxu0
        %2028 = vdwg.mxu0
        %s2029 = scalar_lea.vmem [#allocation6], 1536
        %v2030 = vld [vmem:[%s2029] sm:$0xff]
        %v2031 = vld [vmem:[%s2029 + $0x8] sm:$0xff]
        %v2032 = vld [vmem:[%s2029 + $0x10] sm:$0xff]
        %v2033 = vld [vmem:[%s2029 + $0x18] sm:$0xff]
        %v2034 = vld [vmem:[%s2029 + $0x20] sm:$0xff]
        %v2035 = vld [vmem:[%s2029 + $0x28] sm:$0xff]
        %v2036 = vld [vmem:[%s2029 + $0x30] sm:$0xff]
        %v2037 = vld [vmem:[%s2029 + $0x38] sm:$0xff]
        %v2038 = vld [vmem:[%s2029 + $0x40] sm:$0xff]
        %v2039 = vld [vmem:[%s2029 + $0x48] sm:$0xff]
        %v2040 = vld [vmem:[%s2029 + $0x50] sm:$0xff]
        %v2041 = vld [vmem:[%s2029 + $0x58] sm:$0xff]
        %v2042 = vld [vmem:[%s2029 + $0x60] sm:$0xff]
        %v2043 = vld [vmem:[%s2029 + $0x68] sm:$0xff]
        %v2044 = vld [vmem:[%s2029 + $0x70] sm:$0xff]
        %v2045 = vld [vmem:[%s2029 + $0x78] sm:$0xff]
        %v2046 = vrot.slane %v1806, 2
        %v2047 = vrot.slane %v1807, 2
        %v2048 = vsel %vm757, %v2046, %v2047
        %v2049 = vrot.slane %v1808, 2
        %v2050 = vsel %vm757, %v2047, %v2049
        %v2051 = vrot.slane %v1809, 2
        %v2052 = vsel %vm757, %v2049, %v2051
        %2057 = vmatprep.subr.mxu0 0.0
        %2058 = vmatpush1.msra.mxu0 %v2030
        %2059 = vmatprep.subr.mxu0 0.0
        %2060 = vmatpush1.msra.mxu0 %v2031
        %2061 = vmatprep.subr.mxu0 0.0
        %2062 = vmatpush1.msra.mxu0 %v2032
        %2063 = vmatprep.subr.mxu0 0.0
        %2064 = vmatpush1.msra.mxu0 %v2033
        %2065 = vmatprep.subr.mxu0 0.0
        %2066 = vmatpush1.msra.mxu0 %v2034
        %2067 = vmatprep.subr.mxu0 0.0
        %2068 = vmatpush1.msra.mxu0 %v2035
        %2069 = vmatprep.subr.mxu0 0.0
        %2070 = vmatpush1.msra.mxu0 %v2036
        %2071 = vmatprep.subr.mxu0 0.0
        %2072 = vmatpush1.msra.mxu0 %v2037
        %2073 = vmatprep.subr.mxu0 0.0
        %2074 = vmatpush1.msra.mxu0 %v2038
        %2075 = vmatprep.subr.mxu0 0.0
        %2076 = vmatpush1.msra.mxu0 %v2039
        %2077 = vmatprep.subr.mxu0 0.0
        %2078 = vmatpush1.msra.mxu0 %v2040
        %2079 = vmatprep.subr.mxu0 0.0
        %2080 = vmatpush1.msra.mxu0 %v2041
        %2081 = vmatprep.subr.mxu0 0.0
        %2082 = vmatpush1.msra.mxu0 %v2042
        %2083 = vmatprep.subr.mxu0 0.0
        %2084 = vmatpush1.msra.mxu0 %v2043
        %2085 = vmatprep.subr.mxu0 0.0
        %2086 = vmatpush1.msra.mxu0 %v2044
        %2087 = vmatprep.subr.mxu0 0.0
        %2088 = vmatpush1.msra.mxu0 %v2045
        %2089 = vmatprep.subr.mxu0 0.0
        %2090 = vmatpush1.msra.mxu0 0.0
        %2091 = vmatprep.subr.mxu0 0.0
        %2092 = vmatpush1.msra.mxu0 0.0
        %2093 = vmatprep.subr.mxu0 0.0
        %2094 = vmatpush1.msra.mxu0 0.0
        %2095 = vmatprep.subr.mxu0 0.0
        %2096 = vmatpush1.msra.mxu0 0.0
        %2097 = vmatprep.subr.mxu0 0.0
        %2098 = vmatpush1.msra.mxu0 0.0
        %2099 = vmatprep.subr.mxu0 0.0
        %2100 = vmatpush1.msra.mxu0 0.0
        %2101 = vmatprep.subr.mxu0 0.0
        %2102 = vmatpush1.msra.mxu0 0.0
        %2103 = vmatprep.subr.mxu0 0.0
        %2104 = vmatpush1.msra.mxu0 0.0
        %2105 = vmatprep.subr.mxu0 0.0
        %2106 = vmatpush1.msra.mxu0 0.0
        %2107 = vmatprep.subr.mxu0 0.0
        %2108 = vmatpush1.msra.mxu0 0.0
        %2109 = vmatprep.subr.mxu0 0.0
        %2110 = vmatpush1.msra.mxu0 0.0
        %2111 = vmatprep.subr.mxu0 0.0
        %2112 = vmatpush1.msra.mxu0 0.0
        %2113 = vmatprep.subr.mxu0 0.0
        %2114 = vmatpush1.msra.mxu0 0.0
        %2115 = vmatprep.subr.mxu0 0.0
        %2116 = vmatpush1.msra.mxu0 0.0
        %2117 = vmatprep.subr.mxu0 0.0
        %2118 = vmatpush1.msra.mxu0 0.0
        %2119 = vmatprep.subr.mxu0 0.0
        %2120 = vmatpush1.msra.mxu0 0.0
        %2121 = vmatprep.mubr.f32.mxu0 0.0
        %2122 = vmatmul.mubr.f32.gmra.mrb[0].mxu0 %v2048
        %v2123 = vpop.f32.mrb[0].mxu0
        %v2124 = vadd.f32 0.0, %v2123
        %v2125 = vpop.f32.mrb[0].mxu0
        %2126 = vmatprep.mubr.f32.mxu0 0.0
        %2127 = vmatmul.mubr.f32.gmra.mrb[0].mxu0 %v2050
        %v2128 = vpop.f32.mrb[0].mxu0
        %v2129 = vadd.f32 0.0, %v2128
        %v2130 = vpop.f32.mrb[0].mxu0
        %2131 = vmatprep.mubr.f32.mxu0 0.0
        %2132 = vmatmul.mubr.f32.gmra.mrb[0].mxu0 %v2052
        %v2133 = vpop.f32.mrb[0].mxu0
        %v2134 = vadd.f32 0.0, %v2133
        %v2135 = vpop.f32.mrb[0].mxu0
        %2136 = vmatprep.mubr.f32.mxu0 0.0
        %2137 = vmatmul.mubr.f32.gmra.mrb[0].mxu0 %v2051
        %v2138 = vpop.f32.mrb[0].mxu0
        %v2139 = vadd.f32 0.0, %v2138
        %v2140 = vpop.f32.mrb[0].mxu0
        %2141 = vdwg.mxu0
        %v2142 = vadd.f32 %v2011, %v2124
        %v2143 = vadd.f32 %v2016, %v2129
        %v2144 = vadd.f32 %v2021, %v2134
        %v2145 = vadd.f32 %v2026, %v2139
        %s2146 = scalar_lea.vmem [#allocation6], 1664
        %v2147 = vld [vmem:[%s2146] sm:$0xff]
        %v2148 = vld [vmem:[%s2146 + $0x8] sm:$0xff]
        %v2149 = vld [vmem:[%s2146 + $0x10] sm:$0xff]
        %v2150 = vld [vmem:[%s2146 + $0x18] sm:$0xff]
        %v2151 = vld [vmem:[%s2146 + $0x20] sm:$0xff]
        %v2152 = vld [vmem:[%s2146 + $0x28] sm:$0xff]
        %v2153 = vld [vmem:[%s2146 + $0x30] sm:$0xff]
        %v2154 = vld [vmem:[%s2146 + $0x38] sm:$0xff]
        %v2155 = vld [vmem:[%s2146 + $0x40] sm:$0xff]
        %v2156 = vld [vmem:[%s2146 + $0x48] sm:$0xff]
        %v2157 = vld [vmem:[%s2146 + $0x50] sm:$0xff]
        %v2158 = vld [vmem:[%s2146 + $0x58] sm:$0xff]
        %v2159 = vld [vmem:[%s2146 + $0x60] sm:$0xff]
        %v2160 = vld [vmem:[%s2146 + $0x68] sm:$0xff]
        %v2161 = vld [vmem:[%s2146 + $0x70] sm:$0xff]
        %v2162 = vld [vmem:[%s2146 + $0x78] sm:$0xff]
        %v2163 = vrot.slane %v1806, 3
        %v2164 = vrot.slane %v1807, 3
        %v2165 = vsel %vm884, %v2163, %v2164
        %v2166 = vrot.slane %v1808, 3
        %v2167 = vsel %vm884, %v2164, %v2166
        %v2168 = vrot.slane %v1809, 3
        %v2169 = vsel %vm884, %v2166, %v2168
        %2174 = vmatprep.subr.mxu0 0.0
        %2175 = vmatpush1.msra.mxu0 %v2147
        %2176 = vmatprep.subr.mxu0 0.0
        %2177 = vmatpush1.msra.mxu0 %v2148
        %2178 = vmatprep.subr.mxu0 0.0
        %2179 = vmatpush1.msra.mxu0 %v2149
        %2180 = vmatprep.subr.mxu0 0.0
        %2181 = vmatpush1.msra.mxu0 %v2150
        %2182 = vmatprep.subr.mxu0 0.0
        %2183 = vmatpush1.msra.mxu0 %v2151
        %2184 = vmatprep.subr.mxu0 0.0
        %2185 = vmatpush1.msra.mxu0 %v2152
        %2186 = vmatprep.subr.mxu0 0.0
        %2187 = vmatpush1.msra.mxu0 %v2153
        %2188 = vmatprep.subr.mxu0 0.0
        %2189 = vmatpush1.msra.mxu0 %v2154
        %2190 = vmatprep.subr.mxu0 0.0
        %2191 = vmatpush1.msra.mxu0 %v2155
        %2192 = vmatprep.subr.mxu0 0.0
        %2193 = vmatpush1.msra.mxu0 %v2156
        %2194 = vmatprep.subr.mxu0 0.0
        %2195 = vmatpush1.msra.mxu0 %v2157
        %2196 = vmatprep.subr.mxu0 0.0
        %2197 = vmatpush1.msra.mxu0 %v2158
        %2198 = vmatprep.subr.mxu0 0.0
        %2199 = vmatpush1.msra.mxu0 %v2159
        %2200 = vmatprep.subr.mxu0 0.0
        %2201 = vmatpush1.msra.mxu0 %v2160
        %2202 = vmatprep.subr.mxu0 0.0
        %2203 = vmatpush1.msra.mxu0 %v2161
        %2204 = vmatprep.subr.mxu0 0.0
        %2205 = vmatpush1.msra.mxu0 %v2162
        %2206 = vmatprep.subr.mxu0 0.0
        %2207 = vmatpush1.msra.mxu0 0.0
        %2208 = vmatprep.subr.mxu0 0.0
        %2209 = vmatpush1.msra.mxu0 0.0
        %2210 = vmatprep.subr.mxu0 0.0
        %2211 = vmatpush1.msra.mxu0 0.0
        %2212 = vmatprep.subr.mxu0 0.0
        %2213 = vmatpush1.msra.mxu0 0.0
        %2214 = vmatprep.subr.mxu0 0.0
        %2215 = vmatpush1.msra.mxu0 0.0
        %2216 = vmatprep.subr.mxu0 0.0
        %2217 = vmatpush1.msra.mxu0 0.0
        %2218 = vmatprep.subr.mxu0 0.0
        %2219 = vmatpush1.msra.mxu0 0.0
        %2220 = vmatprep.subr.mxu0 0.0
        %2221 = vmatpush1.msra.mxu0 0.0
        %2222 = vmatprep.subr.mxu0 0.0
        %2223 = vmatpush1.msra.mxu0 0.0
        %2224 = vmatprep.subr.mxu0 0.0
        %2225 = vmatpush1.msra.mxu0 0.0
        %2226 = vmatprep.subr.mxu0 0.0
        %2227 = vmatpush1.msra.mxu0 0.0
        %2228 = vmatprep.subr.mxu0 0.0
        %2229 = vmatpush1.msra.mxu0 0.0
        %2230 = vmatprep.subr.mxu0 0.0
        %2231 = vmatpush1.msra.mxu0 0.0
        %2232 = vmatprep.subr.mxu0 0.0
        %2233 = vmatpush1.msra.mxu0 0.0
        %2234 = vmatprep.subr.mxu0 0.0
        %2235 = vmatpush1.msra.mxu0 0.0
        %2236 = vmatprep.subr.mxu0 0.0
        %2237 = vmatpush1.msra.mxu0 0.0
        %2238 = vmatprep.mubr.f32.mxu0 0.0
        %2239 = vmatmul.mubr.f32.gmra.mrb[0].mxu0 %v2165
        %v2240 = vpop.f32.mrb[0].mxu0
        %v2241 = vadd.f32 0.0, %v2240
        %v2242 = vpop.f32.mrb[0].mxu0
        %2243 = vmatprep.mubr.f32.mxu0 0.0
        %2244 = vmatmul.mubr.f32.gmra.mrb[0].mxu0 %v2167
        %v2245 = vpop.f32.mrb[0].mxu0
        %v2246 = vadd.f32 0.0, %v2245
        %v2247 = vpop.f32.mrb[0].mxu0
        %2248 = vmatprep.mubr.f32.mxu0 0.0
        %2249 = vmatmul.mubr.f32.gmra.mrb[0].mxu0 %v2169
        %v2250 = vpop.f32.mrb[0].mxu0
        %v2251 = vadd.f32 0.0, %v2250
        %v2252 = vpop.f32.mrb[0].mxu0
        %2253 = vmatprep.mubr.f32.mxu0 0.0
        %2254 = vmatmul.mubr.f32.gmra.mrb[0].mxu0 %v2168
        %v2255 = vpop.f32.mrb[0].mxu0
        %v2256 = vadd.f32 0.0, %v2255
        %v2257 = vpop.f32.mrb[0].mxu0
        %2258 = vdwg.mxu0
        %v2259 = vadd.f32 %v2142, %v2241
        %v2260 = vadd.f32 %v2143, %v2246
        %v2261 = vadd.f32 %v2144, %v2251
        %v2262 = vadd.f32 %v2145, %v2256
        %s2263 = scalar_lea.vmem [#allocation6], 1792
        %v2264 = vld [vmem:[%s2263] sm:$0xff]
        %v2265 = vld [vmem:[%s2263 + $0x8] sm:$0xff]
        %v2266 = vld [vmem:[%s2263 + $0x10] sm:$0xff]
        %v2267 = vld [vmem:[%s2263 + $0x18] sm:$0xff]
        %v2268 = vld [vmem:[%s2263 + $0x20] sm:$0xff]
        %v2269 = vld [vmem:[%s2263 + $0x28] sm:$0xff]
        %v2270 = vld [vmem:[%s2263 + $0x30] sm:$0xff]
        %v2271 = vld [vmem:[%s2263 + $0x38] sm:$0xff]
        %v2272 = vld [vmem:[%s2263 + $0x40] sm:$0xff]
        %v2273 = vld [vmem:[%s2263 + $0x48] sm:$0xff]
        %v2274 = vld [vmem:[%s2263 + $0x50] sm:$0xff]
        %v2275 = vld [vmem:[%s2263 + $0x58] sm:$0xff]
        %v2276 = vld [vmem:[%s2263 + $0x60] sm:$0xff]
        %v2277 = vld [vmem:[%s2263 + $0x68] sm:$0xff]
        %v2278 = vld [vmem:[%s2263 + $0x70] sm:$0xff]
        %v2279 = vld [vmem:[%s2263 + $0x78] sm:$0xff]
        %v2280 = vrot.slane %v1806, 4
        %v2281 = vrot.slane %v1807, 4
        %v2282 = vsel %vm1011, %v2280, %v2281
        %v2283 = vrot.slane %v1808, 4
        %v2284 = vsel %vm1011, %v2281, %v2283
        %v2285 = vrot.slane %v1809, 4
        %v2286 = vsel %vm1011, %v2283, %v2285
        %2291 = vmatprep.subr.mxu0 0.0
        %2292 = vmatpush1.msra.mxu0 %v2264
        %2293 = vmatprep.subr.mxu0 0.0
        %2294 = vmatpush1.msra.mxu0 %v2265
        %2295 = vmatprep.subr.mxu0 0.0
        %2296 = vmatpush1.msra.mxu0 %v2266
        %2297 = vmatprep.subr.mxu0 0.0
        %2298 = vmatpush1.msra.mxu0 %v2267
        %2299 = vmatprep.subr.mxu0 0.0
        %2300 = vmatpush1.msra.mxu0 %v2268
        %2301 = vmatprep.subr.mxu0 0.0
        %2302 = vmatpush1.msra.mxu0 %v2269
        %2303 = vmatprep.subr.mxu0 0.0
        %2304 = vmatpush1.msra.mxu0 %v2270
        %2305 = vmatprep.subr.mxu0 0.0
        %2306 = vmatpush1.msra.mxu0 %v2271
        %2307 = vmatprep.subr.mxu0 0.0
        %2308 = vmatpush1.msra.mxu0 %v2272
        %2309 = vmatprep.subr.mxu0 0.0
        %2310 = vmatpush1.msra.mxu0 %v2273
        %2311 = vmatprep.subr.mxu0 0.0
        %2312 = vmatpush1.msra.mxu0 %v2274
        %2313 = vmatprep.subr.mxu0 0.0
        %2314 = vmatpush1.msra.mxu0 %v2275
        %2315 = vmatprep.subr.mxu0 0.0
        %2316 = vmatpush1.msra.mxu0 %v2276
        %2317 = vmatprep.subr.mxu0 0.0
        %2318 = vmatpush1.msra.mxu0 %v2277
        %2319 = vmatprep.subr.mxu0 0.0
        %2320 = vmatpush1.msra.mxu0 %v2278
        %2321 = vmatprep.subr.mxu0 0.0
        %2322 = vmatpush1.msra.mxu0 %v2279
        %2323 = vmatprep.subr.mxu0 0.0
        %2324 = vmatpush1.msra.mxu0 0.0
        %2325 = vmatprep.subr.mxu0 0.0
        %2326 = vmatpush1.msra.mxu0 0.0
        %2327 = vmatprep.subr.mxu0 0.0
        %2328 = vmatpush1.msra.mxu0 0.0
        %2329 = vmatprep.subr.mxu0 0.0
        %2330 = vmatpush1.msra.mxu0 0.0
        %2331 = vmatprep.subr.mxu0 0.0
        %2332 = vmatpush1.msra.mxu0 0.0
        %2333 = vmatprep.subr.mxu0 0.0
        %2334 = vmatpush1.msra.mxu0 0.0
        %2335 = vmatprep.subr.mxu0 0.0
        %2336 = vmatpush1.msra.mxu0 0.0
        %2337 = vmatprep.subr.mxu0 0.0
        %2338 = vmatpush1.msra.mxu0 0.0
        %2339 = vmatprep.subr.mxu0 0.0
        %2340 = vmatpush1.msra.mxu0 0.0
        %2341 = vmatprep.subr.mxu0 0.0
        %2342 = vmatpush1.msra.mxu0 0.0
        %2343 = vmatprep.subr.mxu0 0.0
        %2344 = vmatpush1.msra.mxu0 0.0
        %2345 = vmatprep.subr.mxu0 0.0
        %2346 = vmatpush1.msra.mxu0 0.0
        %2347 = vmatprep.subr.mxu0 0.0
        %2348 = vmatpush1.msra.mxu0 0.0
        %2349 = vmatprep.subr.mxu0 0.0
        %2350 = vmatpush1.msra.mxu0 0.0
        %2351 = vmatprep.subr.mxu0 0.0
        %2352 = vmatpush1.msra.mxu0 0.0
        %2353 = vmatprep.subr.mxu0 0.0
        %2354 = vmatpush1.msra.mxu0 0.0
        %2355 = vmatprep.mubr.f32.mxu0 0.0
        %2356 = vmatmul.mubr.f32.gmra.mrb[0].mxu0 %v2282
        %v2357 = vpop.f32.mrb[0].mxu0
        %v2358 = vadd.f32 0.0, %v2357
        %v2359 = vpop.f32.mrb[0].mxu0
        %2360 = vmatprep.mubr.f32.mxu0 0.0
        %2361 = vmatmul.mubr.f32.gmra.mrb[0].mxu0 %v2284
        %v2362 = vpop.f32.mrb[0].mxu0
        %v2363 = vadd.f32 0.0, %v2362
        %v2364 = vpop.f32.mrb[0].mxu0
        %2365 = vmatprep.mubr.f32.mxu0 0.0
        %2366 = vmatmul.mubr.f32.gmra.mrb[0].mxu0 %v2286
        %v2367 = vpop.f32.mrb[0].mxu0
        %v2368 = vadd.f32 0.0, %v2367
        %v2369 = vpop.f32.mrb[0].mxu0
        %2370 = vmatprep.mubr.f32.mxu0 0.0
        %2371 = vmatmul.mubr.f32.gmra.mrb[0].mxu0 %v2285
        %v2372 = vpop.f32.mrb[0].mxu0
        %v2373 = vadd.f32 0.0, %v2372
        %v2374 = vpop.f32.mrb[0].mxu0
        %2375 = vdwg.mxu0
        %v2376 = vadd.f32 %v2259, %v2358
        %v2377 = vadd.f32 %v2260, %v2363
        %v2378 = vadd.f32 %v2261, %v2368
        %v2379 = vadd.f32 %v2262, %v2373
        %v2380 = vlaneseq
        %v2381 = vshrl.u32 %v2380, 7
        %v2382 = vsub.s32 2, %v2381
        %v2383 = vrot.slane %v505, %v2382
        %v2384 = vmul.f32 %v2376, %v2383
        %v2385 = vmul.f32 %v2377, %v2383
        %v2386 = vmul.f32 %v2378, %v2383
        %v2387 = vmul.f32 %v2379, %v2383
        %v2388 = vlaneseq
        %v2389 = vshrl.u32 %v2388, 7
        %v2390 = vsub.s32 2, %v2389
        %v2391 = vrot.slane %v506, %v2390
        %v2392 = vadd.f32 %v2384, %v2391
        %v2393 = vadd.f32 %v2385, %v2391
        %v2394 = vadd.f32 %v2386, %v2391
        %v2395 = vadd.f32 %v2387, %v2391
        %v2396 = vtanh.pop %v2392
        %v2397 = vtanh.pop %v2393
        %v2398 = vtanh.pop %v2394
        %v2399 = vtanh.pop %v2395
        %s2400 = sadd.s32 %s342, 4294967292
        %v2401 = vstv %s2400
        %v2402 = vadd.s32 %v464, %v2401
        %v2403 = vadd.s32 %v465, %v2401
        %v2404 = vadd.s32 %v466, %v2401
        %v2405 = vadd.s32 %v467, %v2401
        %vm2406 = vcmp.ge.s32.totalorder %v2402, 0
        %vm2407 = vcmp.ge.s32.totalorder %v2403, 0
        %vm2408 = vcmp.ge.s32.totalorder %v2404, 0
        %vm2409 = vcmp.ge.s32.totalorder %v2405, 0
        %vm2410 = vcmp.lt.s32.totalorder %v2402, 16
        %vm2411 = vcmp.lt.s32.totalorder %v2403, 16
        %vm2412 = vcmp.lt.s32.totalorder %v2404, 16
        %vm2413 = vcmp.lt.s32.totalorder %v2405, 16
        %vm2414 = vmand %vm2406, %vm2410
        %vm2415 = vmand %vm2407, %vm2411
        %vm2416 = vmand %vm2408, %vm2412
        %vm2417 = vmand %vm2409, %vm2413
        %v2418 = vsel %vm2414, 1, 0
        %v2419 = vsel %vm2415, 1, 0
        %v2420 = vsel %vm2416, 1, 0
        %v2421 = vsel %vm2417, 1, 0
        %vm2422 = vcmp.eq.s32.totalorder %v2418, 1
        %vm2423 = vcmp.eq.s32.totalorder %v2419, 1
        %vm2424 = vcmp.eq.s32.totalorder %v2420, 1
        %vm2425 = vcmp.eq.s32.totalorder %v2421, 1
        %v2426 = vsel %vm2422, %v2396, 0.0
        %v2427 = vsel %vm2423, %v2397, 0.0
        %v2428 = vsel %vm2424, %v2398, 0.0
        %v2429 = vsel %vm2425, %v2399, 0.0
        %s2430 = scalar_lea.vmem [#allocation6], 1920
        %v2431 = vld [vmem:[%s2430] sm:$0xff]
        %v2432 = vld [vmem:[%s2430 + $0x8] sm:$0xff]
        %v2433 = vld [vmem:[%s2430 + $0x10] sm:$0xff]
        %v2434 = vld [vmem:[%s2430 + $0x18] sm:$0xff]
        %v2435 = vld [vmem:[%s2430 + $0x20] sm:$0xff]
        %v2436 = vld [vmem:[%s2430 + $0x28] sm:$0xff]
        %v2437 = vld [vmem:[%s2430 + $0x30] sm:$0xff]
        %v2438 = vld [vmem:[%s2430 + $0x38] sm:$0xff]
        %v2439 = vld [vmem:[%s2430 + $0x40] sm:$0xff]
        %v2440 = vld [vmem:[%s2430 + $0x48] sm:$0xff]
        %v2441 = vld [vmem:[%s2430 + $0x50] sm:$0xff]
        %v2442 = vld [vmem:[%s2430 + $0x58] sm:$0xff]
        %v2443 = vld [vmem:[%s2430 + $0x60] sm:$0xff]
        %v2444 = vld [vmem:[%s2430 + $0x68] sm:$0xff]
        %v2445 = vld [vmem:[%s2430 + $0x70] sm:$0xff]
        %v2446 = vld [vmem:[%s2430 + $0x78] sm:$0xff]
        %s2447 = scalar_lea.vmem [#allocation6], 2048
        %v2448 = vld [vmem:[%s2447] sm:$0xff]
        %v2449 = vld [vmem:[%s2447 + $0x8] sm:$0xff]
        %v2450 = vld [vmem:[%s2447 + $0x10] sm:$0xff]
        %v2451 = vld [vmem:[%s2447 + $0x18] sm:$0xff]
        %v2452 = vld [vmem:[%s2447 + $0x20] sm:$0xff]
        %v2453 = vld [vmem:[%s2447 + $0x28] sm:$0xff]
        %v2454 = vld [vmem:[%s2447 + $0x30] sm:$0xff]
        %v2455 = vld [vmem:[%s2447 + $0x38] sm:$0xff]
        %v2456 = vld [vmem:[%s2447 + $0x40] sm:$0xff]
        %v2457 = vld [vmem:[%s2447 + $0x48] sm:$0xff]
        %v2458 = vld [vmem:[%s2447 + $0x50] sm:$0xff]
        %v2459 = vld [vmem:[%s2447 + $0x58] sm:$0xff]
        %v2460 = vld [vmem:[%s2447 + $0x60] sm:$0xff]
        %v2461 = vld [vmem:[%s2447 + $0x68] sm:$0xff]
        %v2462 = vld [vmem:[%s2447 + $0x70] sm:$0xff]
        %v2463 = vld [vmem:[%s2447 + $0x78] sm:$0xff]
        %v2468 = vrot.slane %v2426, 1
        %v2469 = vrot.slane %v2427, 1
        %v2470 = vsel %vm545, %v2468, %v2469
        %v2471 = vrot.slane %v2428, 1
        %v2472 = vsel %vm545, %v2469, %v2471
        %v2473 = vrot.slane %v2429, 1
        %v2474 = vsel %vm545, %v2471, %v2473
        %2478 = vmatprep.subr.mxu0 0.0
        %2479 = vmatpush1.msra.mxu0 %v2448
        %2480 = vmatprep.subr.mxu0 0.0
        %2481 = vmatpush1.msra.mxu0 %v2449
        %2482 = vmatprep.subr.mxu0 0.0
        %2483 = vmatpush1.msra.mxu0 %v2450
        %2484 = vmatprep.subr.mxu0 0.0
        %2485 = vmatpush1.msra.mxu0 %v2451
        %2486 = vmatprep.subr.mxu0 0.0
        %2487 = vmatpush1.msra.mxu0 %v2452
        %2488 = vmatprep.subr.mxu0 0.0
        %2489 = vmatpush1.msra.mxu0 %v2453
        %2490 = vmatprep.subr.mxu0 0.0
        %2491 = vmatpush1.msra.mxu0 %v2454
        %2492 = vmatprep.subr.mxu0 0.0
        %2493 = vmatpush1.msra.mxu0 %v2455
        %2494 = vmatprep.subr.mxu0 0.0
        %2495 = vmatpush1.msra.mxu0 %v2456
        %2496 = vmatprep.subr.mxu0 0.0
        %2497 = vmatpush1.msra.mxu0 %v2457
        %2498 = vmatprep.subr.mxu0 0.0
        %2499 = vmatpush1.msra.mxu0 %v2458
        %2500 = vmatprep.subr.mxu0 0.0
        %2501 = vmatpush1.msra.mxu0 %v2459
        %2502 = vmatprep.subr.mxu0 0.0
        %2503 = vmatpush1.msra.mxu0 %v2460
        %2504 = vmatprep.subr.mxu0 0.0
        %2505 = vmatpush1.msra.mxu0 %v2461
        %2506 = vmatprep.subr.mxu0 0.0
        %2507 = vmatpush1.msra.mxu0 %v2462
        %2508 = vmatprep.subr.mxu0 0.0
        %2509 = vmatpush1.msra.mxu0 %v2463
        %2510 = vmatprep.subr.mxu0 0.0
        %2511 = vmatpush1.msra.mxu0 0.0
        %2512 = vmatprep.subr.mxu0 0.0
        %2513 = vmatpush1.msra.mxu0 0.0
        %2514 = vmatprep.subr.mxu0 0.0
        %2515 = vmatpush1.msra.mxu0 0.0
        %2516 = vmatprep.subr.mxu0 0.0
        %2517 = vmatpush1.msra.mxu0 0.0
        %2518 = vmatprep.subr.mxu0 0.0
        %2519 = vmatpush1.msra.mxu0 0.0
        %2520 = vmatprep.subr.mxu0 0.0
        %2521 = vmatpush1.msra.mxu0 0.0
        %2522 = vmatprep.subr.mxu0 0.0
        %2523 = vmatpush1.msra.mxu0 0.0
        %2524 = vmatprep.subr.mxu0 0.0
        %2525 = vmatpush1.msra.mxu0 0.0
        %2526 = vmatprep.subr.mxu0 0.0
        %2527 = vmatpush1.msra.mxu0 0.0
        %2528 = vmatprep.subr.mxu0 0.0
        %2529 = vmatpush1.msra.mxu0 0.0
        %2530 = vmatprep.subr.mxu0 0.0
        %2531 = vmatpush1.msra.mxu0 0.0
        %2532 = vmatprep.subr.mxu0 0.0
        %2533 = vmatpush1.msra.mxu0 0.0
        %2534 = vmatprep.subr.mxu0 0.0
        %2535 = vmatpush1.msra.mxu0 0.0
        %2536 = vmatprep.subr.mxu0 0.0
        %2537 = vmatpush1.msra.mxu0 0.0
        %2538 = vmatprep.subr.mxu0 0.0
        %2539 = vmatpush1.msra.mxu0 0.0
        %2540 = vmatprep.subr.mxu0 0.0
        %2541 = vmatpush1.msra.mxu0 0.0
        %2542 = vmatprep.mubr.f32.mxu0 0.0
        %2543 = vmatmul.mubr.f32.gmra.mrb[0].mxu0 %v2470
        %v2544 = vpop.f32.mrb[0].mxu0
        %v2545 = vadd.f32 0.0, %v2544
        %v2546 = vpop.f32.mrb[0].mxu0
        %2547 = vmatprep.mubr.f32.mxu0 0.0
        %2548 = vmatmul.mubr.f32.gmra.mrb[0].mxu0 %v2472
        %v2549 = vpop.f32.mrb[0].mxu0
        %v2550 = vadd.f32 0.0, %v2549
        %v2551 = vpop.f32.mrb[0].mxu0
        %2552 = vmatprep.mubr.f32.mxu0 0.0
        %2553 = vmatmul.mubr.f32.gmra.mrb[0].mxu0 %v2474
        %v2554 = vpop.f32.mrb[0].mxu0
        %v2555 = vadd.f32 0.0, %v2554
        %v2556 = vpop.f32.mrb[0].mxu0
        %2557 = vdwg.mxu0
        %2558 = vmatprep.subr.mxu0 0.0
        %2559 = vmatpush1.msra.mxu0 %v2431
        %2560 = vmatprep.subr.mxu0 0.0
        %2561 = vmatpush1.msra.mxu0 %v2432
        %2562 = vmatprep.subr.mxu0 0.0
        %2563 = vmatpush1.msra.mxu0 %v2433
        %2564 = vmatprep.subr.mxu0 0.0
        %2565 = vmatpush1.msra.mxu0 %v2434
        %2566 = vmatprep.subr.mxu0 0.0
        %2567 = vmatpush1.msra.mxu0 %v2435
        %2568 = vmatprep.subr.mxu0 0.0
        %2569 = vmatpush1.msra.mxu0 %v2436
        %2570 = vmatprep.subr.mxu0 0.0
        %2571 = vmatpush1.msra.mxu0 %v2437
        %2572 = vmatprep.subr.mxu0 0.0
        %2573 = vmatpush1.msra.mxu0 %v2438
        %2574 = vmatprep.subr.mxu0 0.0
        %2575 = vmatpush1.msra.mxu0 %v2439
        %2576 = vmatprep.subr.mxu0 0.0
        %2577 = vmatpush1.msra.mxu0 %v2440
        %2578 = vmatprep.subr.mxu0 0.0
        %2579 = vmatpush1.msra.mxu0 %v2441
        %2580 = vmatprep.subr.mxu0 0.0
        %2581 = vmatpush1.msra.mxu0 %v2442
        %2582 = vmatprep.subr.mxu0 0.0
        %2583 = vmatpush1.msra.mxu0 %v2443
        %2584 = vmatprep.subr.mxu0 0.0
        %2585 = vmatpush1.msra.mxu0 %v2444
        %2586 = vmatprep.subr.mxu0 0.0
        %2587 = vmatpush1.msra.mxu0 %v2445
        %2588 = vmatprep.subr.mxu0 0.0
        %2589 = vmatpush1.msra.mxu0 %v2446
        %2590 = vmatprep.subr.mxu0 0.0
        %2591 = vmatpush1.msra.mxu0 0.0
        %2592 = vmatprep.subr.mxu0 0.0
        %2593 = vmatpush1.msra.mxu0 0.0
        %2594 = vmatprep.subr.mxu0 0.0
        %2595 = vmatpush1.msra.mxu0 0.0
        %2596 = vmatprep.subr.mxu0 0.0
        %2597 = vmatpush1.msra.mxu0 0.0
        %2598 = vmatprep.subr.mxu0 0.0
        %2599 = vmatpush1.msra.mxu0 0.0
        %2600 = vmatprep.subr.mxu0 0.0
        %2601 = vmatpush1.msra.mxu0 0.0
        %2602 = vmatprep.subr.mxu0 0.0
        %2603 = vmatpush1.msra.mxu0 0.0
        %2604 = vmatprep.subr.mxu0 0.0
        %2605 = vmatpush1.msra.mxu0 0.0
        %2606 = vmatprep.subr.mxu0 0.0
        %2607 = vmatpush1.msra.mxu0 0.0
        %2608 = vmatprep.subr.mxu0 0.0
        %2609 = vmatpush1.msra.mxu0 0.0
        %2610 = vmatprep.subr.mxu0 0.0
        %2611 = vmatpush1.msra.mxu0 0.0
        %2612 = vmatprep.subr.mxu0 0.0
        %2613 = vmatpush1.msra.mxu0 0.0
        %2614 = vmatprep.subr.mxu0 0.0
        %2615 = vmatpush1.msra.mxu0 0.0
        %2616 = vmatprep.subr.mxu0 0.0
        %2617 = vmatpush1.msra.mxu0 0.0
        %2618 = vmatprep.subr.mxu0 0.0
        %2619 = vmatpush1.msra.mxu0 0.0
        %2620 = vmatprep.subr.mxu0 0.0
        %2621 = vmatpush1.msra.mxu0 0.0
        %2622 = vmatprep.mubr.f32.mxu0 0.0
        %2623 = vmatmul.mubr.f32.gmra.mrb[0].mxu0 %v2426
        %v2624 = vpop.f32.mrb[0].mxu0
        %v2625 = vadd.f32 %v2545, %v2624
        %v2626 = vpop.f32.mrb[0].mxu0
        %2627 = vmatprep.mubr.f32.mxu0 0.0
        %2628 = vmatmul.mubr.f32.gmra.mrb[0].mxu0 %v2427
        %v2629 = vpop.f32.mrb[0].mxu0
        %v2630 = vadd.f32 %v2550, %v2629
        %v2631 = vpop.f32.mrb[0].mxu0
        %2632 = vmatprep.mubr.f32.mxu0 0.0
        %2633 = vmatmul.mubr.f32.gmra.mrb[0].mxu0 %v2428
        %v2634 = vpop.f32.mrb[0].mxu0
        %v2635 = vadd.f32 %v2555, %v2634
        %v2636 = vpop.f32.mrb[0].mxu0
        %2637 = vdwg.mxu0
        %s2638 = scalar_lea.vmem [#allocation6], 2176
        %v2639 = vld [vmem:[%s2638] sm:$0xff]
        %v2640 = vld [vmem:[%s2638 + $0x8] sm:$0xff]
        %v2641 = vld [vmem:[%s2638 + $0x10] sm:$0xff]
        %v2642 = vld [vmem:[%s2638 + $0x18] sm:$0xff]
        %v2643 = vld [vmem:[%s2638 + $0x20] sm:$0xff]
        %v2644 = vld [vmem:[%s2638 + $0x28] sm:$0xff]
        %v2645 = vld [vmem:[%s2638 + $0x30] sm:$0xff]
        %v2646 = vld [vmem:[%s2638 + $0x38] sm:$0xff]
        %v2647 = vld [vmem:[%s2638 + $0x40] sm:$0xff]
        %v2648 = vld [vmem:[%s2638 + $0x48] sm:$0xff]
        %v2649 = vld [vmem:[%s2638 + $0x50] sm:$0xff]
        %v2650 = vld [vmem:[%s2638 + $0x58] sm:$0xff]
        %v2651 = vld [vmem:[%s2638 + $0x60] sm:$0xff]
        %v2652 = vld [vmem:[%s2638 + $0x68] sm:$0xff]
        %v2653 = vld [vmem:[%s2638 + $0x70] sm:$0xff]
        %v2654 = vld [vmem:[%s2638 + $0x78] sm:$0xff]
        %v2655 = vrot.slane %v2426, 2
        %v2656 = vrot.slane %v2427, 2
        %v2657 = vsel %vm757, %v2655, %v2656
        %v2658 = vrot.slane %v2428, 2
        %v2659 = vsel %vm757, %v2656, %v2658
        %v2660 = vrot.slane %v2429, 2
        %v2661 = vsel %vm757, %v2658, %v2660
        %2665 = vmatprep.subr.mxu0 0.0
        %2666 = vmatpush1.msra.mxu0 %v2639
        %2667 = vmatprep.subr.mxu0 0.0
        %2668 = vmatpush1.msra.mxu0 %v2640
        %2669 = vmatprep.subr.mxu0 0.0
        %2670 = vmatpush1.msra.mxu0 %v2641
        %2671 = vmatprep.subr.mxu0 0.0
        %2672 = vmatpush1.msra.mxu0 %v2642
        %2673 = vmatprep.subr.mxu0 0.0
        %2674 = vmatpush1.msra.mxu0 %v2643
        %2675 = vmatprep.subr.mxu0 0.0
        %2676 = vmatpush1.msra.mxu0 %v2644
        %2677 = vmatprep.subr.mxu0 0.0
        %2678 = vmatpush1.msra.mxu0 %v2645
        %2679 = vmatprep.subr.mxu0 0.0
        %2680 = vmatpush1.msra.mxu0 %v2646
        %2681 = vmatprep.subr.mxu0 0.0
        %2682 = vmatpush1.msra.mxu0 %v2647
        %2683 = vmatprep.subr.mxu0 0.0
        %2684 = vmatpush1.msra.mxu0 %v2648
        %2685 = vmatprep.subr.mxu0 0.0
        %2686 = vmatpush1.msra.mxu0 %v2649
        %2687 = vmatprep.subr.mxu0 0.0
        %2688 = vmatpush1.msra.mxu0 %v2650
        %2689 = vmatprep.subr.mxu0 0.0
        %2690 = vmatpush1.msra.mxu0 %v2651
        %2691 = vmatprep.subr.mxu0 0.0
        %2692 = vmatpush1.msra.mxu0 %v2652
        %2693 = vmatprep.subr.mxu0 0.0
        %2694 = vmatpush1.msra.mxu0 %v2653
        %2695 = vmatprep.subr.mxu0 0.0
        %2696 = vmatpush1.msra.mxu0 %v2654
        %2697 = vmatprep.subr.mxu0 0.0
        %2698 = vmatpush1.msra.mxu0 0.0
        %2699 = vmatprep.subr.mxu0 0.0
        %2700 = vmatpush1.msra.mxu0 0.0
        %2701 = vmatprep.subr.mxu0 0.0
        %2702 = vmatpush1.msra.mxu0 0.0
        %2703 = vmatprep.subr.mxu0 0.0
        %2704 = vmatpush1.msra.mxu0 0.0
        %2705 = vmatprep.subr.mxu0 0.0
        %2706 = vmatpush1.msra.mxu0 0.0
        %2707 = vmatprep.subr.mxu0 0.0
        %2708 = vmatpush1.msra.mxu0 0.0
        %2709 = vmatprep.subr.mxu0 0.0
        %2710 = vmatpush1.msra.mxu0 0.0
        %2711 = vmatprep.subr.mxu0 0.0
        %2712 = vmatpush1.msra.mxu0 0.0
        %2713 = vmatprep.subr.mxu0 0.0
        %2714 = vmatpush1.msra.mxu0 0.0
        %2715 = vmatprep.subr.mxu0 0.0
        %2716 = vmatpush1.msra.mxu0 0.0
        %2717 = vmatprep.subr.mxu0 0.0
        %2718 = vmatpush1.msra.mxu0 0.0
        %2719 = vmatprep.subr.mxu0 0.0
        %2720 = vmatpush1.msra.mxu0 0.0
        %2721 = vmatprep.subr.mxu0 0.0
        %2722 = vmatpush1.msra.mxu0 0.0
        %2723 = vmatprep.subr.mxu0 0.0
        %2724 = vmatpush1.msra.mxu0 0.0
        %2725 = vmatprep.subr.mxu0 0.0
        %2726 = vmatpush1.msra.mxu0 0.0
        %2727 = vmatprep.subr.mxu0 0.0
        %2728 = vmatpush1.msra.mxu0 0.0
        %2729 = vmatprep.mubr.f32.mxu0 0.0
        %2730 = vmatmul.mubr.f32.gmra.mrb[0].mxu0 %v2657
        %v2731 = vpop.f32.mrb[0].mxu0
        %v2732 = vadd.f32 0.0, %v2731
        %v2733 = vpop.f32.mrb[0].mxu0
        %2734 = vmatprep.mubr.f32.mxu0 0.0
        %2735 = vmatmul.mubr.f32.gmra.mrb[0].mxu0 %v2659
        %v2736 = vpop.f32.mrb[0].mxu0
        %v2737 = vadd.f32 0.0, %v2736
        %v2738 = vpop.f32.mrb[0].mxu0
        %2739 = vmatprep.mubr.f32.mxu0 0.0
        %2740 = vmatmul.mubr.f32.gmra.mrb[0].mxu0 %v2661
        %v2741 = vpop.f32.mrb[0].mxu0
        %v2742 = vadd.f32 0.0, %v2741
        %v2743 = vpop.f32.mrb[0].mxu0
        %2744 = vdwg.mxu0
        %v2745 = vadd.f32 %v2625, %v2732
        %v2746 = vadd.f32 %v2630, %v2737
        %v2747 = vadd.f32 %v2635, %v2742
        %s2748 = scalar_lea.vmem [#allocation6], 2304
        %v2749 = vld [vmem:[%s2748] sm:$0xff]
        %v2750 = vld [vmem:[%s2748 + $0x8] sm:$0xff]
        %v2751 = vld [vmem:[%s2748 + $0x10] sm:$0xff]
        %v2752 = vld [vmem:[%s2748 + $0x18] sm:$0xff]
        %v2753 = vld [vmem:[%s2748 + $0x20] sm:$0xff]
        %v2754 = vld [vmem:[%s2748 + $0x28] sm:$0xff]
        %v2755 = vld [vmem:[%s2748 + $0x30] sm:$0xff]
        %v2756 = vld [vmem:[%s2748 + $0x38] sm:$0xff]
        %v2757 = vld [vmem:[%s2748 + $0x40] sm:$0xff]
        %v2758 = vld [vmem:[%s2748 + $0x48] sm:$0xff]
        %v2759 = vld [vmem:[%s2748 + $0x50] sm:$0xff]
        %v2760 = vld [vmem:[%s2748 + $0x58] sm:$0xff]
        %v2761 = vld [vmem:[%s2748 + $0x60] sm:$0xff]
        %v2762 = vld [vmem:[%s2748 + $0x68] sm:$0xff]
        %v2763 = vld [vmem:[%s2748 + $0x70] sm:$0xff]
        %v2764 = vld [vmem:[%s2748 + $0x78] sm:$0xff]
        %v2765 = vrot.slane %v2426, 3
        %v2766 = vrot.slane %v2427, 3
        %v2767 = vsel %vm884, %v2765, %v2766
        %v2768 = vrot.slane %v2428, 3
        %v2769 = vsel %vm884, %v2766, %v2768
        %v2770 = vrot.slane %v2429, 3
        %v2771 = vsel %vm884, %v2768, %v2770
        %2775 = vmatprep.subr.mxu0 0.0
        %2776 = vmatpush1.msra.mxu0 %v2749
        %2777 = vmatprep.subr.mxu0 0.0
        %2778 = vmatpush1.msra.mxu0 %v2750
        %2779 = vmatprep.subr.mxu0 0.0
        %2780 = vmatpush1.msra.mxu0 %v2751
        %2781 = vmatprep.subr.mxu0 0.0
        %2782 = vmatpush1.msra.mxu0 %v2752
        %2783 = vmatprep.subr.mxu0 0.0
        %2784 = vmatpush1.msra.mxu0 %v2753
        %2785 = vmatprep.subr.mxu0 0.0
        %2786 = vmatpush1.msra.mxu0 %v2754
        %2787 = vmatprep.subr.mxu0 0.0
        %2788 = vmatpush1.msra.mxu0 %v2755
        %2789 = vmatprep.subr.mxu0 0.0
        %2790 = vmatpush1.msra.mxu0 %v2756
        %2791 = vmatprep.subr.mxu0 0.0
        %2792 = vmatpush1.msra.mxu0 %v2757
        %2793 = vmatprep.subr.mxu0 0.0
        %2794 = vmatpush1.msra.mxu0 %v2758
        %2795 = vmatprep.subr.mxu0 0.0
        %2796 = vmatpush1.msra.mxu0 %v2759
        %2797 = vmatprep.subr.mxu0 0.0
        %2798 = vmatpush1.msra.mxu0 %v2760
        %2799 = vmatprep.subr.mxu0 0.0
        %2800 = vmatpush1.msra.mxu0 %v2761
        %2801 = vmatprep.subr.mxu0 0.0
        %2802 = vmatpush1.msra.mxu0 %v2762
        %2803 = vmatprep.subr.mxu0 0.0
        %2804 = vmatpush1.msra.mxu0 %v2763
        %2805 = vmatprep.subr.mxu0 0.0
        %2806 = vmatpush1.msra.mxu0 %v2764
        %2807 = vmatprep.subr.mxu0 0.0
        %2808 = vmatpush1.msra.mxu0 0.0
        %2809 = vmatprep.subr.mxu0 0.0
        %2810 = vmatpush1.msra.mxu0 0.0
        %2811 = vmatprep.subr.mxu0 0.0
        %2812 = vmatpush1.msra.mxu0 0.0
        %2813 = vmatprep.subr.mxu0 0.0
        %2814 = vmatpush1.msra.mxu0 0.0
        %2815 = vmatprep.subr.mxu0 0.0
        %2816 = vmatpush1.msra.mxu0 0.0
        %2817 = vmatprep.subr.mxu0 0.0
        %2818 = vmatpush1.msra.mxu0 0.0
        %2819 = vmatprep.subr.mxu0 0.0
        %2820 = vmatpush1.msra.mxu0 0.0
        %2821 = vmatprep.subr.mxu0 0.0
        %2822 = vmatpush1.msra.mxu0 0.0
        %2823 = vmatprep.subr.mxu0 0.0
        %2824 = vmatpush1.msra.mxu0 0.0
        %2825 = vmatprep.subr.mxu0 0.0
        %2826 = vmatpush1.msra.mxu0 0.0
        %2827 = vmatprep.subr.mxu0 0.0
        %2828 = vmatpush1.msra.mxu0 0.0
        %2829 = vmatprep.subr.mxu0 0.0
        %2830 = vmatpush1.msra.mxu0 0.0
        %2831 = vmatprep.subr.mxu0 0.0
        %2832 = vmatpush1.msra.mxu0 0.0
        %2833 = vmatprep.subr.mxu0 0.0
        %2834 = vmatpush1.msra.mxu0 0.0
        %2835 = vmatprep.subr.mxu0 0.0
        %2836 = vmatpush1.msra.mxu0 0.0
        %2837 = vmatprep.subr.mxu0 0.0
        %2838 = vmatpush1.msra.mxu0 0.0
        %2839 = vmatprep.mubr.f32.mxu0 0.0
        %2840 = vmatmul.mubr.f32.gmra.mrb[0].mxu0 %v2767
        %v2841 = vpop.f32.mrb[0].mxu0
        %v2842 = vadd.f32 0.0, %v2841
        %v2843 = vpop.f32.mrb[0].mxu0
        %2844 = vmatprep.mubr.f32.mxu0 0.0
        %2845 = vmatmul.mubr.f32.gmra.mrb[0].mxu0 %v2769
        %v2846 = vpop.f32.mrb[0].mxu0
        %v2847 = vadd.f32 0.0, %v2846
        %v2848 = vpop.f32.mrb[0].mxu0
        %2849 = vmatprep.mubr.f32.mxu0 0.0
        %2850 = vmatmul.mubr.f32.gmra.mrb[0].mxu0 %v2771
        %v2851 = vpop.f32.mrb[0].mxu0
        %v2852 = vadd.f32 0.0, %v2851
        %v2853 = vpop.f32.mrb[0].mxu0
        %2854 = vdwg.mxu0
        %v2855 = vadd.f32 %v2745, %v2842
        %v2856 = vadd.f32 %v2746, %v2847
        %v2857 = vadd.f32 %v2747, %v2852
        %s2858 = scalar_lea.vmem [#allocation6], 2432
        %v2859 = vld [vmem:[%s2858] sm:$0xff]
        %v2860 = vld [vmem:[%s2858 + $0x8] sm:$0xff]
        %v2861 = vld [vmem:[%s2858 + $0x10] sm:$0xff]
        %v2862 = vld [vmem:[%s2858 + $0x18] sm:$0xff]
        %v2863 = vld [vmem:[%s2858 + $0x20] sm:$0xff]
        %v2864 = vld [vmem:[%s2858 + $0x28] sm:$0xff]
        %v2865 = vld [vmem:[%s2858 + $0x30] sm:$0xff]
        %v2866 = vld [vmem:[%s2858 + $0x38] sm:$0xff]
        %v2867 = vld [vmem:[%s2858 + $0x40] sm:$0xff]
        %v2868 = vld [vmem:[%s2858 + $0x48] sm:$0xff]
        %v2869 = vld [vmem:[%s2858 + $0x50] sm:$0xff]
        %v2870 = vld [vmem:[%s2858 + $0x58] sm:$0xff]
        %v2871 = vld [vmem:[%s2858 + $0x60] sm:$0xff]
        %v2872 = vld [vmem:[%s2858 + $0x68] sm:$0xff]
        %v2873 = vld [vmem:[%s2858 + $0x70] sm:$0xff]
        %v2874 = vld [vmem:[%s2858 + $0x78] sm:$0xff]
        %v2875 = vrot.slane %v2426, 4
        %v2876 = vrot.slane %v2427, 4
        %v2877 = vsel %vm1011, %v2875, %v2876
        %v2878 = vrot.slane %v2428, 4
        %v2879 = vsel %vm1011, %v2876, %v2878
        %v2880 = vrot.slane %v2429, 4
        %v2881 = vsel %vm1011, %v2878, %v2880
        %2885 = vmatprep.subr.mxu0 0.0
        %2886 = vmatpush1.msra.mxu0 %v2859
        %2887 = vmatprep.subr.mxu0 0.0
        %2888 = vmatpush1.msra.mxu0 %v2860
        %2889 = vmatprep.subr.mxu0 0.0
        %2890 = vmatpush1.msra.mxu0 %v2861
        %2891 = vmatprep.subr.mxu0 0.0
        %2892 = vmatpush1.msra.mxu0 %v2862
        %2893 = vmatprep.subr.mxu0 0.0
        %2894 = vmatpush1.msra.mxu0 %v2863
        %2895 = vmatprep.subr.mxu0 0.0
        %2896 = vmatpush1.msra.mxu0 %v2864
        %2897 = vmatprep.subr.mxu0 0.0
        %2898 = vmatpush1.msra.mxu0 %v2865
        %2899 = vmatprep.subr.mxu0 0.0
        %2900 = vmatpush1.msra.mxu0 %v2866
        %2901 = vmatprep.subr.mxu0 0.0
        %2902 = vmatpush1.msra.mxu0 %v2867
        %2903 = vmatprep.subr.mxu0 0.0
        %2904 = vmatpush1.msra.mxu0 %v2868
        %2905 = vmatprep.subr.mxu0 0.0
        %2906 = vmatpush1.msra.mxu0 %v2869
        %2907 = vmatprep.subr.mxu0 0.0
        %2908 = vmatpush1.msra.mxu0 %v2870
        %2909 = vmatprep.subr.mxu0 0.0
        %2910 = vmatpush1.msra.mxu0 %v2871
        %2911 = vmatprep.subr.mxu0 0.0
        %2912 = vmatpush1.msra.mxu0 %v2872
        %2913 = vmatprep.subr.mxu0 0.0
        %2914 = vmatpush1.msra.mxu0 %v2873
        %2915 = vmatprep.subr.mxu0 0.0
        %2916 = vmatpush1.msra.mxu0 %v2874
        %2917 = vmatprep.subr.mxu0 0.0
        %2918 = vmatpush1.msra.mxu0 0.0
        %2919 = vmatprep.subr.mxu0 0.0
        %2920 = vmatpush1.msra.mxu0 0.0
        %2921 = vmatprep.subr.mxu0 0.0
        %2922 = vmatpush1.msra.mxu0 0.0
        %2923 = vmatprep.subr.mxu0 0.0
        %2924 = vmatpush1.msra.mxu0 0.0
        %2925 = vmatprep.subr.mxu0 0.0
        %2926 = vmatpush1.msra.mxu0 0.0
        %2927 = vmatprep.subr.mxu0 0.0
        %2928 = vmatpush1.msra.mxu0 0.0
        %2929 = vmatprep.subr.mxu0 0.0
        %2930 = vmatpush1.msra.mxu0 0.0
        %2931 = vmatprep.subr.mxu0 0.0
        %2932 = vmatpush1.msra.mxu0 0.0
        %2933 = vmatprep.subr.mxu0 0.0
        %2934 = vmatpush1.msra.mxu0 0.0
        %2935 = vmatprep.subr.mxu0 0.0
        %2936 = vmatpush1.msra.mxu0 0.0
        %2937 = vmatprep.subr.mxu0 0.0
        %2938 = vmatpush1.msra.mxu0 0.0
        %2939 = vmatprep.subr.mxu0 0.0
        %2940 = vmatpush1.msra.mxu0 0.0
        %2941 = vmatprep.subr.mxu0 0.0
        %2942 = vmatpush1.msra.mxu0 0.0
        %2943 = vmatprep.subr.mxu0 0.0
        %2944 = vmatpush1.msra.mxu0 0.0
        %2945 = vmatprep.subr.mxu0 0.0
        %2946 = vmatpush1.msra.mxu0 0.0
        %2947 = vmatprep.subr.mxu0 0.0
        %2948 = vmatpush1.msra.mxu0 0.0
        %2949 = vmatprep.mubr.f32.mxu0 0.0
        %2950 = vmatmul.mubr.f32.gmra.mrb[0].mxu0 %v2877
        %v2951 = vpop.f32.mrb[0].mxu0
        %v2952 = vadd.f32 0.0, %v2951
        %v2953 = vpop.f32.mrb[0].mxu0
        %2954 = vmatprep.mubr.f32.mxu0 0.0
        %2955 = vmatmul.mubr.f32.gmra.mrb[0].mxu0 %v2879
        %v2956 = vpop.f32.mrb[0].mxu0
        %v2957 = vadd.f32 0.0, %v2956
        %v2958 = vpop.f32.mrb[0].mxu0
        %2959 = vmatprep.mubr.f32.mxu0 0.0
        %2960 = vmatmul.mubr.f32.gmra.mrb[0].mxu0 %v2881
        %v2961 = vpop.f32.mrb[0].mxu0
        %v2962 = vadd.f32 0.0, %v2961
        %v2963 = vpop.f32.mrb[0].mxu0
        %2964 = vdwg.mxu0
        %v2965 = vadd.f32 %v2855, %v2952
        %v2966 = vadd.f32 %v2856, %v2957
        %v2967 = vadd.f32 %v2857, %v2962
        %v2968 = vlaneseq
        %v2969 = vshrl.u32 %v2968, 7
        %v2970 = vsub.s32 3, %v2969
        %v2971 = vrot.slane %v505, %v2970
        %v2972 = vmul.f32 %v2965, %v2971
        %v2973 = vmul.f32 %v2966, %v2971
        %v2974 = vmul.f32 %v2967, %v2971
        %v2975 = vlaneseq
        %v2976 = vshrl.u32 %v2975, 7
        %v2977 = vsub.s32 3, %v2976
        %v2978 = vrot.slane %v506, %v2977
        %v2979 = vadd.f32 %v2972, %v2978
        %v2980 = vadd.f32 %v2973, %v2978
        %v2981 = vadd.f32 %v2974, %v2978
        %v2982 = vtanh.pop %v2979
        %v2983 = vtanh.pop %v2980
        %v2984 = vtanh.pop %v2981
        %s2985 = sadd.s32 %s342, 4294967294
        %v2986 = vstv %s2985
        %v2987 = vadd.s32 %v464, %v2986
        %v2988 = vadd.s32 %v465, %v2986
        %v2989 = vadd.s32 %v466, %v2986
        %vm2990 = vcmp.ge.s32.totalorder %v2987, 0
        %vm2991 = vcmp.ge.s32.totalorder %v2988, 0
        %vm2992 = vcmp.ge.s32.totalorder %v2989, 0
        %vm2993 = vcmp.lt.s32.totalorder %v2987, 16
        %vm2994 = vcmp.lt.s32.totalorder %v2988, 16
        %vm2995 = vcmp.lt.s32.totalorder %v2989, 16
        %vm2996 = vmand %vm2990, %vm2993
        %vm2997 = vmand %vm2991, %vm2994
        %vm2998 = vmand %vm2992, %vm2995
        %v2999 = vsel %vm2996, 1, 0
        %v3000 = vsel %vm2997, 1, 0
        %v3001 = vsel %vm2998, 1, 0
        %vm3002 = vcmp.eq.s32.totalorder %v2999, 1
        %vm3003 = vcmp.eq.s32.totalorder %v3000, 1
        %vm3004 = vcmp.eq.s32.totalorder %v3001, 1
        %v3005 = vsel %vm3002, %v2982, 0.0
        %v3006 = vsel %vm3003, %v2983, 0.0
        %v3007 = vsel %vm3004, %v2984, 0.0
        %s3008 = scalar_lea.vmem [#allocation6], 2560
        %v3009 = vld [vmem:[%s3008] sm:$0xff]
        %v3010 = vld [vmem:[%s3008 + $0x8] sm:$0xff]
        %v3011 = vld [vmem:[%s3008 + $0x10] sm:$0xff]
        %v3012 = vld [vmem:[%s3008 + $0x18] sm:$0xff]
        %v3013 = vld [vmem:[%s3008 + $0x20] sm:$0xff]
        %v3014 = vld [vmem:[%s3008 + $0x28] sm:$0xff]
        %v3015 = vld [vmem:[%s3008 + $0x30] sm:$0xff]
        %v3016 = vld [vmem:[%s3008 + $0x38] sm:$0xff]
        %v3017 = vld [vmem:[%s3008 + $0x40] sm:$0xff]
        %v3018 = vld [vmem:[%s3008 + $0x48] sm:$0xff]
        %v3019 = vld [vmem:[%s3008 + $0x50] sm:$0xff]
        %v3020 = vld [vmem:[%s3008 + $0x58] sm:$0xff]
        %v3021 = vld [vmem:[%s3008 + $0x60] sm:$0xff]
        %v3022 = vld [vmem:[%s3008 + $0x68] sm:$0xff]
        %v3023 = vld [vmem:[%s3008 + $0x70] sm:$0xff]
        %v3024 = vld [vmem:[%s3008 + $0x78] sm:$0xff]
        %s3025 = scalar_lea.vmem [#allocation6], 2688
        %v3026 = vld [vmem:[%s3025] sm:$0xff]
        %v3027 = vld [vmem:[%s3025 + $0x8] sm:$0xff]
        %v3028 = vld [vmem:[%s3025 + $0x10] sm:$0xff]
        %v3029 = vld [vmem:[%s3025 + $0x18] sm:$0xff]
        %v3030 = vld [vmem:[%s3025 + $0x20] sm:$0xff]
        %v3031 = vld [vmem:[%s3025 + $0x28] sm:$0xff]
        %v3032 = vld [vmem:[%s3025 + $0x30] sm:$0xff]
        %v3033 = vld [vmem:[%s3025 + $0x38] sm:$0xff]
        %v3034 = vld [vmem:[%s3025 + $0x40] sm:$0xff]
        %v3035 = vld [vmem:[%s3025 + $0x48] sm:$0xff]
        %v3036 = vld [vmem:[%s3025 + $0x50] sm:$0xff]
        %v3037 = vld [vmem:[%s3025 + $0x58] sm:$0xff]
        %v3038 = vld [vmem:[%s3025 + $0x60] sm:$0xff]
        %v3039 = vld [vmem:[%s3025 + $0x68] sm:$0xff]
        %v3040 = vld [vmem:[%s3025 + $0x70] sm:$0xff]
        %v3041 = vld [vmem:[%s3025 + $0x78] sm:$0xff]
        %v3045 = vrot.slane %v3005, 1
        %v3046 = vrot.slane %v3006, 1
        %v3047 = vsel %vm545, %v3045, %v3046
        %v3048 = vrot.slane %v3007, 1
        %v3049 = vsel %vm545, %v3046, %v3048
        %3053 = vmatprep.subr.mxu0 0.0
        %3054 = vmatpush1.msra.mxu0 %v3026
        %3055 = vmatprep.subr.mxu0 0.0
        %3056 = vmatpush1.msra.mxu0 %v3027
        %3057 = vmatprep.subr.mxu0 0.0
        %3058 = vmatpush1.msra.mxu0 %v3028
        %3059 = vmatprep.subr.mxu0 0.0
        %3060 = vmatpush1.msra.mxu0 %v3029
        %3061 = vmatprep.subr.mxu0 0.0
        %3062 = vmatpush1.msra.mxu0 %v3030
        %3063 = vmatprep.subr.mxu0 0.0
        %3064 = vmatpush1.msra.mxu0 %v3031
        %3065 = vmatprep.subr.mxu0 0.0
        %3066 = vmatpush1.msra.mxu0 %v3032
        %3067 = vmatprep.subr.mxu0 0.0
        %3068 = vmatpush1.msra.mxu0 %v3033
        %3069 = vmatprep.subr.mxu0 0.0
        %3070 = vmatpush1.msra.mxu0 %v3034
        %3071 = vmatprep.subr.mxu0 0.0
        %3072 = vmatpush1.msra.mxu0 %v3035
        %3073 = vmatprep.subr.mxu0 0.0
        %3074 = vmatpush1.msra.mxu0 %v3036
        %3075 = vmatprep.subr.mxu0 0.0
        %3076 = vmatpush1.msra.mxu0 %v3037
        %3077 = vmatprep.subr.mxu0 0.0
        %3078 = vmatpush1.msra.mxu0 %v3038
        %3079 = vmatprep.subr.mxu0 0.0
        %3080 = vmatpush1.msra.mxu0 %v3039
        %3081 = vmatprep.subr.mxu0 0.0
        %3082 = vmatpush1.msra.mxu0 %v3040
        %3083 = vmatprep.subr.mxu0 0.0
        %3084 = vmatpush1.msra.mxu0 %v3041
        %3085 = vmatprep.subr.mxu0 0.0
        %3086 = vmatpush1.msra.mxu0 0.0
        %3087 = vmatprep.subr.mxu0 0.0
        %3088 = vmatpush1.msra.mxu0 0.0
        %3089 = vmatprep.subr.mxu0 0.0
        %3090 = vmatpush1.msra.mxu0 0.0
        %3091 = vmatprep.subr.mxu0 0.0
        %3092 = vmatpush1.msra.mxu0 0.0
        %3093 = vmatprep.subr.mxu0 0.0
        %3094 = vmatpush1.msra.mxu0 0.0
        %3095 = vmatprep.subr.mxu0 0.0
        %3096 = vmatpush1.msra.mxu0 0.0
        %3097 = vmatprep.subr.mxu0 0.0
        %3098 = vmatpush1.msra.mxu0 0.0
        %3099 = vmatprep.subr.mxu0 0.0
        %3100 = vmatpush1.msra.mxu0 0.0
        %3101 = vmatprep.subr.mxu0 0.0
        %3102 = vmatpush1.msra.mxu0 0.0
        %3103 = vmatprep.subr.mxu0 0.0
        %3104 = vmatpush1.msra.mxu0 0.0
        %3105 = vmatprep.subr.mxu0 0.0
        %3106 = vmatpush1.msra.mxu0 0.0
        %3107 = vmatprep.subr.mxu0 0.0
        %3108 = vmatpush1.msra.mxu0 0.0
        %3109 = vmatprep.subr.mxu0 0.0
        %3110 = vmatpush1.msra.mxu0 0.0
        %3111 = vmatprep.subr.mxu0 0.0
        %3112 = vmatpush1.msra.mxu0 0.0
        %3113 = vmatprep.subr.mxu0 0.0
        %3114 = vmatpush1.msra.mxu0 0.0
        %3115 = vmatprep.subr.mxu0 0.0
        %3116 = vmatpush1.msra.mxu0 0.0
        %3117 = vmatprep.mubr.f32.mxu0 0.0
        %3118 = vmatmul.mubr.f32.gmra.mrb[0].mxu0 %v3047
        %v3119 = vpop.f32.mrb[0].mxu0
        %v3120 = vadd.f32 0.0, %v3119
        %v3121 = vpop.f32.mrb[0].mxu0
        %3122 = vmatprep.mubr.f32.mxu0 0.0
        %3123 = vmatmul.mubr.f32.gmra.mrb[0].mxu0 %v3049
        %v3124 = vpop.f32.mrb[0].mxu0
        %v3125 = vadd.f32 0.0, %v3124
        %v3126 = vpop.f32.mrb[0].mxu0
        %3127 = vmatprep.mubr.f32.mxu0 0.0
        %3128 = vmatmul.mubr.f32.gmra.mrb[0].mxu0 %v3048
        %v3129 = vpop.f32.mrb[0].mxu0
        %v3130 = vpop.f32.mrb[0].mxu0
        %3131 = vdwg.mxu0
        %3132 = vmatprep.subr.mxu0 0.0
        %3133 = vmatpush1.msra.mxu0 %v3009
        %3134 = vmatprep.subr.mxu0 0.0
        %3135 = vmatpush1.msra.mxu0 %v3010
        %3136 = vmatprep.subr.mxu0 0.0
        %3137 = vmatpush1.msra.mxu0 %v3011
        %3138 = vmatprep.subr.mxu0 0.0
        %3139 = vmatpush1.msra.mxu0 %v3012
        %3140 = vmatprep.subr.mxu0 0.0
        %3141 = vmatpush1.msra.mxu0 %v3013
        %3142 = vmatprep.subr.mxu0 0.0
        %3143 = vmatpush1.msra.mxu0 %v3014
        %3144 = vmatprep.subr.mxu0 0.0
        %3145 = vmatpush1.msra.mxu0 %v3015
        %3146 = vmatprep.subr.mxu0 0.0
        %3147 = vmatpush1.msra.mxu0 %v3016
        %3148 = vmatprep.subr.mxu0 0.0
        %3149 = vmatpush1.msra.mxu0 %v3017
        %3150 = vmatprep.subr.mxu0 0.0
        %3151 = vmatpush1.msra.mxu0 %v3018
        %3152 = vmatprep.subr.mxu0 0.0
        %3153 = vmatpush1.msra.mxu0 %v3019
        %3154 = vmatprep.subr.mxu0 0.0
        %3155 = vmatpush1.msra.mxu0 %v3020
        %3156 = vmatprep.subr.mxu0 0.0
        %3157 = vmatpush1.msra.mxu0 %v3021
        %3158 = vmatprep.subr.mxu0 0.0
        %3159 = vmatpush1.msra.mxu0 %v3022
        %3160 = vmatprep.subr.mxu0 0.0
        %3161 = vmatpush1.msra.mxu0 %v3023
        %3162 = vmatprep.subr.mxu0 0.0
        %3163 = vmatpush1.msra.mxu0 %v3024
        %3164 = vmatprep.subr.mxu0 0.0
        %3165 = vmatpush1.msra.mxu0 0.0
        %3166 = vmatprep.subr.mxu0 0.0
        %3167 = vmatpush1.msra.mxu0 0.0
        %3168 = vmatprep.subr.mxu0 0.0
        %3169 = vmatpush1.msra.mxu0 0.0
        %3170 = vmatprep.subr.mxu0 0.0
        %3171 = vmatpush1.msra.mxu0 0.0
        %3172 = vmatprep.subr.mxu0 0.0
        %3173 = vmatpush1.msra.mxu0 0.0
        %3174 = vmatprep.subr.mxu0 0.0
        %3175 = vmatpush1.msra.mxu0 0.0
        %3176 = vmatprep.subr.mxu0 0.0
        %3177 = vmatpush1.msra.mxu0 0.0
        %3178 = vmatprep.subr.mxu0 0.0
        %3179 = vmatpush1.msra.mxu0 0.0
        %3180 = vmatprep.subr.mxu0 0.0
        %3181 = vmatpush1.msra.mxu0 0.0
        %3182 = vmatprep.subr.mxu0 0.0
        %3183 = vmatpush1.msra.mxu0 0.0
        %3184 = vmatprep.subr.mxu0 0.0
        %3185 = vmatpush1.msra.mxu0 0.0
        %3186 = vmatprep.subr.mxu0 0.0
        %3187 = vmatpush1.msra.mxu0 0.0
        %3188 = vmatprep.subr.mxu0 0.0
        %3189 = vmatpush1.msra.mxu0 0.0
        %3190 = vmatprep.subr.mxu0 0.0
        %3191 = vmatpush1.msra.mxu0 0.0
        %3192 = vmatprep.subr.mxu0 0.0
        %3193 = vmatpush1.msra.mxu0 0.0
        %3194 = vmatprep.subr.mxu0 0.0
        %3195 = vmatpush1.msra.mxu0 0.0
        %3196 = vmatprep.mubr.f32.mxu0 0.0
        %3197 = vmatmul.mubr.f32.gmra.mrb[0].mxu0 %v3005
        %v3198 = vpop.f32.mrb[0].mxu0
        %v3199 = vadd.f32 %v3120, %v3198
        %v3200 = vpop.f32.mrb[0].mxu0
        %3201 = vmatprep.mubr.f32.mxu0 0.0
        %3202 = vmatmul.mubr.f32.gmra.mrb[0].mxu0 %v3006
        %v3203 = vpop.f32.mrb[0].mxu0
        %v3204 = vadd.f32 %v3125, %v3203
        %v3205 = vpop.f32.mrb[0].mxu0
        %3206 = vmatprep.mubr.f32.mxu0 0.0
        %3207 = vmatmul.mubr.f32.gmra.mrb[0].mxu0 %v3007
        %v3208 = vpop.f32.mrb[0].mxu0
        %v3209 = vpop.f32.mrb[0].mxu0
        %3210 = vdwg.mxu0
        %s3211 = scalar_lea.vmem [#allocation6], 2816
        %v3212 = vld [vmem:[%s3211] sm:$0xff]
        %v3213 = vld [vmem:[%s3211 + $0x8] sm:$0xff]
        %v3214 = vld [vmem:[%s3211 + $0x10] sm:$0xff]
        %v3215 = vld [vmem:[%s3211 + $0x18] sm:$0xff]
        %v3216 = vld [vmem:[%s3211 + $0x20] sm:$0xff]
        %v3217 = vld [vmem:[%s3211 + $0x28] sm:$0xff]
        %v3218 = vld [vmem:[%s3211 + $0x30] sm:$0xff]
        %v3219 = vld [vmem:[%s3211 + $0x38] sm:$0xff]
        %v3220 = vld [vmem:[%s3211 + $0x40] sm:$0xff]
        %v3221 = vld [vmem:[%s3211 + $0x48] sm:$0xff]
        %v3222 = vld [vmem:[%s3211 + $0x50] sm:$0xff]
        %v3223 = vld [vmem:[%s3211 + $0x58] sm:$0xff]
        %v3224 = vld [vmem:[%s3211 + $0x60] sm:$0xff]
        %v3225 = vld [vmem:[%s3211 + $0x68] sm:$0xff]
        %v3226 = vld [vmem:[%s3211 + $0x70] sm:$0xff]
        %v3227 = vld [vmem:[%s3211 + $0x78] sm:$0xff]
        %v3228 = vrot.slane %v3005, 2
        %v3229 = vrot.slane %v3006, 2
        %v3230 = vsel %vm757, %v3228, %v3229
        %v3231 = vrot.slane %v3007, 2
        %v3232 = vsel %vm757, %v3229, %v3231
        %3236 = vmatprep.subr.mxu0 0.0
        %3237 = vmatpush1.msra.mxu0 %v3212
        %3238 = vmatprep.subr.mxu0 0.0
        %3239 = vmatpush1.msra.mxu0 %v3213
        %3240 = vmatprep.subr.mxu0 0.0
        %3241 = vmatpush1.msra.mxu0 %v3214
        %3242 = vmatprep.subr.mxu0 0.0
        %3243 = vmatpush1.msra.mxu0 %v3215
        %3244 = vmatprep.subr.mxu0 0.0
        %3245 = vmatpush1.msra.mxu0 %v3216
        %3246 = vmatprep.subr.mxu0 0.0
        %3247 = vmatpush1.msra.mxu0 %v3217
        %3248 = vmatprep.subr.mxu0 0.0
        %3249 = vmatpush1.msra.mxu0 %v3218
        %3250 = vmatprep.subr.mxu0 0.0
        %3251 = vmatpush1.msra.mxu0 %v3219
        %3252 = vmatprep.subr.mxu0 0.0
        %3253 = vmatpush1.msra.mxu0 %v3220
        %3254 = vmatprep.subr.mxu0 0.0
        %3255 = vmatpush1.msra.mxu0 %v3221
        %3256 = vmatprep.subr.mxu0 0.0
        %3257 = vmatpush1.msra.mxu0 %v3222
        %3258 = vmatprep.subr.mxu0 0.0
        %3259 = vmatpush1.msra.mxu0 %v3223
        %3260 = vmatprep.subr.mxu0 0.0
        %3261 = vmatpush1.msra.mxu0 %v3224
        %3262 = vmatprep.subr.mxu0 0.0
        %3263 = vmatpush1.msra.mxu0 %v3225
        %3264 = vmatprep.subr.mxu0 0.0
        %3265 = vmatpush1.msra.mxu0 %v3226
        %3266 = vmatprep.subr.mxu0 0.0
        %3267 = vmatpush1.msra.mxu0 %v3227
        %3268 = vmatprep.subr.mxu0 0.0
        %3269 = vmatpush1.msra.mxu0 0.0
        %3270 = vmatprep.subr.mxu0 0.0
        %3271 = vmatpush1.msra.mxu0 0.0
        %3272 = vmatprep.subr.mxu0 0.0
        %3273 = vmatpush1.msra.mxu0 0.0
        %3274 = vmatprep.subr.mxu0 0.0
        %3275 = vmatpush1.msra.mxu0 0.0
        %3276 = vmatprep.subr.mxu0 0.0
        %3277 = vmatpush1.msra.mxu0 0.0
        %3278 = vmatprep.subr.mxu0 0.0
        %3279 = vmatpush1.msra.mxu0 0.0
        %3280 = vmatprep.subr.mxu0 0.0
        %3281 = vmatpush1.msra.mxu0 0.0
        %3282 = vmatprep.subr.mxu0 0.0
        %3283 = vmatpush1.msra.mxu0 0.0
        %3284 = vmatprep.subr.mxu0 0.0
        %3285 = vmatpush1.msra.mxu0 0.0
        %3286 = vmatprep.subr.mxu0 0.0
        %3287 = vmatpush1.msra.mxu0 0.0
        %3288 = vmatprep.subr.mxu0 0.0
        %3289 = vmatpush1.msra.mxu0 0.0
        %3290 = vmatprep.subr.mxu0 0.0
        %3291 = vmatpush1.msra.mxu0 0.0
        %3292 = vmatprep.subr.mxu0 0.0
        %3293 = vmatpush1.msra.mxu0 0.0
        %3294 = vmatprep.subr.mxu0 0.0
        %3295 = vmatpush1.msra.mxu0 0.0
        %3296 = vmatprep.subr.mxu0 0.0
        %3297 = vmatpush1.msra.mxu0 0.0
        %3298 = vmatprep.subr.mxu0 0.0
        %3299 = vmatpush1.msra.mxu0 0.0
        %3300 = vmatprep.mubr.f32.mxu0 0.0
        %3301 = vmatmul.mubr.f32.gmra.mrb[0].mxu0 %v3230
        %v3302 = vpop.f32.mrb[0].mxu0
        %v3303 = vadd.f32 0.0, %v3302
        %v3304 = vpop.f32.mrb[0].mxu0
        %3305 = vmatprep.mubr.f32.mxu0 0.0
        %3306 = vmatmul.mubr.f32.gmra.mrb[0].mxu0 %v3232
        %v3307 = vpop.f32.mrb[0].mxu0
        %v3308 = vadd.f32 0.0, %v3307
        %v3309 = vpop.f32.mrb[0].mxu0
        %3310 = vmatprep.mubr.f32.mxu0 0.0
        %3311 = vmatmul.mubr.f32.gmra.mrb[0].mxu0 %v3231
        %v3312 = vpop.f32.mrb[0].mxu0
        %v3313 = vpop.f32.mrb[0].mxu0
        %3314 = vdwg.mxu0
        %v3315 = vadd.f32 %v3199, %v3303
        %v3316 = vadd.f32 %v3204, %v3308
        %s3317 = scalar_lea.vmem [#allocation6], 2944
        %v3318 = vld [vmem:[%s3317] sm:$0xff]
        %v3319 = vld [vmem:[%s3317 + $0x8] sm:$0xff]
        %v3320 = vld [vmem:[%s3317 + $0x10] sm:$0xff]
        %v3321 = vld [vmem:[%s3317 + $0x18] sm:$0xff]
        %v3322 = vld [vmem:[%s3317 + $0x20] sm:$0xff]
        %v3323 = vld [vmem:[%s3317 + $0x28] sm:$0xff]
        %v3324 = vld [vmem:[%s3317 + $0x30] sm:$0xff]
        %v3325 = vld [vmem:[%s3317 + $0x38] sm:$0xff]
        %v3326 = vld [vmem:[%s3317 + $0x40] sm:$0xff]
        %v3327 = vld [vmem:[%s3317 + $0x48] sm:$0xff]
        %v3328 = vld [vmem:[%s3317 + $0x50] sm:$0xff]
        %v3329 = vld [vmem:[%s3317 + $0x58] sm:$0xff]
        %v3330 = vld [vmem:[%s3317 + $0x60] sm:$0xff]
        %v3331 = vld [vmem:[%s3317 + $0x68] sm:$0xff]
        %v3332 = vld [vmem:[%s3317 + $0x70] sm:$0xff]
        %v3333 = vld [vmem:[%s3317 + $0x78] sm:$0xff]
        %v3334 = vrot.slane %v3005, 3
        %v3335 = vrot.slane %v3006, 3
        %v3336 = vsel %vm884, %v3334, %v3335
        %v3337 = vrot.slane %v3007, 3
        %v3338 = vsel %vm884, %v3335, %v3337
        %3342 = vmatprep.subr.mxu0 0.0
        %3343 = vmatpush1.msra.mxu0 %v3318
        %3344 = vmatprep.subr.mxu0 0.0
        %3345 = vmatpush1.msra.mxu0 %v3319
        %3346 = vmatprep.subr.mxu0 0.0
        %3347 = vmatpush1.msra.mxu0 %v3320
        %3348 = vmatprep.subr.mxu0 0.0
        %3349 = vmatpush1.msra.mxu0 %v3321
        %3350 = vmatprep.subr.mxu0 0.0
        %3351 = vmatpush1.msra.mxu0 %v3322
        %3352 = vmatprep.subr.mxu0 0.0
        %3353 = vmatpush1.msra.mxu0 %v3323
        %3354 = vmatprep.subr.mxu0 0.0
        %3355 = vmatpush1.msra.mxu0 %v3324
        %3356 = vmatprep.subr.mxu0 0.0
        %3357 = vmatpush1.msra.mxu0 %v3325
        %3358 = vmatprep.subr.mxu0 0.0
        %3359 = vmatpush1.msra.mxu0 %v3326
        %3360 = vmatprep.subr.mxu0 0.0
        %3361 = vmatpush1.msra.mxu0 %v3327
        %3362 = vmatprep.subr.mxu0 0.0
        %3363 = vmatpush1.msra.mxu0 %v3328
        %3364 = vmatprep.subr.mxu0 0.0
        %3365 = vmatpush1.msra.mxu0 %v3329
        %3366 = vmatprep.subr.mxu0 0.0
        %3367 = vmatpush1.msra.mxu0 %v3330
        %3368 = vmatprep.subr.mxu0 0.0
        %3369 = vmatpush1.msra.mxu0 %v3331
        %3370 = vmatprep.subr.mxu0 0.0
        %3371 = vmatpush1.msra.mxu0 %v3332
        %3372 = vmatprep.subr.mxu0 0.0
        %3373 = vmatpush1.msra.mxu0 %v3333
        %3374 = vmatprep.subr.mxu0 0.0
        %3375 = vmatpush1.msra.mxu0 0.0
        %3376 = vmatprep.subr.mxu0 0.0
        %3377 = vmatpush1.msra.mxu0 0.0
        %3378 = vmatprep.subr.mxu0 0.0
        %3379 = vmatpush1.msra.mxu0 0.0
        %3380 = vmatprep.subr.mxu0 0.0
        %3381 = vmatpush1.msra.mxu0 0.0
        %3382 = vmatprep.subr.mxu0 0.0
        %3383 = vmatpush1.msra.mxu0 0.0
        %3384 = vmatprep.subr.mxu0 0.0
        %3385 = vmatpush1.msra.mxu0 0.0
        %3386 = vmatprep.subr.mxu0 0.0
        %3387 = vmatpush1.msra.mxu0 0.0
        %3388 = vmatprep.subr.mxu0 0.0
        %3389 = vmatpush1.msra.mxu0 0.0
        %3390 = vmatprep.subr.mxu0 0.0
        %3391 = vmatpush1.msra.mxu0 0.0
        %3392 = vmatprep.subr.mxu0 0.0
        %3393 = vmatpush1.msra.mxu0 0.0
        %3394 = vmatprep.subr.mxu0 0.0
        %3395 = vmatpush1.msra.mxu0 0.0
        %3396 = vmatprep.subr.mxu0 0.0
        %3397 = vmatpush1.msra.mxu0 0.0
        %3398 = vmatprep.subr.mxu0 0.0
        %3399 = vmatpush1.msra.mxu0 0.0
        %3400 = vmatprep.subr.mxu0 0.0
        %3401 = vmatpush1.msra.mxu0 0.0
        %3402 = vmatprep.subr.mxu0 0.0
        %3403 = vmatpush1.msra.mxu0 0.0
        %3404 = vmatprep.subr.mxu0 0.0
        %3405 = vmatpush1.msra.mxu0 0.0
        %3406 = vmatprep.mubr.f32.mxu0 0.0
        %3407 = vmatmul.mubr.f32.gmra.mrb[0].mxu0 %v3336
        %v3408 = vpop.f32.mrb[0].mxu0
        %v3409 = vadd.f32 0.0, %v3408
        %v3410 = vpop.f32.mrb[0].mxu0
        %3411 = vmatprep.mubr.f32.mxu0 0.0
        %3412 = vmatmul.mubr.f32.gmra.mrb[0].mxu0 %v3338
        %v3413 = vpop.f32.mrb[0].mxu0
        %v3414 = vadd.f32 0.0, %v3413
        %v3415 = vpop.f32.mrb[0].mxu0
        %3416 = vmatprep.mubr.f32.mxu0 0.0
        %3417 = vmatmul.mubr.f32.gmra.mrb[0].mxu0 %v3337
        %v3418 = vpop.f32.mrb[0].mxu0
        %v3419 = vpop.f32.mrb[0].mxu0
        %3420 = vdwg.mxu0
        %v3421 = vadd.f32 %v3315, %v3409
        %v3422 = vadd.f32 %v3316, %v3414
        %s3423 = scalar_lea.vmem [#allocation6], 3072
        %v3424 = vld [vmem:[%s3423] sm:$0xff]
        %v3425 = vld [vmem:[%s3423 + $0x8] sm:$0xff]
        %v3426 = vld [vmem:[%s3423 + $0x10] sm:$0xff]
        %v3427 = vld [vmem:[%s3423 + $0x18] sm:$0xff]
        %v3428 = vld [vmem:[%s3423 + $0x20] sm:$0xff]
        %v3429 = vld [vmem:[%s3423 + $0x28] sm:$0xff]
        %v3430 = vld [vmem:[%s3423 + $0x30] sm:$0xff]
        %v3431 = vld [vmem:[%s3423 + $0x38] sm:$0xff]
        %v3432 = vld [vmem:[%s3423 + $0x40] sm:$0xff]
        %v3433 = vld [vmem:[%s3423 + $0x48] sm:$0xff]
        %v3434 = vld [vmem:[%s3423 + $0x50] sm:$0xff]
        %v3435 = vld [vmem:[%s3423 + $0x58] sm:$0xff]
        %v3436 = vld [vmem:[%s3423 + $0x60] sm:$0xff]
        %v3437 = vld [vmem:[%s3423 + $0x68] sm:$0xff]
        %v3438 = vld [vmem:[%s3423 + $0x70] sm:$0xff]
        %v3439 = vld [vmem:[%s3423 + $0x78] sm:$0xff]
        %v3440 = vrot.slane %v3005, 4
        %v3441 = vrot.slane %v3006, 4
        %v3442 = vsel %vm1011, %v3440, %v3441
        %v3443 = vrot.slane %v3007, 4
        %v3444 = vsel %vm1011, %v3441, %v3443
        %3448 = vmatprep.subr.mxu0 0.0
        %3449 = vmatpush1.msra.mxu0 %v3424
        %3450 = vmatprep.subr.mxu0 0.0
        %3451 = vmatpush1.msra.mxu0 %v3425
        %3452 = vmatprep.subr.mxu0 0.0
        %3453 = vmatpush1.msra.mxu0 %v3426
        %3454 = vmatprep.subr.mxu0 0.0
        %3455 = vmatpush1.msra.mxu0 %v3427
        %3456 = vmatprep.subr.mxu0 0.0
        %3457 = vmatpush1.msra.mxu0 %v3428
        %3458 = vmatprep.subr.mxu0 0.0
        %3459 = vmatpush1.msra.mxu0 %v3429
        %3460 = vmatprep.subr.mxu0 0.0
        %3461 = vmatpush1.msra.mxu0 %v3430
        %3462 = vmatprep.subr.mxu0 0.0
        %3463 = vmatpush1.msra.mxu0 %v3431
        %3464 = vmatprep.subr.mxu0 0.0
        %3465 = vmatpush1.msra.mxu0 %v3432
        %3466 = vmatprep.subr.mxu0 0.0
        %3467 = vmatpush1.msra.mxu0 %v3433
        %3468 = vmatprep.subr.mxu0 0.0
        %3469 = vmatpush1.msra.mxu0 %v3434
        %3470 = vmatprep.subr.mxu0 0.0
        %3471 = vmatpush1.msra.mxu0 %v3435
        %3472 = vmatprep.subr.mxu0 0.0
        %3473 = vmatpush1.msra.mxu0 %v3436
        %3474 = vmatprep.subr.mxu0 0.0
        %3475 = vmatpush1.msra.mxu0 %v3437
        %3476 = vmatprep.subr.mxu0 0.0
        %3477 = vmatpush1.msra.mxu0 %v3438
        %3478 = vmatprep.subr.mxu0 0.0
        %3479 = vmatpush1.msra.mxu0 %v3439
        %3480 = vmatprep.subr.mxu0 0.0
        %3481 = vmatpush1.msra.mxu0 0.0
        %3482 = vmatprep.subr.mxu0 0.0
        %3483 = vmatpush1.msra.mxu0 0.0
        %3484 = vmatprep.subr.mxu0 0.0
        %3485 = vmatpush1.msra.mxu0 0.0
        %3486 = vmatprep.subr.mxu0 0.0
        %3487 = vmatpush1.msra.mxu0 0.0
        %3488 = vmatprep.subr.mxu0 0.0
        %3489 = vmatpush1.msra.mxu0 0.0
        %3490 = vmatprep.subr.mxu0 0.0
        %3491 = vmatpush1.msra.mxu0 0.0
        %3492 = vmatprep.subr.mxu0 0.0
        %3493 = vmatpush1.msra.mxu0 0.0
        %3494 = vmatprep.subr.mxu0 0.0
        %3495 = vmatpush1.msra.mxu0 0.0
        %3496 = vmatprep.subr.mxu0 0.0
        %3497 = vmatpush1.msra.mxu0 0.0
        %3498 = vmatprep.subr.mxu0 0.0
        %3499 = vmatpush1.msra.mxu0 0.0
        %3500 = vmatprep.subr.mxu0 0.0
        %3501 = vmatpush1.msra.mxu0 0.0
        %3502 = vmatprep.subr.mxu0 0.0
        %3503 = vmatpush1.msra.mxu0 0.0
        %3504 = vmatprep.subr.mxu0 0.0
        %3505 = vmatpush1.msra.mxu0 0.0
        %3506 = vmatprep.subr.mxu0 0.0
        %3507 = vmatpush1.msra.mxu0 0.0
        %3508 = vmatprep.subr.mxu0 0.0
        %3509 = vmatpush1.msra.mxu0 0.0
        %3510 = vmatprep.subr.mxu0 0.0
        %3511 = vmatpush1.msra.mxu0 0.0
        %3512 = vmatprep.mubr.f32.mxu0 0.0
        %3513 = vmatmul.mubr.f32.gmra.mrb[0].mxu0 %v3442
        %v3514 = vpop.f32.mrb[0].mxu0
        %v3515 = vadd.f32 0.0, %v3514
        %v3516 = vpop.f32.mrb[0].mxu0
        %3517 = vmatprep.mubr.f32.mxu0 0.0
        %3518 = vmatmul.mubr.f32.gmra.mrb[0].mxu0 %v3444
        %v3519 = vpop.f32.mrb[0].mxu0
        %v3520 = vadd.f32 0.0, %v3519
        %v3521 = vpop.f32.mrb[0].mxu0
        %3522 = vmatprep.mubr.f32.mxu0 0.0
        %3523 = vmatmul.mubr.f32.gmra.mrb[0].mxu0 %v3443
        %v3524 = vpop.f32.mrb[0].mxu0
        %v3525 = vpop.f32.mrb[0].mxu0
        %3526 = vdwg.mxu0
        %v3527 = vadd.f32 %v3421, %v3515
        %v3528 = vadd.f32 %v3422, %v3520
        %v3529 = vlaneseq
        %v3530 = vshrl.u32 %v3529, 7
        %v3531 = vsub.s32 4, %v3530
        %v3532 = vrot.slane %v505, %v3531
        %v3533 = vmul.f32 %v3527, %v3532
        %v3534 = vmul.f32 %v3528, %v3532
        %v3535 = vlaneseq
        %v3536 = vshrl.u32 %v3535, 7
        %v3537 = vsub.s32 4, %v3536
        %v3538 = vrot.slane %v506, %v3537
        %v3539 = vadd.f32 %v3533, %v3538
        %v3540 = vadd.f32 %v3534, %v3538
        %v3541 = vadd.f32 %v3539, %v762
        %v3542 = vadd.f32 %v3540, %v764
        %3543 = vst [vmem:[%s340] sm:$0xff] %v3541
        %3544 = vst [vmem:[%s340 + $0x8] sm:$0xff] %v3542
        %s3545 = smul.u32 2, %s25
        %p3546 = scmp.lt.s32.totalorder %s24, 1
        %s3547 = scalar_select %p3546, %s24, 1
        %p3548 = scmp.lt.s32.totalorder %s3545, 1
        %s3549 = scalar_select %p3548, %s3545, 1
        %s3550 = smul.addr %s3547, 2
        %s3551 = sadd.s32 %s3549, %s3550
        %s3552 = smul.addr %s3551, 8
        %s3553 = scalar_lea.vmem %s6, %s3552
        // Predicated region
        $region65: #{_lambda_.1} parent=43 // pred_check
          %p3554 = pneg %p183
        $region66: #{_lambda_.1} parent=43 // pred_check_branch
          %3556 = sbr.rel (%p3554) target = $region68
        $region67: #{_lambda_.1} parent=43 // pred_region
          %s3557 = smul.u32 2, %s25
        $region68: #{_lambda_.1} parent=43 // pred_fallthru
          _
      $region44: #{_lambda_.1} parent=5 // pred_fallthru
        _
      %p3558 = scmp.le.s32.totalorder 2, %s15
      // Predicated region
      $region69: #{_lambda_.1} parent=5 // pred_check
        %p3559 = pneg %p3558
      $region70: #{_lambda_.1} parent=5 // pred_check_branch
        %3561 = sbr.rel (%p3559) target = $region72
      $region71: #{_lambda_.1} parent=5 // pred_region
        %s3562 = ssub.s32 %s15, 2
        // Predicated region
        $region73: #{_lambda_.1} parent=71 // pred_check
          %p3563 = pneg %p189
        $region74: #{_lambda_.1} parent=71 // pred_check_branch
          %3565 = sbr.rel (%p3563) target = $region76
        $region75: #{_lambda_.1} parent=71 // pred_region
          %s3566 = smul.u32 2, %s27
          %p3567 = scmp.lt.s32.totalorder %s26, 1
          %s3568 = scalar_select %p3567, %s26, 1
          %p3569 = scmp.lt.s32.totalorder %s3566, 1
          %s3570 = scalar_select %p3569, %s3566, 1
          %s3571 = smul.addr %s3568, 2
          %s3572 = sadd.s32 %s3570, %s3571
          %s3573 = smul.addr %s3572, 8
          %s3574 = scalar_lea.vmem %s6, %s3573
        $region76: #{_lambda_.1} parent=71 // pred_fallthru
          _
      $region72: #{_lambda_.1} parent=5 // pred_fallthru
        _
    $region6: #{_lambda_.1} parent=1 // loop_footer
      %s19 = sadd.s32 1, %s15
    $region7: #{_lambda_.1} parent=1 // loop_footer_branch
      %14 = sbr.rel target = $region3
    $region8: #{_lambda_.1} parent=1 // loop_exit
      _
    %3575 = vsyncpa [#allocation3], 1
    %s3576 = scalar_lea.sflag [#allocation3], 1
    %3577 = vsyncpa %s3576, 1
    %3578 = vsyncpa [#allocation5], 1
    %3579 = vsyncpa [#allocation8], 1

</llo_original>
